<compile_context>
chip_gen: v7x
topology: tpu7x:2x2x1
jax: 0.10.0
libtpu: 0.0.40
codegen_flags: <defaults>
</compile_context>

<pallas_src>
import functools

import jax
import jax.numpy as jnp
import numpy as np
from jax import lax
from jax.experimental import pallas as pl
from jax.experimental.pallas import tpu as pltpu

_CONTRACT_LAST = (((1,), (1,)), ((), ()))  # contract last dim of lhs with last dim of rhs


def _biatt_block(inp_ref, mem_ref, mask, iw, mw, ds, wa, wb, wc, wd, b,
                 out_scr, out1_scr, rowmax_scr, row_tile):
    """One BiAttention + Linear(4D->D) + ReLU stage, row-tiled.

    inp_ref : (Li, D) f32 Ref   (rows of the attention)
    mem_ref : (Lm, D) f32 Ref   (memory, resident only as bf16)
    mask    : (1, Lm) f32 value in {0, 1} (memory-side real_mask)
    iw, mw, ds, b : (1, D) f32 values
    wa..wd  : (D, D) bf16 values (pre-transposed Linear(4D->D) weight, split in 4)
    out_scr : (Li, D) f32 scratch -> receives relu(concat @ W + b)
    out1_scr: (Li, D) bf16 scratch, rowmax_scr: (Li, 1) f32 scratch
    """
    Li = inp_ref.shape[0]
    n_tiles = Li // row_tile
    unroll = n_tiles <= 8

    # Memory kept resident in bf16 only; dot_scale folded into the memory once.
    mem_bf = mem_ref[...].astype(jnp.bfloat16)                           # (Lm, D)
    mem_scaled = mem_bf * ds.astype(jnp.bfloat16)                        # (Lm, D)

    # memory_dot + mask bias folded into a single (1, Lm) row, added once per tile.
    mem_dot = lax.dot_general(mw.astype(jnp.bfloat16), mem_bf, _CONTRACT_LAST,
                              preferred_element_type=jnp.float32)        # (1, Lm)
    bias_row = mem_dot - 1e30 * (1.0 - mask)                             # (1, Lm)

    @pl.loop(0, n_tiles, unroll=unroll)
    def _(t):
        rows = pl.ds(pl.multiple_of(t * row_tile, row_tile), row_tile)
        inp_t = inp_ref[rows, :]                                         # (R, D) f32
        inp_bf = inp_t.astype(jnp.bfloat16)                              # reused twice
        # attention scores; input_dot is a per-row constant -> dropped here (it
        # cancels in the row softmax) and re-added to the row max below for out2.
        att = lax.dot_general(inp_bf, mem_scaled, _CONTRACT_LAST,
                              preferred_element_type=jnp.float32)        # (R, Lm)
        att = att + bias_row
        att_max = jnp.max(att, axis=-1, keepdims=True)                   # (R, 1)
        p = jnp.exp(att - att_max)
        denom = jnp.sum(p, axis=-1, keepdims=True)                       # (R, 1)
        # softmax(att) @ mem with deferred normalization (EUP approx reciprocal)
        out1_t = jnp.dot(p.astype(jnp.bfloat16), mem_bf,
                         preferred_element_type=jnp.float32)             # (R, D)
        out1_t = out1_t * pl.reciprocal(denom, approx=True)
        out1_bf = out1_t.astype(jnp.bfloat16)
        # partial Linear(4D->D): blocks for [inp, out1, inp*out1]
        h_part = jnp.dot(inp_bf, wa, preferred_element_type=jnp.float32)
        h_part = h_part + jnp.dot(out1_bf, wb, preferred_element_type=jnp.float32)
        h_part = h_part + jnp.dot((inp_t * out1_t).astype(jnp.bfloat16), wc,
                                  preferred_element_type=jnp.float32)
        out_scr[rows, :] = h_part
        out1_scr[rows, :] = out1_bf
        # true row max (includes input_dot) feeds the out2 column-softmax branch
        input_dot = jnp.sum(inp_t * iw, axis=-1, keepdims=True)          # (R, 1)
        rowmax_scr[rows, :] = att_max + input_dot

    # pass 2: softmax over rows of the per-row maxima -> out2 (1, D)
    rmax = rowmax_scr[...]                                               # (Li, 1)
    e2 = jnp.exp(rmax - jnp.max(rmax, axis=0, keepdims=True))            # (Li, 1)
    z2 = jnp.sum(e2, axis=0, keepdims=True)                              # (1, 1)
    # (kept as a VPU reduce: a transposed-LHS MXU dot risks unsupported lowering)
    num = jnp.sum(e2 * inp_ref[...], axis=0, keepdims=True)              # (1, D)
    out2 = num * pl.reciprocal(z2, approx=True)                          # (1, D)

    # finalize (row-tiled): add the (out2*out1) @ Wd block + bias, ReLU
    @pl.loop(0, n_tiles, unroll=unroll)
    def _(t):
        rows = pl.ds(pl.multiple_of(t * row_tile, row_tile), row_tile)
        o2o1 = (out1_scr[rows, :] * out2).astype(jnp.bfloat16)           # (R, D)
        h_t = (out_scr[rows, :]
               + jnp.dot(o2o1, wd, preferred_element_type=jnp.float32) + b)
        out_scr[rows, :] = jnp.maximum(h_t, 0.0)


def qcpair_kernel(q_att_ref, q_spec_ref, c_att_ref, c_spec_ref,
                  out_q_ref, out_c_ref,
                  qc_iw_ref, qc_mw_ref, qc_ds_ref, w1_ref, b1_ref,
                  sa_iw_ref, sa_mw_ref, sa_ds_ref, w2_ref, b2_ref,
                  se_w_ref, se_b_ref,
                  logits_ref,
                  h_scr, t_scr, out1_scr, rowmax_scr,
                  *, input_dim, row_tile):
    D = input_dim
    # real_mask = clamp(attention_mask - special_tokens_mask, min=0)
    q_mask = jnp.maximum(q_att_ref[...] - q_spec_ref[...], 0.0)          # (1, Lq)
    c_mask = jnp.maximum(c_att_ref[...] - c_spec_ref[...], 0.0)          # (1, Lc)

    def split4(w_ref):
        # four (D, D) bf16 blocks of the pre-transposed Linear(4D->D) weight
        # (static ref slices -> no copies, and the (Lc, 4D) concat is never built)
        return tuple(w_ref[pl.ds(k * D, D), :] for k in range(4))

    # stage 1: qc_att(output_c, output_q, q_real_mask) -> linear_1 + ReLU -> h_scr
    w1a, w1b, w1c, w1d = split4(w1_ref)
    _biatt_block(out_c_ref, out_q_ref, q_mask,
                 qc_iw_ref[...], qc_mw_ref[...], qc_ds_ref[...],
                 w1a, w1b, w1c, w1d, b1_ref[...],
                 h_scr, out1_scr, rowmax_scr, row_tile)

    # stage 2: self_att(h, h, c_real_mask) -> linear_2 + ReLU -> t_scr
    w2a, w2b, w2c, w2d = split4(w2_ref)
    _biatt_block(h_scr, h_scr, c_mask,
                 sa_iw_ref[...], sa_mw_ref[...], sa_ds_ref[...],
                 w2a, w2b, w2c, w2d, b2_ref[...],
                 t_scr, out1_scr, rowmax_scr, row_tile)

    out = h_scr[...] + t_scr[...]                                        # (Lc, D)
    # start/end projections: one tiny (2, D) x (Lc, D)^T matmul, lane-dense
    # (2, Lc) output slab (row 0 = start, row 1 = end).
    logits = lax.dot_general(se_w_ref[...], out, _CONTRACT_LAST,
                             preferred_element_type=jnp.float32) + se_b_ref[...]
    logits_ref[...] = jnp.where(c_mask > 0.0, logits, -jnp.inf)


def _vmem_budget_bytes(Lq, Lc, D, row_tile):
    """Heuristic scoped-VMEM budget (bytes) for one grid step."""
    f32, bf16 = 4, 2
    Lm = max(Lq, Lc)
    seq_in = 2 * (Lq + Lc) * D * f32                  # double-buffered out_q / out_c
    masks = 2 * 2 * (Lq + Lc) * f32
    weights = 2 * 4 * D * D * bf16 + 14 * D * f32     # single-buffered params
    scratch = 2 * Lc * D * f32 + Lc * D * bf16 + Lc * f32
    transients = (2 * Lc * D * bf16                   # mem_bf + mem_scaled (stage 2)
                  + 3 * row_tile * Lm * f32           # score / exp tiles
                  + 6 * row_tile * D * f32)           # per-tile operands / partials
    out = 2 * 2 * Lc * f32
    total = int(1.2 * (seq_in + masks + weights + scratch + transients + out))
    total += 4 << 20                                  # compiler scratch headroom
    # NOTE: cap assumes v5e/v6e (128 MiB physical); drop toward ~56 MiB on v7x.
    return int(min(max(total, 32 << 20), 96 << 20))


def qcpair_head(params, q_att, q_spec, c_att, c_spec, out_q, out_c,
                *, row_tile=None, vmem_limit_bytes=None):
    B, Lq, D = out_q.shape
    _, Lc, _ = out_c.shape
    if row_tile is None:
        # per-generation sizing: ~512 on v6e (128 MiB VMEM), 128-256 on v5e/v7x
        row_tile = min(256, Lc)
    assert Lc % row_tile == 0, "Lc must be a multiple of row_tile"
    if row_tile < Lc:
        # bf16 out1 scratch is (16,128)-tiled; keep dynamic row offsets aligned
        assert row_tile % 16 == 0, "row_tile must be a multiple of 16"
    if vmem_limit_bytes is None:
        vmem_limit_bytes = _vmem_budget_bytes(Lq, Lc, D, row_tile)

    # Big Linear(4D->D) weights enter the kernel as bf16; tiny vectors stay f32.
    w1 = params["w1"].astype(jnp.bfloat16)
    w2 = params["w2"].astype(jnp.bfloat16)
    # stack start/end projections into a single (2, D) weight and (2, 1) bias
    se_w = jnp.concatenate([params["sw"], params["ew"]], axis=0).astype(jnp.float32)
    se_b = jnp.concatenate([params["sb"], params["eb"]], axis=0).astype(jnp.float32)

    bmap = lambda b: (b, 0, 0)
    wmap = lambda b: (0, 0)
    mask_spec = lambda L: pl.BlockSpec((None, 1, L), bmap)
    seq_spec = lambda L: pl.BlockSpec((None, L, D), bmap)
    # batch-invariant blocks: single-buffered (constant index_map -> a second
    # pipeline buffer is pure VMEM waste)
    w_spec = lambda shp: pl.BlockSpec(shp, wmap, pipeline_mode=pl.Buffered(1))

    in_specs = [
        mask_spec(Lq), mask_spec(Lq), mask_spec(Lc), mask_spec(Lc),
        seq_spec(Lq), seq_spec(Lc),
        w_spec((1, D)), w_spec((1, D)), w_spec((1, D)),    # qc_att: iw, mw, dot_scale
        w_spec((4 * D, D)), w_spec((1, D)),                # linear_1: W^T (bf16), b
        w_spec((1, D)), w_spec((1, D)), w_spec((1, D)),    # self_att: iw, mw, dot_scale
        w_spec((4 * D, D)), w_spec((1, D)),                # linear_2: W^T (bf16), b
        w_spec((2, D)), w_spec((2, 1)),                    # start/end: W, b
    ]
    out_spec = pl.BlockSpec((None, 2, Lc), bmap)

    kernel = functools.partial(qcpair_kernel, input_dim=D, row_tile=row_tile)
    logits = pl.pallas_call(
        kernel,
        out_shape=jax.ShapeDtypeStruct((B, 2, Lc), jnp.float32),
        grid=(B,),
        in_specs=in_specs,
        out_specs=out_spec,
        scratch_shapes=[
            pltpu.VMEM((Lc, D), jnp.float32),    # h   (stage-1 output, stage-2 input)
            pltpu.VMEM((Lc, D), jnp.float32),    # t   (stage-2 output)
            pltpu.VMEM((Lc, D), jnp.bfloat16),   # out1 (per-stage, reused; MXU operand)
            pltpu.VMEM((Lc, 1), jnp.float32),    # per-row max (per-stage, reused)
        ],
        compiler_params=pltpu.CompilerParams(
            dimension_semantics=("parallel",),   # batch -> both TCs on v7x (keep B >= 2)
            vmem_limit_bytes=int(vmem_limit_bytes)),
    )(q_att, q_spec, c_att, c_spec, out_q, out_c,
      params["qc_iw"], params["qc_mw"], params["qc_ds"], w1, params["b1"],
      params["sa_iw"], params["sa_mw"], params["sa_ds"], w2, params["b2"],
      se_w, se_b)

    return logits[:, 0, :], logits[:, 1, :]


# ---------------------------------------------------------------------------
# Pure-JAX reference (mirrors the PyTorch forward; dropout = eval no-op).
# `mxu_dtype=bf16` rounds the big matmul operands the way the kernel does
# (bf16 MXU inputs, f32 accumulation) so the comparison tolerance is meaningful.
# ---------------------------------------------------------------------------
def reference(params, q_att, q_spec, c_att, c_spec, out_q, out_c,
              mxu_dtype=jnp.float32):
    cast = lambda x: x.astype(mxu_dtype)
    q_mask = jnp.maximum(q_att[:, 0, :] - q_spec[:, 0, :], 0.0)
    c_mask = jnp.maximum(c_att[:, 0, :] - c_spec[:, 0, :], 0.0)

    def biatt(inp, mem, mask, iw, mw, ds):
        input_dot = jnp.sum(inp * iw[0], axis=-1, keepdims=True)            # (B,L,1)
        memory_dot = jnp.sum(mem * mw[0], axis=-1)[:, None, :]              # (B,1,M)
        cross = jnp.einsum('bld,bmd->blm', cast(inp * ds), cast(mem),
                           preferred_element_type=jnp.float32)
        att = input_dot + memory_dot + cross - 1e30 * (1.0 - mask[:, None, :])
        att_max = jnp.max(att, axis=-1, keepdims=True)
        p = jnp.exp(att - att_max)
        o1 = jnp.einsum('blm,bmd->bld', cast(p), cast(mem),
                        preferred_element_type=jnp.float32)
        o1 = o1 / jnp.sum(p, axis=-1, keepdims=True)
        w2 = jax.nn.softmax(att_max[..., 0], axis=-1)[:, None, :]           # (B,1,L)
        o2 = jnp.einsum('bli,bid->bld', w2, inp)
        return jnp.concatenate([inp, o1, inp * o1, o2 * o1], axis=-1)

    def lin_relu(x, w, b):
        return jax.nn.relu(jnp.einsum('blk,kd->bld', cast(x), cast(w),
                                      preferred_element_type=jnp.float32) + b)

    h = biatt(out_c, out_q, q_mask, params["qc_iw"], params["qc_mw"], params["qc_ds"])
    h = lin_relu(h, params["w1"], params["b1"])
    t = biatt(h, h, c_mask, params["sa_iw"], params["sa_mw"], params["sa_ds"])
    t = lin_relu(t, params["w2"], params["b2"])
    out = h + t
    start = jnp.sum(out * params["sw"][0], axis=-1) + params["sb"][0, 0]
    end = jnp.sum(out * params["ew"][0], axis=-1) + params["eb"][0, 0]
    start = jnp.where(c_mask > 0, start, -jnp.inf)
    end = jnp.where(c_mask > 0, end, -jnp.inf)
    return start, end


if __name__ == "__main__":
    B, Lq, Lc, D = 2, 16, 32, 32
    key = jax.random.PRNGKey(0)
    ks = jax.random.split(key, 16)

    # deterministic synthetic parameters (shapes from the module's __init__;
    # Linear(4D->D) weights stored pre-transposed as (4D, D))
    params = {
        "qc_iw": jax.random.normal(ks[0], (1, D), jnp.float32) * 0.1,
        "qc_mw": jax.random.normal(ks[1], (1, D), jnp.float32) * 0.1,
        "qc_ds": jax.random.uniform(ks[2], (1, D), jnp.float32) / jnp.sqrt(jnp.float32(D)),
        "w1":    jax.random.normal(ks[3], (4 * D, D), jnp.float32) * 0.05,
        "b1":    jax.random.normal(ks[4], (1, D), jnp.float32) * 0.05,
        "sa_iw": jax.random.normal(ks[5], (1, D), jnp.float32) * 0.1,
        "sa_mw": jax.random.normal(ks[6], (1, D), jnp.float32) * 0.1,
        "sa_ds": jax.random.uniform(ks[7], (1, D), jnp.float32) / jnp.sqrt(jnp.float32(D)),
        "w2":    jax.random.normal(ks[8], (4 * D, D), jnp.float32) * 0.05,
        "b2":    jax.random.normal(ks[9], (1, D), jnp.float32) * 0.05,
        "sw":    jax.random.normal(ks[10], (1, D), jnp.float32) * 0.1,
        "sb":    jax.random.normal(ks[11], (1, 1), jnp.float32) * 0.1,
        "ew":    jax.random.normal(ks[12], (1, D), jnp.float32) * 0.1,
        "eb":    jax.random.normal(ks[13], (1, 1), jnp.float32) * 0.1,
    }

    def tok_masks(batch, L, lengths):
        # tokenizer-style: [CLS] tok ... tok [SEP] [PAD] ...
        att = np.zeros((batch, L), np.float32)
        spec = np.zeros((batch, L), np.float32)
        for b, n in enumerate(lengths):
            att[b, :n] = 1.0
            spec[b, 0] = 1.0
            spec[b, n - 1:] = 1.0
        return jnp.asarray(att.reshape(batch, 1, L)), jnp.asarray(spec.reshape(batch, 1, L))

    q_att, q_spec = tok_masks(B, Lq, [10, 16])
    c_att, c_spec = tok_masks(B, Lc, [32, 24])

    out_q = jax.random.normal(ks[14], (B, Lq, D), jnp.float32)
    out_c = jax.random.normal(ks[15], (B, Lc, D), jnp.float32)

    # row_tile=16 -> two row tiles per stage, exercising the in-kernel tiling loops
    start_logits, end_logits = qcpair_head(
        params, q_att, q_spec, c_att, c_spec, out_q, out_c, row_tile=16)
    jax.block_until_ready((start_logits, end_logits))

    ref_start, ref_end = reference(params, q_att, q_spec, c_att, c_spec,
                                   out_q, out_c, mxu_dtype=jnp.bfloat16)

    assert start_logits.shape == (B, Lc) and end_logits.shape == (B, Lc)
    # tolerance covers bf16 MXU operands + bf16 dot_scale/memory_dot + approx recip
    assert np.allclose(np.asarray(start_logits), np.asarray(ref_start),
                       rtol=3e-2, atol=3e-2)
    assert np.allclose(np.asarray(end_logits), np.asarray(ref_end),
                       rtol=3e-2, atol=3e-2)

    print("KERNEL_OK")
</pallas_src>

<mosaic_0001>
module attributes {stable_mosaic.version = 11 : i64} {
  func.func @qcpair_kernel(%arg0: i32, %arg1: memref<1x1x16xf32, #tpu.memory_space<vmem>>, %arg2: memref<1x1x16xf32, #tpu.memory_space<vmem>>, %arg3: memref<1x1x32xf32, #tpu.memory_space<vmem>>, %arg4: memref<1x1x32xf32, #tpu.memory_space<vmem>>, %arg5: memref<1x16x32xf32, #tpu.memory_space<vmem>>, %arg6: memref<1x32x32xf32, #tpu.memory_space<vmem>>, %arg7: memref<1x32xf32, #tpu.memory_space<vmem>>, %arg8: memref<1x32xf32, #tpu.memory_space<vmem>>, %arg9: memref<1x32xf32, #tpu.memory_space<vmem>>, %arg10: memref<128x32xbf16, #tpu.memory_space<vmem>>, %arg11: memref<1x32xf32, #tpu.memory_space<vmem>>, %arg12: memref<1x32xf32, #tpu.memory_space<vmem>>, %arg13: memref<1x32xf32, #tpu.memory_space<vmem>>, %arg14: memref<1x32xf32, #tpu.memory_space<vmem>>, %arg15: memref<128x32xbf16, #tpu.memory_space<vmem>>, %arg16: memref<1x32xf32, #tpu.memory_space<vmem>>, %arg17: memref<2x32xf32, #tpu.memory_space<vmem>>, %arg18: memref<2x1xf32, #tpu.memory_space<vmem>>, %arg19: memref<1x2x32xf32, #tpu.memory_space<vmem>>, %arg20: memref<32x32xf32, #tpu.memory_space<vmem>>, %arg21: memref<32x32xf32, #tpu.memory_space<vmem>>, %arg22: memref<32x32xbf16, #tpu.memory_space<vmem>>, %arg23: memref<32x1xf32, #tpu.memory_space<vmem>>) attributes {dimension_semantics = [#tpu.dimension_semantics<parallel>], iteration_bounds = array<i64: 2>, scalar_prefetch = 0 : i64, scratch_operands = 4 : i64, tpu.core_type = #tpu.core_type<tc>, window_params = [{transform_indices = @transform_0, window_bounds = array<i64: 1, 1, 16>}, {transform_indices = @transform_1, window_bounds = array<i64: 1, 1, 16>}, {transform_indices = @transform_2, window_bounds = array<i64: 1, 1, 32>}, {transform_indices = @transform_3, window_bounds = array<i64: 1, 1, 32>}, {transform_indices = @transform_4, window_bounds = array<i64: 1, 16, 32>}, {transform_indices = @transform_5, window_bounds = array<i64: 1, 32, 32>}, {pipeline_mode = #tpu.pipeline_mode<synchronous>, transform_indices = @transform_6, window_bounds = array<i64: 1, 32>}, {pipeline_mode = #tpu.pipeline_mode<synchronous>, transform_indices = @transform_7, window_bounds = array<i64: 1, 32>}, {pipeline_mode = #tpu.pipeline_mode<synchronous>, transform_indices = @transform_8, window_bounds = array<i64: 1, 32>}, {pipeline_mode = #tpu.pipeline_mode<synchronous>, transform_indices = @transform_9, window_bounds = array<i64: 128, 32>}, {pipeline_mode = #tpu.pipeline_mode<synchronous>, transform_indices = @transform_10, window_bounds = array<i64: 1, 32>}, {pipeline_mode = #tpu.pipeline_mode<synchronous>, transform_indices = @transform_11, window_bounds = array<i64: 1, 32>}, {pipeline_mode = #tpu.pipeline_mode<synchronous>, transform_indices = @transform_12, window_bounds = array<i64: 1, 32>}, {pipeline_mode = #tpu.pipeline_mode<synchronous>, transform_indices = @transform_13, window_bounds = array<i64: 1, 32>}, {pipeline_mode = #tpu.pipeline_mode<synchronous>, transform_indices = @transform_14, window_bounds = array<i64: 128, 32>}, {pipeline_mode = #tpu.pipeline_mode<synchronous>, transform_indices = @transform_15, window_bounds = array<i64: 1, 32>}, {pipeline_mode = #tpu.pipeline_mode<synchronous>, transform_indices = @transform_16, window_bounds = array<i64: 2, 32>}, {pipeline_mode = #tpu.pipeline_mode<synchronous>, transform_indices = @transform_17, window_bounds = array<i64: 2, 1>}, {transform_indices = @transform_18, window_bounds = array<i64: 1, 2, 32>}]} {
    %c0 = arith.constant 0 : index
    %c0_0 = arith.constant 0 : index
    %c0_1 = arith.constant 0 : index
    %0 = vector.load %arg1[%c0, %c0_0, %c0_1] : memref<1x1x16xf32, #tpu.memory_space<vmem>>, vector<1x1x16xf32>
    %1 = vector.shape_cast %0 : vector<1x1x16xf32> to vector<1x16xf32>
    %c0_2 = arith.constant 0 : index
    %c0_3 = arith.constant 0 : index
    %c0_4 = arith.constant 0 : index
    %2 = vector.load %arg2[%c0_2, %c0_3, %c0_4] : memref<1x1x16xf32, #tpu.memory_space<vmem>>, vector<1x1x16xf32>
    %3 = vector.shape_cast %2 : vector<1x1x16xf32> to vector<1x16xf32>
    %4 = arith.subf %1, %3 : vector<1x16xf32>
    %cst = arith.constant 0.000000e+00 : f32
    %5 = vector.broadcast %cst : f32 to vector<1x16xf32>
    %6 = arith.maximumf %4, %5 : vector<1x16xf32>
    %c0_5 = arith.constant 0 : index
    %c0_6 = arith.constant 0 : index
    %c0_7 = arith.constant 0 : index
    %7 = vector.load %arg3[%c0_5, %c0_6, %c0_7] : memref<1x1x32xf32, #tpu.memory_space<vmem>>, vector<1x1x32xf32>
    %8 = vector.shape_cast %7 : vector<1x1x32xf32> to vector<1x32xf32>
    %c0_8 = arith.constant 0 : index
    %c0_9 = arith.constant 0 : index
    %c0_10 = arith.constant 0 : index
    %9 = vector.load %arg4[%c0_8, %c0_9, %c0_10] : memref<1x1x32xf32, #tpu.memory_space<vmem>>, vector<1x1x32xf32>
    %10 = vector.shape_cast %9 : vector<1x1x32xf32> to vector<1x32xf32>
    %11 = arith.subf %8, %10 : vector<1x32xf32>
    %cst_11 = arith.constant 0.000000e+00 : f32
    %12 = vector.broadcast %cst_11 : f32 to vector<1x32xf32>
    %13 = arith.maximumf %11, %12 : vector<1x32xf32>
    %c0_12 = arith.constant 0 : index
    %c0_13 = arith.constant 0 : index
    %14 = vector.load %arg10[%c0_12, %c0_13] : memref<128x32xbf16, #tpu.memory_space<vmem>>, vector<32x32xbf16>
    %c32 = arith.constant 32 : index
    %c0_14 = arith.constant 0 : index
    %15 = vector.load %arg10[%c32, %c0_14] : memref<128x32xbf16, #tpu.memory_space<vmem>>, vector<32x32xbf16>
    %c64 = arith.constant 64 : index
    %c0_15 = arith.constant 0 : index
    %16 = vector.load %arg10[%c64, %c0_15] : memref<128x32xbf16, #tpu.memory_space<vmem>>, vector<32x32xbf16>
    %c96 = arith.constant 96 : index
    %c0_16 = arith.constant 0 : index
    %17 = vector.load %arg10[%c96, %c0_16] : memref<128x32xbf16, #tpu.memory_space<vmem>>, vector<32x32xbf16>
    %c0_17 = arith.constant 0 : index
    %c0_18 = arith.constant 0 : index
    %18 = vector.load %arg7[%c0_17, %c0_18] : memref<1x32xf32, #tpu.memory_space<vmem>>, vector<1x32xf32>
    %c0_19 = arith.constant 0 : index
    %c0_20 = arith.constant 0 : index
    %19 = vector.load %arg8[%c0_19, %c0_20] : memref<1x32xf32, #tpu.memory_space<vmem>>, vector<1x32xf32>
    %c0_21 = arith.constant 0 : index
    %c0_22 = arith.constant 0 : index
    %20 = vector.load %arg9[%c0_21, %c0_22] : memref<1x32xf32, #tpu.memory_space<vmem>>, vector<1x32xf32>
    %c0_23 = arith.constant 0 : index
    %c0_24 = arith.constant 0 : index
    %21 = vector.load %arg11[%c0_23, %c0_24] : memref<1x32xf32, #tpu.memory_space<vmem>>, vector<1x32xf32>
    %c0_25 = arith.constant 0 : index
    %c0_26 = arith.constant 0 : index
    %c0_27 = arith.constant 0 : index
    %22 = vector.load %arg5[%c0_25, %c0_26, %c0_27] : memref<1x16x32xf32, #tpu.memory_space<vmem>>, vector<1x16x32xf32>
    %23 = vector.shape_cast %22 : vector<1x16x32xf32> to vector<16x32xf32>
    %24 = arith.truncf %23 : vector<16x32xf32> to vector<16x32xbf16>
    %25 = arith.truncf %20 : vector<1x32xf32> to vector<1x32xbf16>
    %26 = vector.broadcast %25 : vector<1x32xbf16> to vector<16x32xbf16>
    %27 = arith.mulf %24, %26 : vector<16x32xbf16>
    %28 = arith.truncf %19 : vector<1x32xf32> to vector<1x32xbf16>
    %cst_28 = arith.constant dense<0.000000e+00> : vector<1x16xf32>
    %29 = tpu.matmul %28, %24, %cst_28 {dimension_numbers = #tpu.dot_dimension_numbers<[1], [1], [0], [0], [0, 0, 1, 0], [], []>} : vector<1x32xbf16>, vector<16x32xbf16>, vector<1x16xf32> -> vector<1x16xf32>
    %cst_29 = arith.constant 1.000000e+00 : f32
    %30 = vector.broadcast %cst_29 : f32 to vector<1x16xf32>
    %31 = arith.subf %30, %6 : vector<1x16xf32>
    %cst_30 = arith.constant 1.000000e+30 : f32
    %32 = vector.broadcast %cst_30 : f32 to vector<1x16xf32>
    %33 = arith.mulf %32, %31 : vector<1x16xf32>
    %34 = arith.subf %29, %33 : vector<1x16xf32>
    %c0_i32 = arith.constant 0 : i32
    %c1_i32 = arith.constant 1 : i32
    %35 = arith.muli %c0_i32, %c1_i32 : i32
    %c0_i32_31 = arith.constant 0 : i32
    %36 = arith.addi %c0_i32_31, %35 : i32
    %c16_i32 = arith.constant 16 : i32
    %37 = arith.muli %36, %c16_i32 : i32
    %38 = tpu.assume_multiple %37, 16 : i32
    %c0_32 = arith.constant 0 : index
    %39 = arith.index_cast %38 : i32 to index
    %c0_33 = arith.constant 0 : index
    %40 = vector.load %arg6[%c0_32, %39, %c0_33] : memref<1x32x32xf32, #tpu.memory_space<vmem>>, vector<1x16x32xf32>
    %41 = vector.shape_cast %40 : vector<1x16x32xf32> to vector<16x32xf32>
    %42 = arith.truncf %41 : vector<16x32xf32> to vector<16x32xbf16>
    %cst_34 = arith.constant dense<0.000000e+00> : vector<16x16xf32>
    %43 = tpu.matmul %42, %27, %cst_34 {dimension_numbers = #tpu.dot_dimension_numbers<[1], [1], [0], [0], [0, 0, 1, 0], [], []>} : vector<16x32xbf16>, vector<16x32xbf16>, vector<16x16xf32> -> vector<16x16xf32>
    %44 = vector.broadcast %34 : vector<1x16xf32> to vector<16x16xf32>
    %45 = arith.addf %43, %44 : vector<16x16xf32>
    %cst_35 = arith.constant dense<0xFF800000> : vector<16xf32>
    %46 = vector.multi_reduction <maximumf>, %45, %cst_35 [1] : vector<16x16xf32> to vector<16xf32>
    %47 = vector.shape_cast %46 : vector<16xf32> to vector<16x1xf32>
    %48 = vector.broadcast %47 : vector<16x1xf32> to vector<16x16xf32>
    %49 = arith.subf %45, %48 : vector<16x16xf32>
    %50 = math.exp %49 : vector<16x16xf32>
    %cst_36 = arith.constant dense<0.000000e+00> : vector<16xf32>
    %51 = vector.multi_reduction <add>, %50, %cst_36 [1] : vector<16x16xf32> to vector<16xf32>
    %52 = vector.shape_cast %51 : vector<16xf32> to vector<16x1xf32>
    %53 = arith.truncf %50 : vector<16x16xf32> to vector<16x16xbf16>
    %cst_37 = arith.constant dense<0.000000e+00> : vector<16x32xf32>
    %54 = tpu.matmul %53, %24, %cst_37 {dimension_numbers = #tpu.dot_dimension_numbers<[1], [0], [0], [1], [0, 0, 1, 1], [], []>} : vector<16x16xbf16>, vector<16x32xbf16>, vector<16x32xf32> -> vector<16x32xf32>
    %55 = tpu.reciprocal %52 {approx = true} : vector<16x1xf32> -> vector<16x1xf32>
    %56 = vector.broadcast %55 : vector<16x1xf32> to vector<16x32xf32>
    %57 = arith.mulf %54, %56 : vector<16x32xf32>
    %58 = arith.truncf %57 : vector<16x32xf32> to vector<16x32xbf16>
    %cst_38 = arith.constant dense<0.000000e+00> : vector<16x32xf32>
    %59 = tpu.matmul %42, %14, %cst_38 {dimension_numbers = #tpu.dot_dimension_numbers<[1], [0], [0], [1], [0, 0, 1, 1], [], []>} : vector<16x32xbf16>, vector<32x32xbf16>, vector<16x32xf32> -> vector<16x32xf32>
    %cst_39 = arith.constant dense<0.000000e+00> : vector<16x32xf32>
    %60 = tpu.matmul %58, %15, %cst_39 {dimension_numbers = #tpu.dot_dimension_numbers<[1], [0], [0], [1], [0, 0, 1, 1], [], []>} : vector<16x32xbf16>, vector<32x32xbf16>, vector<16x32xf32> -> vector<16x32xf32>
    %61 = arith.addf %59, %60 : vector<16x32xf32>
    %62 = arith.mulf %41, %57 : vector<16x32xf32>
    %63 = arith.truncf %62 : vector<16x32xf32> to vector<16x32xbf16>
    %cst_40 = arith.constant dense<0.000000e+00> : vector<16x32xf32>
    %64 = tpu.matmul %63, %16, %cst_40 {dimension_numbers = #tpu.dot_dimension_numbers<[1], [0], [0], [1], [0, 0, 1, 1], [], []>} : vector<16x32xbf16>, vector<32x32xbf16>, vector<16x32xf32> -> vector<16x32xf32>
    %65 = arith.addf %61, %64 : vector<16x32xf32>
    %66 = arith.index_cast %38 : i32 to index
    %c0_41 = arith.constant 0 : index
    %67 = vector.load %arg20[%66, %c0_41] : memref<32x32xf32, #tpu.memory_space<vmem>>, vector<16x32xf32>
    tpu.vector_store %arg20[%66, %c0_41], %65 {strides = array<i32>} : memref<32x32xf32, #tpu.memory_space<vmem>>, vector<16x32xf32>,
    %68 = arith.index_cast %38 : i32 to index
    %c0_42 = arith.constant 0 : index
    %69 = vector.load %arg22[%68, %c0_42] : memref<32x32xbf16, #tpu.memory_space<vmem>>, vector<16x32xbf16>
    tpu.vector_store %arg22[%68, %c0_42], %58 {strides = array<i32>} : memref<32x32xbf16, #tpu.memory_space<vmem>>, vector<16x32xbf16>,
    %70 = vector.broadcast %18 : vector<1x32xf32> to vector<16x32xf32>
    %71 = arith.mulf %41, %70 : vector<16x32xf32>
    %cst_43 = arith.constant dense<0.000000e+00> : vector<16xf32>
    %72 = vector.multi_reduction <add>, %71, %cst_43 [1] : vector<16x32xf32> to vector<16xf32>
    %73 = vector.shape_cast %72 : vector<16xf32> to vector<16x1xf32>
    %74 = arith.addf %47, %73 : vector<16x1xf32>
    %75 = arith.index_cast %38 : i32 to index
    %c0_44 = arith.constant 0 : index
    %76 = vector.load %arg23[%75, %c0_44] : memref<32x1xf32, #tpu.memory_space<vmem>>, vector<16x1xf32>
    tpu.vector_store %arg23[%75, %c0_44], %74 {strides = array<i32>} : memref<32x1xf32, #tpu.memory_space<vmem>>, vector<16x1xf32>,
    %c1_i32_45 = arith.constant 1 : i32
    %c1_i32_46 = arith.constant 1 : i32
    %77 = arith.muli %c1_i32_45, %c1_i32_46 : i32
    %c0_i32_47 = arith.constant 0 : i32
    %78 = arith.addi %c0_i32_47, %77 : i32
    %c16_i32_48 = arith.constant 16 : i32
    %79 = arith.muli %78, %c16_i32_48 : i32
    %80 = tpu.assume_multiple %79, 16 : i32
    %c0_49 = arith.constant 0 : index
    %81 = arith.index_cast %80 : i32 to index
    %c0_50 = arith.constant 0 : index
    %82 = vector.load %arg6[%c0_49, %81, %c0_50] : memref<1x32x32xf32, #tpu.memory_space<vmem>>, vector<1x16x32xf32>
    %83 = vector.shape_cast %82 : vector<1x16x32xf32> to vector<16x32xf32>
    %84 = arith.truncf %83 : vector<16x32xf32> to vector<16x32xbf16>
    %cst_51 = arith.constant dense<0.000000e+00> : vector<16x16xf32>
    %85 = tpu.matmul %84, %27, %cst_51 {dimension_numbers = #tpu.dot_dimension_numbers<[1], [1], [0], [0], [0, 0, 1, 0], [], []>} : vector<16x32xbf16>, vector<16x32xbf16>, vector<16x16xf32> -> vector<16x16xf32>
    %86 = vector.broadcast %34 : vector<1x16xf32> to vector<16x16xf32>
    %87 = arith.addf %85, %86 : vector<16x16xf32>
    %cst_52 = arith.constant dense<0xFF800000> : vector<16xf32>
    %88 = vector.multi_reduction <maximumf>, %87, %cst_52 [1] : vector<16x16xf32> to vector<16xf32>
    %89 = vector.shape_cast %88 : vector<16xf32> to vector<16x1xf32>
    %90 = vector.broadcast %89 : vector<16x1xf32> to vector<16x16xf32>
    %91 = arith.subf %87, %90 : vector<16x16xf32>
    %92 = math.exp %91 : vector<16x16xf32>
    %cst_53 = arith.constant dense<0.000000e+00> : vector<16xf32>
    %93 = vector.multi_reduction <add>, %92, %cst_53 [1] : vector<16x16xf32> to vector<16xf32>
    %94 = vector.shape_cast %93 : vector<16xf32> to vector<16x1xf32>
    %95 = arith.truncf %92 : vector<16x16xf32> to vector<16x16xbf16>
    %cst_54 = arith.constant dense<0.000000e+00> : vector<16x32xf32>
    %96 = tpu.matmul %95, %24, %cst_54 {dimension_numbers = #tpu.dot_dimension_numbers<[1], [0], [0], [1], [0, 0, 1, 1], [], []>} : vector<16x16xbf16>, vector<16x32xbf16>, vector<16x32xf32> -> vector<16x32xf32>
    %97 = tpu.reciprocal %94 {approx = true} : vector<16x1xf32> -> vector<16x1xf32>
    %98 = vector.broadcast %97 : vector<16x1xf32> to vector<16x32xf32>
    %99 = arith.mulf %96, %98 : vector<16x32xf32>
    %100 = arith.truncf %99 : vector<16x32xf32> to vector<16x32xbf16>
    %cst_55 = arith.constant dense<0.000000e+00> : vector<16x32xf32>
    %101 = tpu.matmul %84, %14, %cst_55 {dimension_numbers = #tpu.dot_dimension_numbers<[1], [0], [0], [1], [0, 0, 1, 1], [], []>} : vector<16x32xbf16>, vector<32x32xbf16>, vector<16x32xf32> -> vector<16x32xf32>
    %cst_56 = arith.constant dense<0.000000e+00> : vector<16x32xf32>
    %102 = tpu.matmul %100, %15, %cst_56 {dimension_numbers = #tpu.dot_dimension_numbers<[1], [0], [0], [1], [0, 0, 1, 1], [], []>} : vector<16x32xbf16>, vector<32x32xbf16>, vector<16x32xf32> -> vector<16x32xf32>
    %103 = arith.addf %101, %102 : vector<16x32xf32>
    %104 = arith.mulf %83, %99 : vector<16x32xf32>
    %105 = arith.truncf %104 : vector<16x32xf32> to vector<16x32xbf16>
    %cst_57 = arith.constant dense<0.000000e+00> : vector<16x32xf32>
    %106 = tpu.matmul %105, %16, %cst_57 {dimension_numbers = #tpu.dot_dimension_numbers<[1], [0], [0], [1], [0, 0, 1, 1], [], []>} : vector<16x32xbf16>, vector<32x32xbf16>, vector<16x32xf32> -> vector<16x32xf32>
    %107 = arith.addf %103, %106 : vector<16x32xf32>
    %108 = arith.index_cast %80 : i32 to index
    %c0_58 = arith.constant 0 : index
    %109 = vector.load %arg20[%108, %c0_58] : memref<32x32xf32, #tpu.memory_space<vmem>>, vector<16x32xf32>
    tpu.vector_store %arg20[%108, %c0_58], %107 {strides = array<i32>} : memref<32x32xf32, #tpu.memory_space<vmem>>, vector<16x32xf32>,
    %110 = arith.index_cast %80 : i32 to index
    %c0_59 = arith.constant 0 : index
    %111 = vector.load %arg22[%110, %c0_59] : memref<32x32xbf16, #tpu.memory_space<vmem>>, vector<16x32xbf16>
    tpu.vector_store %arg22[%110, %c0_59], %100 {strides = array<i32>} : memref<32x32xbf16, #tpu.memory_space<vmem>>, vector<16x32xbf16>,
    %112 = vector.broadcast %18 : vector<1x32xf32> to vector<16x32xf32>
    %113 = arith.mulf %83, %112 : vector<16x32xf32>
    %cst_60 = arith.constant dense<0.000000e+00> : vector<16xf32>
    %114 = vector.multi_reduction <add>, %113, %cst_60 [1] : vector<16x32xf32> to vector<16xf32>
    %115 = vector.shape_cast %114 : vector<16xf32> to vector<16x1xf32>
    %116 = arith.addf %89, %115 : vector<16x1xf32>
    %117 = arith.index_cast %80 : i32 to index
    %c0_61 = arith.constant 0 : index
    %118 = vector.load %arg23[%117, %c0_61] : memref<32x1xf32, #tpu.memory_space<vmem>>, vector<16x1xf32>
    tpu.vector_store %arg23[%117, %c0_61], %116 {strides = array<i32>} : memref<32x1xf32, #tpu.memory_space<vmem>>, vector<16x1xf32>,
    %c2_i32 = arith.constant 2 : i32
    %c0_62 = arith.constant 0 : index
    %c0_63 = arith.constant 0 : index
    %119 = vector.load %arg23[%c0_62, %c0_63] : memref<32x1xf32, #tpu.memory_space<vmem>>, vector<32x1xf32>
    %cst_64 = arith.constant dense<0xFF800000> : vector<1xf32>
    %120 = vector.multi_reduction <maximumf>, %119, %cst_64 [0] : vector<32x1xf32> to vector<1xf32>
    %121 = vector.shape_cast %120 : vector<1xf32> to vector<1x1xf32>
    %122 = vector.broadcast %121 : vector<1x1xf32> to vector<32x1xf32>
    %123 = arith.subf %119, %122 : vector<32x1xf32>
    %124 = math.exp %123 : vector<32x1xf32>
    %cst_65 = arith.constant dense<0.000000e+00> : vector<1xf32>
    %125 = vector.multi_reduction <add>, %124, %cst_65 [0] : vector<32x1xf32> to vector<1xf32>
    %126 = vector.shape_cast %125 : vector<1xf32> to vector<1x1xf32>
    %c0_66 = arith.constant 0 : index
    %c0_67 = arith.constant 0 : index
    %c0_68 = arith.constant 0 : index
    %127 = vector.load %arg6[%c0_66, %c0_67, %c0_68] : memref<1x32x32xf32, #tpu.memory_space<vmem>>, vector<1x32x32xf32>
    %128 = vector.shape_cast %127 : vector<1x32x32xf32> to vector<32x32xf32>
    %129 = vector.broadcast %124 : vector<32x1xf32> to vector<32x32xf32>
    %130 = arith.mulf %129, %128 : vector<32x32xf32>
    %cst_69 = arith.constant dense<0.000000e+00> : vector<32xf32>
    %131 = vector.multi_reduction <add>, %130, %cst_69 [0] : vector<32x32xf32> to vector<32xf32>
    %132 = vector.shape_cast %131 : vector<32xf32> to vector<1x32xf32>
    %133 = tpu.reciprocal %126 {approx = true} : vector<1x1xf32> -> vector<1x1xf32>
    %134 = vector.broadcast %133 : vector<1x1xf32> to vector<1x32xf32>
    %135 = arith.mulf %132, %134 : vector<1x32xf32>
    %c0_i32_70 = arith.constant 0 : i32
    %c1_i32_71 = arith.constant 1 : i32
    %136 = arith.muli %c0_i32_70, %c1_i32_71 : i32
    %c0_i32_72 = arith.constant 0 : i32
    %137 = arith.addi %c0_i32_72, %136 : i32
    %c16_i32_73 = arith.constant 16 : i32
    %138 = arith.muli %137, %c16_i32_73 : i32
    %139 = tpu.assume_multiple %138, 16 : i32
    %140 = arith.index_cast %139 : i32 to index
    %c0_74 = arith.constant 0 : index
    %141 = vector.load %arg22[%140, %c0_74] : memref<32x32xbf16, #tpu.memory_space<vmem>>, vector<16x32xbf16>
    %142 = arith.extf %141 : vector<16x32xbf16> to vector<16x32xf32>
    %143 = vector.broadcast %135 : vector<1x32xf32> to vector<16x32xf32>
    %144 = arith.mulf %142, %143 : vector<16x32xf32>
    %145 = arith.truncf %144 : vector<16x32xf32> to vector<16x32xbf16>
    %146 = arith.index_cast %139 : i32 to index
    %c0_75 = arith.constant 0 : index
    %147 = vector.load %arg20[%146, %c0_75] : memref<32x32xf32, #tpu.memory_space<vmem>>, vector<16x32xf32>
    %cst_76 = arith.constant dense<0.000000e+00> : vector<16x32xf32>
    %148 = tpu.matmul %145, %17, %cst_76 {dimension_numbers = #tpu.dot_dimension_numbers<[1], [0], [0], [1], [0, 0, 1, 1], [], []>} : vector<16x32xbf16>, vector<32x32xbf16>, vector<16x32xf32> -> vector<16x32xf32>
    %149 = arith.addf %147, %148 : vector<16x32xf32>
    %150 = vector.broadcast %21 : vector<1x32xf32> to vector<16x32xf32>
    %151 = arith.addf %149, %150 : vector<16x32xf32>
    %cst_77 = arith.constant 0.000000e+00 : f32
    %152 = vector.broadcast %cst_77 : f32 to vector<16x32xf32>
    %153 = arith.maximumf %151, %152 : vector<16x32xf32>
    %154 = arith.index_cast %139 : i32 to index
    %c0_78 = arith.constant 0 : index
    %155 = vector.load %arg20[%154, %c0_78] : memref<32x32xf32, #tpu.memory_space<vmem>>, vector<16x32xf32>
    tpu.vector_store %arg20[%154, %c0_78], %153 {strides = array<i32>} : memref<32x32xf32, #tpu.memory_space<vmem>>, vector<16x32xf32>,
    %c1_i32_79 = arith.constant 1 : i32
    %c1_i32_80 = arith.constant 1 : i32
    %156 = arith.muli %c1_i32_79, %c1_i32_80 : i32
    %c0_i32_81 = arith.constant 0 : i32
    %157 = arith.addi %c0_i32_81, %156 : i32
    %c16_i32_82 = arith.constant 16 : i32
    %158 = arith.muli %157, %c16_i32_82 : i32
    %159 = tpu.assume_multiple %158, 16 : i32
    %160 = arith.index_cast %159 : i32 to index
    %c0_83 = arith.constant 0 : index
    %161 = vector.load %arg22[%160, %c0_83] : memref<32x32xbf16, #tpu.memory_space<vmem>>, vector<16x32xbf16>
    %162 = arith.extf %161 : vector<16x32xbf16> to vector<16x32xf32>
    %163 = vector.broadcast %135 : vector<1x32xf32> to vector<16x32xf32>
    %164 = arith.mulf %162, %163 : vector<16x32xf32>
    %165 = arith.truncf %164 : vector<16x32xf32> to vector<16x32xbf16>
    %166 = arith.index_cast %159 : i32 to index
    %c0_84 = arith.constant 0 : index
    %167 = vector.load %arg20[%166, %c0_84] : memref<32x32xf32, #tpu.memory_space<vmem>>, vector<16x32xf32>
    %cst_85 = arith.constant dense<0.000000e+00> : vector<16x32xf32>
    %168 = tpu.matmul %165, %17, %cst_85 {dimension_numbers = #tpu.dot_dimension_numbers<[1], [0], [0], [1], [0, 0, 1, 1], [], []>} : vector<16x32xbf16>, vector<32x32xbf16>, vector<16x32xf32> -> vector<16x32xf32>
    %169 = arith.addf %167, %168 : vector<16x32xf32>
    %170 = vector.broadcast %21 : vector<1x32xf32> to vector<16x32xf32>
    %171 = arith.addf %169, %170 : vector<16x32xf32>
    %cst_86 = arith.constant 0.000000e+00 : f32
    %172 = vector.broadcast %cst_86 : f32 to vector<16x32xf32>
    %173 = arith.maximumf %171, %172 : vector<16x32xf32>
    %174 = arith.index_cast %159 : i32 to index
    %c0_87 = arith.constant 0 : index
    %175 = vector.load %arg20[%174, %c0_87] : memref<32x32xf32, #tpu.memory_space<vmem>>, vector<16x32xf32>
    tpu.vector_store %arg20[%174, %c0_87], %173 {strides = array<i32>} : memref<32x32xf32, #tpu.memory_space<vmem>>, vector<16x32xf32>,
    %c2_i32_88 = arith.constant 2 : i32
    %c0_89 = arith.constant 0 : index
    %c0_90 = arith.constant 0 : index
    %176 = vector.load %arg15[%c0_89, %c0_90] : memref<128x32xbf16, #tpu.memory_space<vmem>>, vector<32x32xbf16>
    %c32_91 = arith.constant 32 : index
    %c0_92 = arith.constant 0 : index
    %177 = vector.load %arg15[%c32_91, %c0_92] : memref<128x32xbf16, #tpu.memory_space<vmem>>, vector<32x32xbf16>
    %c64_93 = arith.constant 64 : index
    %c0_94 = arith.constant 0 : index
    %178 = vector.load %arg15[%c64_93, %c0_94] : memref<128x32xbf16, #tpu.memory_space<vmem>>, vector<32x32xbf16>
    %c96_95 = arith.constant 96 : index
    %c0_96 = arith.constant 0 : index
    %179 = vector.load %arg15[%c96_95, %c0_96] : memref<128x32xbf16, #tpu.memory_space<vmem>>, vector<32x32xbf16>
    %c0_97 = arith.constant 0 : index
    %c0_98 = arith.constant 0 : index
    %180 = vector.load %arg12[%c0_97, %c0_98] : memref<1x32xf32, #tpu.memory_space<vmem>>, vector<1x32xf32>
    %c0_99 = arith.constant 0 : index
    %c0_100 = arith.constant 0 : index
    %181 = vector.load %arg13[%c0_99, %c0_100] : memref<1x32xf32, #tpu.memory_space<vmem>>, vector<1x32xf32>
    %c0_101 = arith.constant 0 : index
    %c0_102 = arith.constant 0 : index
    %182 = vector.load %arg14[%c0_101, %c0_102] : memref<1x32xf32, #tpu.memory_space<vmem>>, vector<1x32xf32>
    %c0_103 = arith.constant 0 : index
    %c0_104 = arith.constant 0 : index
    %183 = vector.load %arg16[%c0_103, %c0_104] : memref<1x32xf32, #tpu.memory_space<vmem>>, vector<1x32xf32>
    %c0_105 = arith.constant 0 : index
    %c0_106 = arith.constant 0 : index
    %184 = vector.load %arg20[%c0_105, %c0_106] : memref<32x32xf32, #tpu.memory_space<vmem>>, vector<32x32xf32>
    %185 = arith.truncf %184 : vector<32x32xf32> to vector<32x32xbf16>
    %186 = arith.truncf %182 : vector<1x32xf32> to vector<1x32xbf16>
    %187 = vector.broadcast %186 : vector<1x32xbf16> to vector<32x32xbf16>
    %188 = arith.mulf %185, %187 : vector<32x32xbf16>
    %189 = arith.truncf %181 : vector<1x32xf32> to vector<1x32xbf16>
    %cst_107 = arith.constant dense<0.000000e+00> : vector<1x32xf32>
    %190 = tpu.matmul %189, %185, %cst_107 {dimension_numbers = #tpu.dot_dimension_numbers<[1], [1], [0], [0], [0, 0, 1, 0], [], []>} : vector<1x32xbf16>, vector<32x32xbf16>, vector<1x32xf32> -> vector<1x32xf32>
    %cst_108 = arith.constant 1.000000e+00 : f32
    %191 = vector.broadcast %cst_108 : f32 to vector<1x32xf32>
    %192 = arith.subf %191, %13 : vector<1x32xf32>
    %cst_109 = arith.constant 1.000000e+30 : f32
    %193 = vector.broadcast %cst_109 : f32 to vector<1x32xf32>
    %194 = arith.mulf %193, %192 : vector<1x32xf32>
    %195 = arith.subf %190, %194 : vector<1x32xf32>
    %c0_i32_110 = arith.constant 0 : i32
    %c1_i32_111 = arith.constant 1 : i32
    %196 = arith.muli %c0_i32_110, %c1_i32_111 : i32
    %c0_i32_112 = arith.constant 0 : i32
    %197 = arith.addi %c0_i32_112, %196 : i32
    %c16_i32_113 = arith.constant 16 : i32
    %198 = arith.muli %197, %c16_i32_113 : i32
    %199 = tpu.assume_multiple %198, 16 : i32
    %200 = arith.index_cast %199 : i32 to index
    %c0_114 = arith.constant 0 : index
    %201 = vector.load %arg20[%200, %c0_114] : memref<32x32xf32, #tpu.memory_space<vmem>>, vector<16x32xf32>
    %202 = arith.truncf %201 : vector<16x32xf32> to vector<16x32xbf16>
    %cst_115 = arith.constant dense<0.000000e+00> : vector<16x32xf32>
    %203 = tpu.matmul %202, %188, %cst_115 {dimension_numbers = #tpu.dot_dimension_numbers<[1], [1], [0], [0], [0, 0, 1, 0], [], []>} : vector<16x32xbf16>, vector<32x32xbf16>, vector<16x32xf32> -> vector<16x32xf32>
    %204 = vector.broadcast %195 : vector<1x32xf32> to vector<16x32xf32>
    %205 = arith.addf %203, %204 : vector<16x32xf32>
    %cst_116 = arith.constant dense<0xFF800000> : vector<16xf32>
    %206 = vector.multi_reduction <maximumf>, %205, %cst_116 [1] : vector<16x32xf32> to vector<16xf32>
    %207 = vector.shape_cast %206 : vector<16xf32> to vector<16x1xf32>
    %208 = vector.broadcast %207 : vector<16x1xf32> to vector<16x32xf32>
    %209 = arith.subf %205, %208 : vector<16x32xf32>
    %210 = math.exp %209 : vector<16x32xf32>
    %cst_117 = arith.constant dense<0.000000e+00> : vector<16xf32>
    %211 = vector.multi_reduction <add>, %210, %cst_117 [1] : vector<16x32xf32> to vector<16xf32>
    %212 = vector.shape_cast %211 : vector<16xf32> to vector<16x1xf32>
    %213 = arith.truncf %210 : vector<16x32xf32> to vector<16x32xbf16>
    %cst_118 = arith.constant dense<0.000000e+00> : vector<16x32xf32>
    %214 = tpu.matmul %213, %185, %cst_118 {dimension_numbers = #tpu.dot_dimension_numbers<[1], [0], [0], [1], [0, 0, 1, 1], [], []>} : vector<16x32xbf16>, vector<32x32xbf16>, vector<16x32xf32> -> vector<16x32xf32>
    %215 = tpu.reciprocal %212 {approx = true} : vector<16x1xf32> -> vector<16x1xf32>
    %216 = vector.broadcast %215 : vector<16x1xf32> to vector<16x32xf32>
    %217 = arith.mulf %214, %216 : vector<16x32xf32>
    %218 = arith.truncf %217 : vector<16x32xf32> to vector<16x32xbf16>
    %cst_119 = arith.constant dense<0.000000e+00> : vector<16x32xf32>
    %219 = tpu.matmul %202, %176, %cst_119 {dimension_numbers = #tpu.dot_dimension_numbers<[1], [0], [0], [1], [0, 0, 1, 1], [], []>} : vector<16x32xbf16>, vector<32x32xbf16>, vector<16x32xf32> -> vector<16x32xf32>
    %cst_120 = arith.constant dense<0.000000e+00> : vector<16x32xf32>
    %220 = tpu.matmul %218, %177, %cst_120 {dimension_numbers = #tpu.dot_dimension_numbers<[1], [0], [0], [1], [0, 0, 1, 1], [], []>} : vector<16x32xbf16>, vector<32x32xbf16>, vector<16x32xf32> -> vector<16x32xf32>
    %221 = arith.addf %219, %220 : vector<16x32xf32>
    %222 = arith.mulf %201, %217 : vector<16x32xf32>
    %223 = arith.truncf %222 : vector<16x32xf32> to vector<16x32xbf16>
    %cst_121 = arith.constant dense<0.000000e+00> : vector<16x32xf32>
    %224 = tpu.matmul %223, %178, %cst_121 {dimension_numbers = #tpu.dot_dimension_numbers<[1], [0], [0], [1], [0, 0, 1, 1], [], []>} : vector<16x32xbf16>, vector<32x32xbf16>, vector<16x32xf32> -> vector<16x32xf32>
    %225 = arith.addf %221, %224 : vector<16x32xf32>
    %226 = arith.index_cast %199 : i32 to index
    %c0_122 = arith.constant 0 : index
    %227 = vector.load %arg21[%226, %c0_122] : memref<32x32xf32, #tpu.memory_space<vmem>>, vector<16x32xf32>
    tpu.vector_store %arg21[%226, %c0_122], %225 {strides = array<i32>} : memref<32x32xf32, #tpu.memory_space<vmem>>, vector<16x32xf32>,
    %228 = arith.index_cast %199 : i32 to index
    %c0_123 = arith.constant 0 : index
    %229 = vector.load %arg22[%228, %c0_123] : memref<32x32xbf16, #tpu.memory_space<vmem>>, vector<16x32xbf16>
    tpu.vector_store %arg22[%228, %c0_123], %218 {strides = array<i32>} : memref<32x32xbf16, #tpu.memory_space<vmem>>, vector<16x32xbf16>,
    %230 = vector.broadcast %180 : vector<1x32xf32> to vector<16x32xf32>
    %231 = arith.mulf %201, %230 : vector<16x32xf32>
    %cst_124 = arith.constant dense<0.000000e+00> : vector<16xf32>
    %232 = vector.multi_reduction <add>, %231, %cst_124 [1] : vector<16x32xf32> to vector<16xf32>
    %233 = vector.shape_cast %232 : vector<16xf32> to vector<16x1xf32>
    %234 = arith.addf %207, %233 : vector<16x1xf32>
    %235 = arith.index_cast %199 : i32 to index
    %c0_125 = arith.constant 0 : index
    %236 = vector.load %arg23[%235, %c0_125] : memref<32x1xf32, #tpu.memory_space<vmem>>, vector<16x1xf32>
    tpu.vector_store %arg23[%235, %c0_125], %234 {strides = array<i32>} : memref<32x1xf32, #tpu.memory_space<vmem>>, vector<16x1xf32>,
    %c1_i32_126 = arith.constant 1 : i32
    %c1_i32_127 = arith.constant 1 : i32
    %237 = arith.muli %c1_i32_126, %c1_i32_127 : i32
    %c0_i32_128 = arith.constant 0 : i32
    %238 = arith.addi %c0_i32_128, %237 : i32
    %c16_i32_129 = arith.constant 16 : i32
    %239 = arith.muli %238, %c16_i32_129 : i32
    %240 = tpu.assume_multiple %239, 16 : i32
    %241 = arith.index_cast %240 : i32 to index
    %c0_130 = arith.constant 0 : index
    %242 = vector.load %arg20[%241, %c0_130] : memref<32x32xf32, #tpu.memory_space<vmem>>, vector<16x32xf32>
    %243 = arith.truncf %242 : vector<16x32xf32> to vector<16x32xbf16>
    %cst_131 = arith.constant dense<0.000000e+00> : vector<16x32xf32>
    %244 = tpu.matmul %243, %188, %cst_131 {dimension_numbers = #tpu.dot_dimension_numbers<[1], [1], [0], [0], [0, 0, 1, 0], [], []>} : vector<16x32xbf16>, vector<32x32xbf16>, vector<16x32xf32> -> vector<16x32xf32>
    %245 = vector.broadcast %195 : vector<1x32xf32> to vector<16x32xf32>
    %246 = arith.addf %244, %245 : vector<16x32xf32>
    %cst_132 = arith.constant dense<0xFF800000> : vector<16xf32>
    %247 = vector.multi_reduction <maximumf>, %246, %cst_132 [1] : vector<16x32xf32> to vector<16xf32>
    %248 = vector.shape_cast %247 : vector<16xf32> to vector<16x1xf32>
    %249 = vector.broadcast %248 : vector<16x1xf32> to vector<16x32xf32>
    %250 = arith.subf %246, %249 : vector<16x32xf32>
    %251 = math.exp %250 : vector<16x32xf32>
    %cst_133 = arith.constant dense<0.000000e+00> : vector<16xf32>
    %252 = vector.multi_reduction <add>, %251, %cst_133 [1] : vector<16x32xf32> to vector<16xf32>
    %253 = vector.shape_cast %252 : vector<16xf32> to vector<16x1xf32>
    %254 = arith.truncf %251 : vector<16x32xf32> to vector<16x32xbf16>
    %cst_134 = arith.constant dense<0.000000e+00> : vector<16x32xf32>
    %255 = tpu.matmul %254, %185, %cst_134 {dimension_numbers = #tpu.dot_dimension_numbers<[1], [0], [0], [1], [0, 0, 1, 1], [], []>} : vector<16x32xbf16>, vector<32x32xbf16>, vector<16x32xf32> -> vector<16x32xf32>
    %256 = tpu.reciprocal %253 {approx = true} : vector<16x1xf32> -> vector<16x1xf32>
    %257 = vector.broadcast %256 : vector<16x1xf32> to vector<16x32xf32>
    %258 = arith.mulf %255, %257 : vector<16x32xf32>
    %259 = arith.truncf %258 : vector<16x32xf32> to vector<16x32xbf16>
    %cst_135 = arith.constant dense<0.000000e+00> : vector<16x32xf32>
    %260 = tpu.matmul %243, %176, %cst_135 {dimension_numbers = #tpu.dot_dimension_numbers<[1], [0], [0], [1], [0, 0, 1, 1], [], []>} : vector<16x32xbf16>, vector<32x32xbf16>, vector<16x32xf32> -> vector<16x32xf32>
    %cst_136 = arith.constant dense<0.000000e+00> : vector<16x32xf32>
    %261 = tpu.matmul %259, %177, %cst_136 {dimension_numbers = #tpu.dot_dimension_numbers<[1], [0], [0], [1], [0, 0, 1, 1], [], []>} : vector<16x32xbf16>, vector<32x32xbf16>, vector<16x32xf32> -> vector<16x32xf32>
    %262 = arith.addf %260, %261 : vector<16x32xf32>
    %263 = arith.mulf %242, %258 : vector<16x32xf32>
    %264 = arith.truncf %263 : vector<16x32xf32> to vector<16x32xbf16>
    %cst_137 = arith.constant dense<0.000000e+00> : vector<16x32xf32>
    %265 = tpu.matmul %264, %178, %cst_137 {dimension_numbers = #tpu.dot_dimension_numbers<[1], [0], [0], [1], [0, 0, 1, 1], [], []>} : vector<16x32xbf16>, vector<32x32xbf16>, vector<16x32xf32> -> vector<16x32xf32>
    %266 = arith.addf %262, %265 : vector<16x32xf32>
    %267 = arith.index_cast %240 : i32 to index
    %c0_138 = arith.constant 0 : index
    %268 = vector.load %arg21[%267, %c0_138] : memref<32x32xf32, #tpu.memory_space<vmem>>, vector<16x32xf32>
    tpu.vector_store %arg21[%267, %c0_138], %266 {strides = array<i32>} : memref<32x32xf32, #tpu.memory_space<vmem>>, vector<16x32xf32>,
    %269 = arith.index_cast %240 : i32 to index
    %c0_139 = arith.constant 0 : index
    %270 = vector.load %arg22[%269, %c0_139] : memref<32x32xbf16, #tpu.memory_space<vmem>>, vector<16x32xbf16>
    tpu.vector_store %arg22[%269, %c0_139], %259 {strides = array<i32>} : memref<32x32xbf16, #tpu.memory_space<vmem>>, vector<16x32xbf16>,
    %271 = vector.broadcast %180 : vector<1x32xf32> to vector<16x32xf32>
    %272 = arith.mulf %242, %271 : vector<16x32xf32>
    %cst_140 = arith.constant dense<0.000000e+00> : vector<16xf32>
    %273 = vector.multi_reduction <add>, %272, %cst_140 [1] : vector<16x32xf32> to vector<16xf32>
    %274 = vector.shape_cast %273 : vector<16xf32> to vector<16x1xf32>
    %275 = arith.addf %248, %274 : vector<16x1xf32>
    %276 = arith.index_cast %240 : i32 to index
    %c0_141 = arith.constant 0 : index
    %277 = vector.load %arg23[%276, %c0_141] : memref<32x1xf32, #tpu.memory_space<vmem>>, vector<16x1xf32>
    tpu.vector_store %arg23[%276, %c0_141], %275 {strides = array<i32>} : memref<32x1xf32, #tpu.memory_space<vmem>>, vector<16x1xf32>,
    %c2_i32_142 = arith.constant 2 : i32
    %c0_143 = arith.constant 0 : index
    %c0_144 = arith.constant 0 : index
    %278 = vector.load %arg23[%c0_143, %c0_144] : memref<32x1xf32, #tpu.memory_space<vmem>>, vector<32x1xf32>
    %cst_145 = arith.constant dense<0xFF800000> : vector<1xf32>
    %279 = vector.multi_reduction <maximumf>, %278, %cst_145 [0] : vector<32x1xf32> to vector<1xf32>
    %280 = vector.shape_cast %279 : vector<1xf32> to vector<1x1xf32>
    %281 = vector.broadcast %280 : vector<1x1xf32> to vector<32x1xf32>
    %282 = arith.subf %278, %281 : vector<32x1xf32>
    %283 = math.exp %282 : vector<32x1xf32>
    %cst_146 = arith.constant dense<0.000000e+00> : vector<1xf32>
    %284 = vector.multi_reduction <add>, %283, %cst_146 [0] : vector<32x1xf32> to vector<1xf32>
    %285 = vector.shape_cast %284 : vector<1xf32> to vector<1x1xf32>
    %c0_147 = arith.constant 0 : index
    %c0_148 = arith.constant 0 : index
    %286 = vector.load %arg20[%c0_147, %c0_148] : memref<32x32xf32, #tpu.memory_space<vmem>>, vector<32x32xf32>
    %287 = vector.broadcast %283 : vector<32x1xf32> to vector<32x32xf32>
    %288 = arith.mulf %287, %286 : vector<32x32xf32>
    %cst_149 = arith.constant dense<0.000000e+00> : vector<32xf32>
    %289 = vector.multi_reduction <add>, %288, %cst_149 [0] : vector<32x32xf32> to vector<32xf32>
    %290 = vector.shape_cast %289 : vector<32xf32> to vector<1x32xf32>
    %291 = tpu.reciprocal %285 {approx = true} : vector<1x1xf32> -> vector<1x1xf32>
    %292 = vector.broadcast %291 : vector<1x1xf32> to vector<1x32xf32>
    %293 = arith.mulf %290, %292 : vector<1x32xf32>
    %c0_i32_150 = arith.constant 0 : i32
    %c1_i32_151 = arith.constant 1 : i32
    %294 = arith.muli %c0_i32_150, %c1_i32_151 : i32
    %c0_i32_152 = arith.constant 0 : i32
    %295 = arith.addi %c0_i32_152, %294 : i32
    %c16_i32_153 = arith.constant 16 : i32
    %296 = arith.muli %295, %c16_i32_153 : i32
    %297 = tpu.assume_multiple %296, 16 : i32
    %298 = arith.index_cast %297 : i32 to index
    %c0_154 = arith.constant 0 : index
    %299 = vector.load %arg22[%298, %c0_154] : memref<32x32xbf16, #tpu.memory_space<vmem>>, vector<16x32xbf16>
    %300 = arith.extf %299 : vector<16x32xbf16> to vector<16x32xf32>
    %301 = vector.broadcast %293 : vector<1x32xf32> to vector<16x32xf32>
    %302 = arith.mulf %300, %301 : vector<16x32xf32>
    %303 = arith.truncf %302 : vector<16x32xf32> to vector<16x32xbf16>
    %304 = arith.index_cast %297 : i32 to index
    %c0_155 = arith.constant 0 : index
    %305 = vector.load %arg21[%304, %c0_155] : memref<32x32xf32, #tpu.memory_space<vmem>>, vector<16x32xf32>
    %cst_156 = arith.constant dense<0.000000e+00> : vector<16x32xf32>
    %306 = tpu.matmul %303, %179, %cst_156 {dimension_numbers = #tpu.dot_dimension_numbers<[1], [0], [0], [1], [0, 0, 1, 1], [], []>} : vector<16x32xbf16>, vector<32x32xbf16>, vector<16x32xf32> -> vector<16x32xf32>
    %307 = arith.addf %305, %306 : vector<16x32xf32>
    %308 = vector.broadcast %183 : vector<1x32xf32> to vector<16x32xf32>
    %309 = arith.addf %307, %308 : vector<16x32xf32>
    %cst_157 = arith.constant 0.000000e+00 : f32
    %310 = vector.broadcast %cst_157 : f32 to vector<16x32xf32>
    %311 = arith.maximumf %309, %310 : vector<16x32xf32>
    %312 = arith.index_cast %297 : i32 to index
    %c0_158 = arith.constant 0 : index
    %313 = vector.load %arg21[%312, %c0_158] : memref<32x32xf32, #tpu.memory_space<vmem>>, vector<16x32xf32>
    tpu.vector_store %arg21[%312, %c0_158], %311 {strides = array<i32>} : memref<32x32xf32, #tpu.memory_space<vmem>>, vector<16x32xf32>,
    %c1_i32_159 = arith.constant 1 : i32
    %c1_i32_160 = arith.constant 1 : i32
    %314 = arith.muli %c1_i32_159, %c1_i32_160 : i32
    %c0_i32_161 = arith.constant 0 : i32
    %315 = arith.addi %c0_i32_161, %314 : i32
    %c16_i32_162 = arith.constant 16 : i32
    %316 = arith.muli %315, %c16_i32_162 : i32
    %317 = tpu.assume_multiple %316, 16 : i32
    %318 = arith.index_cast %317 : i32 to index
    %c0_163 = arith.constant 0 : index
    %319 = vector.load %arg22[%318, %c0_163] : memref<32x32xbf16, #tpu.memory_space<vmem>>, vector<16x32xbf16>
    %320 = arith.extf %319 : vector<16x32xbf16> to vector<16x32xf32>
    %321 = vector.broadcast %293 : vector<1x32xf32> to vector<16x32xf32>
    %322 = arith.mulf %320, %321 : vector<16x32xf32>
    %323 = arith.truncf %322 : vector<16x32xf32> to vector<16x32xbf16>
    %324 = arith.index_cast %317 : i32 to index
    %c0_164 = arith.constant 0 : index
    %325 = vector.load %arg21[%324, %c0_164] : memref<32x32xf32, #tpu.memory_space<vmem>>, vector<16x32xf32>
    %cst_165 = arith.constant dense<0.000000e+00> : vector<16x32xf32>
    %326 = tpu.matmul %323, %179, %cst_165 {dimension_numbers = #tpu.dot_dimension_numbers<[1], [0], [0], [1], [0, 0, 1, 1], [], []>} : vector<16x32xbf16>, vector<32x32xbf16>, vector<16x32xf32> -> vector<16x32xf32>
    %327 = arith.addf %325, %326 : vector<16x32xf32>
    %328 = vector.broadcast %183 : vector<1x32xf32> to vector<16x32xf32>
    %329 = arith.addf %327, %328 : vector<16x32xf32>
    %cst_166 = arith.constant 0.000000e+00 : f32
    %330 = vector.broadcast %cst_166 : f32 to vector<16x32xf32>
    %331 = arith.maximumf %329, %330 : vector<16x32xf32>
    %332 = arith.index_cast %317 : i32 to index
    %c0_167 = arith.constant 0 : index
    %333 = vector.load %arg21[%332, %c0_167] : memref<32x32xf32, #tpu.memory_space<vmem>>, vector<16x32xf32>
    tpu.vector_store %arg21[%332, %c0_167], %331 {strides = array<i32>} : memref<32x32xf32, #tpu.memory_space<vmem>>, vector<16x32xf32>,
    %c2_i32_168 = arith.constant 2 : i32
    %c0_169 = arith.constant 0 : index
    %c0_170 = arith.constant 0 : index
    %334 = vector.load %arg20[%c0_169, %c0_170] : memref<32x32xf32, #tpu.memory_space<vmem>>, vector<32x32xf32>
    %c0_171 = arith.constant 0 : index
    %c0_172 = arith.constant 0 : index
    %335 = vector.load %arg21[%c0_171, %c0_172] : memref<32x32xf32, #tpu.memory_space<vmem>>, vector<32x32xf32>
    %336 = arith.addf %334, %335 : vector<32x32xf32>
    %c0_173 = arith.constant 0 : index
    %c0_174 = arith.constant 0 : index
    %337 = vector.load %arg17[%c0_173, %c0_174] : memref<2x32xf32, #tpu.memory_space<vmem>>, vector<2x32xf32>
    %cst_175 = arith.constant dense<0.000000e+00> : vector<2x32xf32>
    %338 = tpu.matmul %337, %336, %cst_175 {dimension_numbers = #tpu.dot_dimension_numbers<[1], [1], [0], [0], [0, 0, 1, 0], [], []>} : vector<2x32xf32>, vector<32x32xf32>, vector<2x32xf32> -> vector<2x32xf32>
    %c0_176 = arith.constant 0 : index
    %c0_177 = arith.constant 0 : index
    %339 = vector.load %arg18[%c0_176, %c0_177] : memref<2x1xf32, #tpu.memory_space<vmem>>, vector<2x1xf32>
    %340 = vector.broadcast %339 : vector<2x1xf32> to vector<2x32xf32>
    %341 = arith.addf %338, %340 : vector<2x32xf32>
    %cst_178 = arith.constant 0.000000e+00 : f32
    %342 = vector.broadcast %cst_178 : f32 to vector<1x32xf32>
    %343 = arith.cmpf ogt, %13, %342 : vector<1x32xf32>
    %cst_179 = arith.constant 0xFF800000 : f32
    %344 = vector.shape_cast %343 : vector<1x32xi1> to vector<1x32xi1>
    %345 = vector.broadcast %344 : vector<1x32xi1> to vector<2x32xi1>
    %346 = vector.broadcast %cst_179 : f32 to vector<2x32xf32>
    %347 = arith.select %345, %341, %346 : vector<2x32xi1>, vector<2x32xf32>
    %c0_180 = arith.constant 0 : index
    %c0_181 = arith.constant 0 : index
    %c0_182 = arith.constant 0 : index
    %348 = vector.load %arg19[%c0_180, %c0_181, %c0_182] : memref<1x2x32xf32, #tpu.memory_space<vmem>>, vector<1x2x32xf32>
    %349 = vector.shape_cast %348 : vector<1x2x32xf32> to vector<2x32xf32>
    %350 = vector.shape_cast %347 : vector<2x32xf32> to vector<1x2x32xf32>
    tpu.vector_store %arg19[%c0_180, %c0_181, %c0_182], %350 {strides = array<i32>} : memref<1x2x32xf32, #tpu.memory_space<vmem>>, vector<1x2x32xf32>,
    return
  }
  func.func @transform_0(%arg0: i32) -> (i32, i32, i32) {
    %c0_i32 = arith.constant 0 : i32
    %c0_i32_0 = arith.constant 0 : i32
    %c0_i32_1 = arith.constant 0 : i32
    return %arg0, %c0_i32, %c0_i32_0 : i32, i32, i32
  }
  func.func @transform_1(%arg0: i32) -> (i32, i32, i32) {
    %c0_i32 = arith.constant 0 : i32
    %c0_i32_0 = arith.constant 0 : i32
    %c0_i32_1 = arith.constant 0 : i32
    return %arg0, %c0_i32, %c0_i32_0 : i32, i32, i32
  }
  func.func @transform_2(%arg0: i32) -> (i32, i32, i32) {
    %c0_i32 = arith.constant 0 : i32
    %c0_i32_0 = arith.constant 0 : i32
    %c0_i32_1 = arith.constant 0 : i32
    return %arg0, %c0_i32, %c0_i32_0 : i32, i32, i32
  }
  func.func @transform_3(%arg0: i32) -> (i32, i32, i32) {
    %c0_i32 = arith.constant 0 : i32
    %c0_i32_0 = arith.constant 0 : i32
    %c0_i32_1 = arith.constant 0 : i32
    return %arg0, %c0_i32, %c0_i32_0 : i32, i32, i32
  }
  func.func @transform_4(%arg0: i32) -> (i32, i32, i32) {
    %c0_i32 = arith.constant 0 : i32
    %c0_i32_0 = arith.constant 0 : i32
    %c0_i32_1 = arith.constant 0 : i32
    return %arg0, %c0_i32, %c0_i32_0 : i32, i32, i32
  }
  func.func @transform_5(%arg0: i32) -> (i32, i32, i32) {
    %c0_i32 = arith.constant 0 : i32
    %c0_i32_0 = arith.constant 0 : i32
    %c0_i32_1 = arith.constant 0 : i32
    return %arg0, %c0_i32, %c0_i32_0 : i32, i32, i32
  }
  func.func @transform_6(%arg0: i32) -> (i32, i32) {
    %c0_i32 = arith.constant 0 : i32
    %c0_i32_0 = arith.constant 0 : i32
    %c0_i32_1 = arith.constant 0 : i32
    return %c0_i32, %c0_i32_0 : i32, i32
  }
  func.func @transform_7(%arg0: i32) -> (i32, i32) {
    %c0_i32 = arith.constant 0 : i32
    %c0_i32_0 = arith.constant 0 : i32
    %c0_i32_1 = arith.constant 0 : i32
    return %c0_i32, %c0_i32_0 : i32, i32
  }
  func.func @transform_8(%arg0: i32) -> (i32, i32) {
    %c0_i32 = arith.constant 0 : i32
    %c0_i32_0 = arith.constant 0 : i32
    %c0_i32_1 = arith.constant 0 : i32
    return %c0_i32, %c0_i32_0 : i32, i32
  }
  func.func @transform_9(%arg0: i32) -> (i32, i32) {
    %c0_i32 = arith.constant 0 : i32
    %c0_i32_0 = arith.constant 0 : i32
    %c0_i32_1 = arith.constant 0 : i32
    return %c0_i32, %c0_i32_0 : i32, i32
  }
  func.func @transform_10(%arg0: i32) -> (i32, i32) {
    %c0_i32 = arith.constant 0 : i32
    %c0_i32_0 = arith.constant 0 : i32
    %c0_i32_1 = arith.constant 0 : i32
    return %c0_i32, %c0_i32_0 : i32, i32
  }
  func.func @transform_11(%arg0: i32) -> (i32, i32) {
    %c0_i32 = arith.constant 0 : i32
    %c0_i32_0 = arith.constant 0 : i32
    %c0_i32_1 = arith.constant 0 : i32
    return %c0_i32, %c0_i32_0 : i32, i32
  }
  func.func @transform_12(%arg0: i32) -> (i32, i32) {
    %c0_i32 = arith.constant 0 : i32
    %c0_i32_0 = arith.constant 0 : i32
    %c0_i32_1 = arith.constant 0 : i32
    return %c0_i32, %c0_i32_0 : i32, i32
  }
  func.func @transform_13(%arg0: i32) -> (i32, i32) {
    %c0_i32 = arith.constant 0 : i32
    %c0_i32_0 = arith.constant 0 : i32
    %c0_i32_1 = arith.constant 0 : i32
    return %c0_i32, %c0_i32_0 : i32, i32
  }
  func.func @transform_14(%arg0: i32) -> (i32, i32) {
    %c0_i32 = arith.constant 0 : i32
    %c0_i32_0 = arith.constant 0 : i32
    %c0_i32_1 = arith.constant 0 : i32
    return %c0_i32, %c0_i32_0 : i32, i32
  }
  func.func @transform_15(%arg0: i32) -> (i32, i32) {
    %c0_i32 = arith.constant 0 : i32
    %c0_i32_0 = arith.constant 0 : i32
    %c0_i32_1 = arith.constant 0 : i32
    return %c0_i32, %c0_i32_0 : i32, i32
  }
  func.func @transform_16(%arg0: i32) -> (i32, i32) {
    %c0_i32 = arith.constant 0 : i32
    %c0_i32_0 = arith.constant 0 : i32
    %c0_i32_1 = arith.constant 0 : i32
    return %c0_i32, %c0_i32_0 : i32, i32
  }
  func.func @transform_17(%arg0: i32) -> (i32, i32) {
    %c0_i32 = arith.constant 0 : i32
    %c0_i32_0 = arith.constant 0 : i32
    %c0_i32_1 = arith.constant 0 : i32
    return %c0_i32, %c0_i32_0 : i32, i32
  }
  func.func @transform_18(%arg0: i32) -> (i32, i32, i32) {
    %c0_i32 = arith.constant 0 : i32
    %c0_i32_0 = arith.constant 0 : i32
    %c0_i32_1 = arith.constant 0 : i32
    return %arg0, %c0_i32, %c0_i32_0 : i32, i32, i32
  }
}

</mosaic_0001>

<llo_original>
// kernel: tpu_custom_call.1
$region0: #{tpu_custom_call.1}
  #allocation0 [shape = 'u32[]', space=smem, size = 0x4, offset = 0x4, fixed_abs, tag = 'smem constant byte address 0x4 - core index']
  #allocation1 [shape = 'u32[144,128]{1,0:T(1,128)}', space=vmem, size = 0x12000, scoped, tag = 'internal scratch']
  #allocation2 [shape = 'f32[32,32]{1,0:T(8,128)}', space=vmem, size = 0x4000, scoped, tag = 'scratch operand']
  #allocation3 [shape = 'f32[32,32]{1,0:T(8,128)}', space=vmem, size = 0x4000, scoped, tag = 'scratch operand']
  #allocation4 [shape = 'bf16[32,32]{1,0:T(16,128)(2,1)}', space=vmem, size = 0x2000, scoped, tag = 'scratch operand']
  #allocation5 [shape = 'f32[32,1]{1,0:T(8,128)}', space=vmem, size = 0x4000, scoped, tag = 'scratch operand']
  %s0 = inlined_call_operand.vmem [shape: f32[2,1,16], index: 0, kind: input, shape index: {}]
  %s1 = inlined_call_operand.vmem [shape: f32[2,1,16], index: 1, kind: input, shape index: {}]
  %s2 = inlined_call_operand.vmem [shape: f32[2,1,32], index: 2, kind: input, shape index: {}]
  %s3 = inlined_call_operand.vmem [shape: f32[2,1,32], index: 3, kind: input, shape index: {}]
  %s4 = inlined_call_operand.vmem [shape: f32[2,16,32], index: 4, kind: input, shape index: {}]
  %s5 = inlined_call_operand.vmem [shape: f32[2,32,32], index: 5, kind: input, shape index: {}]
  %s6 = inlined_call_operand.vmem [shape: f32[1,32], index: 6, kind: input, shape index: {}]
  %s7 = inlined_call_operand.vmem [shape: f32[1,32], index: 7, kind: input, shape index: {}]
  %s8 = inlined_call_operand.vmem [shape: f32[1,32], index: 8, kind: input, shape index: {}]
  %s9 = inlined_call_operand.vmem [shape: bf16[128,32], index: 9, kind: input, shape index: {}]
  %s10 = inlined_call_operand.vmem [shape: f32[1,32], index: 10, kind: input, shape index: {}]
  %s11 = inlined_call_operand.vmem [shape: f32[1,32], index: 11, kind: input, shape index: {}]
  %s12 = inlined_call_operand.vmem [shape: f32[1,32], index: 12, kind: input, shape index: {}]
  %s13 = inlined_call_operand.vmem [shape: f32[1,32], index: 13, kind: input, shape index: {}]
  %s14 = inlined_call_operand.vmem [shape: bf16[128,32], index: 14, kind: input, shape index: {}]
  %s15 = inlined_call_operand.vmem [shape: f32[1,32], index: 15, kind: input, shape index: {}]
  %s16 = inlined_call_operand.vmem [shape: f32[2,32], index: 16, kind: input, shape index: {}]
  %s17 = inlined_call_operand.vmem [shape: f32[2,1], index: 17, kind: input, shape index: {}]
  %s18 = inlined_call_operand.hbm [shape: f32[2,2,32], index: 18, kind: output, shape index: {}]
  %s19 = sld [smem:[#allocation0]]
  $region105: #{tpu_custom_call.1} parent=0
    _
  %s21 = ssub.s32 1, %s19
  %s22 = scalar_select 0, %s21, %s19
  $region1: #{tpu_custom_call.1} parent=0
    #allocation6 [shape = 'u8[2048]{0}', space=vmem, size = 0x800, scoped, tag = 'output window, operand 0']
    #allocation7 [shape = 's32[2]{0}', space=sflag, size = 0x8, scoped, tag = 'scoped memory for tpu_custom_call.1']
    %23 = vsyncpa [#allocation7], 0
    %s24 = scalar_lea.sflag [#allocation7], 1
    %25 = vsyncpa %s24, 0
    loop: start=0, step=1, limit=4
    $region2: #{tpu_custom_call.1} parent=1 // loop_pre_header
      _
    $region3: #{tpu_custom_call.1} parent=1 // loop_header
      %s27 = sphi 0, %s31
      %p28 = scmp.ge.s32.totalorder %s27, 4
      %s37 = sphi 0, %s39
      %s40 = sphi 0, %s37
      %s41 = sphi 0, %s40
      %s57 = sphi 0, %s41
      %s63 = sphi 0, %s65
      %s66 = sphi 0, %s63
      %s67 = sphi 0, %s66
      %s83 = sphi 0, %s67
      %s89 = sphi 0, %s91
      %s92 = sphi 0, %s89
      %s93 = sphi 0, %s92
      %s109 = sphi 0, %s93
      %s115 = sphi 0, %s117
      %s118 = sphi 0, %s115
      %s119 = sphi 0, %s118
      %s135 = sphi 0, %s119
      %s141 = sphi 0, %s143
      %s144 = sphi 0, %s141
      %s145 = sphi 0, %s144
      %s161 = sphi 0, %s145
      %s167 = sphi 0, %s169
      %s170 = sphi 0, %s167
      %s171 = sphi 0, %s170
      %s187 = sphi 0, %s171
      %s191 = sphi 0, %s191
      %s193 = sphi 0, %s191
      %s194 = sphi 0, %s193
      %s208 = sphi 0, %s194
      %s212 = sphi 0, %s212
      %s214 = sphi 0, %s212
      %s215 = sphi 0, %s214
      %s229 = sphi 0, %s215
      %s233 = sphi 0, %s233
      %s235 = sphi 0, %s233
      %s236 = sphi 0, %s235
      %s250 = sphi 0, %s236
      %s254 = sphi 0, %s254
      %s256 = sphi 0, %s254
      %s257 = sphi 0, %s256
      %s271 = sphi 0, %s257
      %s275 = sphi 0, %s275
      %s277 = sphi 0, %s275
      %s278 = sphi 0, %s277
      %s292 = sphi 0, %s278
      %s296 = sphi 0, %s296
      %s298 = sphi 0, %s296
      %s299 = sphi 0, %s298
      %s313 = sphi 0, %s299
      %s317 = sphi 0, %s317
      %s319 = sphi 0, %s317
      %s320 = sphi 0, %s319
      %s334 = sphi 0, %s320
      %s338 = sphi 0, %s338
      %s340 = sphi 0, %s338
      %s341 = sphi 0, %s340
      %s355 = sphi 0, %s341
      %s359 = sphi 0, %s359
      %s361 = sphi 0, %s359
      %s362 = sphi 0, %s361
      %s376 = sphi 0, %s362
      %s380 = sphi 0, %s380
      %s382 = sphi 0, %s380
      %s383 = sphi 0, %s382
      %s397 = sphi 0, %s383
      %s401 = sphi 0, %s401
      %s403 = sphi 0, %s401
      %s404 = sphi 0, %s403
      %s418 = sphi 0, %s404
      %s422 = sphi 0, %s422
      %s424 = sphi 0, %s422
      %s425 = sphi 0, %s424
      %s439 = sphi 0, %s425
      %s445 = sphi 0, %s447
      %s448 = sphi 0, %s445
      %s449 = sphi 0, %s448
      %s465 = sphi 0, %s449
    $region4: #{tpu_custom_call.1} parent=1 // loop_header_branch
      %30 = sbr.rel (%p28) target = $region8
    $region5: #{tpu_custom_call.1} parent=1 // loop_body
      %s32 = ssub.s32 %s27, 1
      %s33 = ssub.s32 %s27, 2
      %s34 = sadd.s32 %s27, 1
      %s35 = ssub.s32 %s27, %s34
      %p36 = scmp.eq.s32.totalorder %s35, 0
      %s38 = sadd.s32 %s37, 1
      %s39 = scalar_select %p36, %s37, %s38
      %p42 = pneg %p36
      %p43 = scmp.eq.s32.totalorder %s27, 1
      %p44 = por %p42, %p43
      %p45 = scmp.ne.s32.totalorder %s37, %s40
      %p46 = scmp.eq.s32.totalorder %s27, 0
      %p47 = por %p45, %p46
      %p48 = scmp.ne.s32.totalorder %s37, %s40
      %p49 = scmp.eq.s32.totalorder %s32, 1
      %p50 = por %p48, %p49
      %p51 = scmp.ne.s32.totalorder %s40, %s41
      %p52 = scmp.eq.s32.totalorder %s32, 0
      %p53 = por %p51, %p52
      %p54 = scmp.ne.s32.totalorder %s40, %s41
      %p55 = scmp.eq.s32.totalorder %s33, 1
      %p56 = por %p54, %p55
      %p58 = scmp.ne.s32.totalorder %s41, %s57
      %p59 = scmp.eq.s32.totalorder %s33, 0
      %p60 = por %p58, %p59
      %s61 = ssub.s32 %s27, %s34
      %p62 = scmp.eq.s32.totalorder %s61, 0
      %s64 = sadd.s32 %s63, 1
      %s65 = scalar_select %p62, %s63, %s64
      %p68 = pneg %p62
      %p69 = scmp.eq.s32.totalorder %s27, 1
      %p70 = por %p68, %p69
      %p71 = scmp.ne.s32.totalorder %s63, %s66
      %p72 = scmp.eq.s32.totalorder %s27, 0
      %p73 = por %p71, %p72
      %p74 = scmp.ne.s32.totalorder %s63, %s66
      %p75 = scmp.eq.s32.totalorder %s32, 1
      %p76 = por %p74, %p75
      %p77 = scmp.ne.s32.totalorder %s66, %s67
      %p78 = scmp.eq.s32.totalorder %s32, 0
      %p79 = por %p77, %p78
      %p80 = scmp.ne.s32.totalorder %s66, %s67
      %p81 = scmp.eq.s32.totalorder %s33, 1
      %p82 = por %p80, %p81
      %p84 = scmp.ne.s32.totalorder %s67, %s83
      %p85 = scmp.eq.s32.totalorder %s33, 0
      %p86 = por %p84, %p85
      %s87 = ssub.s32 %s27, %s34
      %p88 = scmp.eq.s32.totalorder %s87, 0
      %s90 = sadd.s32 %s89, 1
      %s91 = scalar_select %p88, %s89, %s90
      %p94 = pneg %p88
      %p95 = scmp.eq.s32.totalorder %s27, 1
      %p96 = por %p94, %p95
      %p97 = scmp.ne.s32.totalorder %s89, %s92
      %p98 = scmp.eq.s32.totalorder %s27, 0
      %p99 = por %p97, %p98
      %p100 = scmp.ne.s32.totalorder %s89, %s92
      %p101 = scmp.eq.s32.totalorder %s32, 1
      %p102 = por %p100, %p101
      %p103 = scmp.ne.s32.totalorder %s92, %s93
      %p104 = scmp.eq.s32.totalorder %s32, 0
      %p105 = por %p103, %p104
      %p106 = scmp.ne.s32.totalorder %s92, %s93
      %p107 = scmp.eq.s32.totalorder %s33, 1
      %p108 = por %p106, %p107
      %p110 = scmp.ne.s32.totalorder %s93, %s109
      %p111 = scmp.eq.s32.totalorder %s33, 0
      %p112 = por %p110, %p111
      %s113 = ssub.s32 %s27, %s34
      %p114 = scmp.eq.s32.totalorder %s113, 0
      %s116 = sadd.s32 %s115, 1
      %s117 = scalar_select %p114, %s115, %s116
      %p120 = pneg %p114
      %p121 = scmp.eq.s32.totalorder %s27, 1
      %p122 = por %p120, %p121
      %p123 = scmp.ne.s32.totalorder %s115, %s118
      %p124 = scmp.eq.s32.totalorder %s27, 0
      %p125 = por %p123, %p124
      %p126 = scmp.ne.s32.totalorder %s115, %s118
      %p127 = scmp.eq.s32.totalorder %s32, 1
      %p128 = por %p126, %p127
      %p129 = scmp.ne.s32.totalorder %s118, %s119
      %p130 = scmp.eq.s32.totalorder %s32, 0
      %p131 = por %p129, %p130
      %p132 = scmp.ne.s32.totalorder %s118, %s119
      %p133 = scmp.eq.s32.totalorder %s33, 1
      %p134 = por %p132, %p133
      %p136 = scmp.ne.s32.totalorder %s119, %s135
      %p137 = scmp.eq.s32.totalorder %s33, 0
      %p138 = por %p136, %p137
      %s139 = ssub.s32 %s27, %s34
      %p140 = scmp.eq.s32.totalorder %s139, 0
      %s142 = sadd.s32 %s141, 1
      %s143 = scalar_select %p140, %s141, %s142
      %p146 = pneg %p140
      %p147 = scmp.eq.s32.totalorder %s27, 1
      %p148 = por %p146, %p147
      %p149 = scmp.ne.s32.totalorder %s141, %s144
      %p150 = scmp.eq.s32.totalorder %s27, 0
      %p151 = por %p149, %p150
      %p152 = scmp.ne.s32.totalorder %s141, %s144
      %p153 = scmp.eq.s32.totalorder %s32, 1
      %p154 = por %p152, %p153
      %p155 = scmp.ne.s32.totalorder %s144, %s145
      %p156 = scmp.eq.s32.totalorder %s32, 0
      %p157 = por %p155, %p156
      %p158 = scmp.ne.s32.totalorder %s144, %s145
      %p159 = scmp.eq.s32.totalorder %s33, 1
      %p160 = por %p158, %p159
      %p162 = scmp.ne.s32.totalorder %s145, %s161
      %p163 = scmp.eq.s32.totalorder %s33, 0
      %p164 = por %p162, %p163
      %s165 = ssub.s32 %s27, %s34
      %p166 = scmp.eq.s32.totalorder %s165, 0
      %s168 = sadd.s32 %s167, 1
      %s169 = scalar_select %p166, %s167, %s168
      %p172 = pneg %p166
      %p173 = scmp.eq.s32.totalorder %s27, 1
      %p174 = por %p172, %p173
      %p175 = scmp.ne.s32.totalorder %s167, %s170
      %p176 = scmp.eq.s32.totalorder %s27, 0
      %p177 = por %p175, %p176
      %p178 = scmp.ne.s32.totalorder %s167, %s170
      %p179 = scmp.eq.s32.totalorder %s32, 1
      %p180 = por %p178, %p179
      %p181 = scmp.ne.s32.totalorder %s170, %s171
      %p182 = scmp.eq.s32.totalorder %s32, 0
      %p183 = por %p181, %p182
      %p184 = scmp.ne.s32.totalorder %s170, %s171
      %p185 = scmp.eq.s32.totalorder %s33, 1
      %p186 = por %p184, %p185
      %p188 = scmp.ne.s32.totalorder %s171, %s187
      %p189 = scmp.eq.s32.totalorder %s33, 0
      %p190 = por %p188, %p189
      %s192 = sadd.s32 %s191, 1
      %p195 = scmp.eq.s32.totalorder %s27, 1
      %p196 = scmp.ne.s32.totalorder %s191, %s193
      %p197 = scmp.eq.s32.totalorder %s27, 0
      %p198 = por %p196, %p197
      %p199 = scmp.ne.s32.totalorder %s191, %s193
      %p200 = scmp.eq.s32.totalorder %s32, 1
      %p201 = por %p199, %p200
      %p202 = scmp.ne.s32.totalorder %s193, %s194
      %p203 = scmp.eq.s32.totalorder %s32, 0
      %p204 = por %p202, %p203
      %p205 = scmp.ne.s32.totalorder %s193, %s194
      %p206 = scmp.eq.s32.totalorder %s33, 1
      %p207 = por %p205, %p206
      %p209 = scmp.ne.s32.totalorder %s194, %s208
      %p210 = scmp.eq.s32.totalorder %s33, 0
      %p211 = por %p209, %p210
      %s213 = sadd.s32 %s212, 1
      %p216 = scmp.eq.s32.totalorder %s27, 1
      %p217 = scmp.ne.s32.totalorder %s212, %s214
      %p218 = scmp.eq.s32.totalorder %s27, 0
      %p219 = por %p217, %p218
      %p220 = scmp.ne.s32.totalorder %s212, %s214
      %p221 = scmp.eq.s32.totalorder %s32, 1
      %p222 = por %p220, %p221
      %p223 = scmp.ne.s32.totalorder %s214, %s215
      %p224 = scmp.eq.s32.totalorder %s32, 0
      %p225 = por %p223, %p224
      %p226 = scmp.ne.s32.totalorder %s214, %s215
      %p227 = scmp.eq.s32.totalorder %s33, 1
      %p228 = por %p226, %p227
      %p230 = scmp.ne.s32.totalorder %s215, %s229
      %p231 = scmp.eq.s32.totalorder %s33, 0
      %p232 = por %p230, %p231
      %s234 = sadd.s32 %s233, 1
      %p237 = scmp.eq.s32.totalorder %s27, 1
      %p238 = scmp.ne.s32.totalorder %s233, %s235
      %p239 = scmp.eq.s32.totalorder %s27, 0
      %p240 = por %p238, %p239
      %p241 = scmp.ne.s32.totalorder %s233, %s235
      %p242 = scmp.eq.s32.totalorder %s32, 1
      %p243 = por %p241, %p242
      %p244 = scmp.ne.s32.totalorder %s235, %s236
      %p245 = scmp.eq.s32.totalorder %s32, 0
      %p246 = por %p244, %p245
      %p247 = scmp.ne.s32.totalorder %s235, %s236
      %p248 = scmp.eq.s32.totalorder %s33, 1
      %p249 = por %p247, %p248
      %p251 = scmp.ne.s32.totalorder %s236, %s250
      %p252 = scmp.eq.s32.totalorder %s33, 0
      %p253 = por %p251, %p252
      %s255 = sadd.s32 %s254, 1
      %p258 = scmp.eq.s32.totalorder %s27, 1
      %p259 = scmp.ne.s32.totalorder %s254, %s256
      %p260 = scmp.eq.s32.totalorder %s27, 0
      %p261 = por %p259, %p260
      %p262 = scmp.ne.s32.totalorder %s254, %s256
      %p263 = scmp.eq.s32.totalorder %s32, 1
      %p264 = por %p262, %p263
      %p265 = scmp.ne.s32.totalorder %s256, %s257
      %p266 = scmp.eq.s32.totalorder %s32, 0
      %p267 = por %p265, %p266
      %p268 = scmp.ne.s32.totalorder %s256, %s257
      %p269 = scmp.eq.s32.totalorder %s33, 1
      %p270 = por %p268, %p269
      %p272 = scmp.ne.s32.totalorder %s257, %s271
      %p273 = scmp.eq.s32.totalorder %s33, 0
      %p274 = por %p272, %p273
      %s276 = sadd.s32 %s275, 1
      %p279 = scmp.eq.s32.totalorder %s27, 1
      %p280 = scmp.ne.s32.totalorder %s275, %s277
      %p281 = scmp.eq.s32.totalorder %s27, 0
      %p282 = por %p280, %p281
      %p283 = scmp.ne.s32.totalorder %s275, %s277
      %p284 = scmp.eq.s32.totalorder %s32, 1
      %p285 = por %p283, %p284
      %p286 = scmp.ne.s32.totalorder %s277, %s278
      %p287 = scmp.eq.s32.totalorder %s32, 0
      %p288 = por %p286, %p287
      %p289 = scmp.ne.s32.totalorder %s277, %s278
      %p290 = scmp.eq.s32.totalorder %s33, 1
      %p291 = por %p289, %p290
      %p293 = scmp.ne.s32.totalorder %s278, %s292
      %p294 = scmp.eq.s32.totalorder %s33, 0
      %p295 = por %p293, %p294
      %s297 = sadd.s32 %s296, 1
      %p300 = scmp.eq.s32.totalorder %s27, 1
      %p301 = scmp.ne.s32.totalorder %s296, %s298
      %p302 = scmp.eq.s32.totalorder %s27, 0
      %p303 = por %p301, %p302
      %p304 = scmp.ne.s32.totalorder %s296, %s298
      %p305 = scmp.eq.s32.totalorder %s32, 1
      %p306 = por %p304, %p305
      %p307 = scmp.ne.s32.totalorder %s298, %s299
      %p308 = scmp.eq.s32.totalorder %s32, 0
      %p309 = por %p307, %p308
      %p310 = scmp.ne.s32.totalorder %s298, %s299
      %p311 = scmp.eq.s32.totalorder %s33, 1
      %p312 = por %p310, %p311
      %p314 = scmp.ne.s32.totalorder %s299, %s313
      %p315 = scmp.eq.s32.totalorder %s33, 0
      %p316 = por %p314, %p315
      %s318 = sadd.s32 %s317, 1
      %p321 = scmp.eq.s32.totalorder %s27, 1
      %p322 = scmp.ne.s32.totalorder %s317, %s319
      %p323 = scmp.eq.s32.totalorder %s27, 0
      %p324 = por %p322, %p323
      %p325 = scmp.ne.s32.totalorder %s317, %s319
      %p326 = scmp.eq.s32.totalorder %s32, 1
      %p327 = por %p325, %p326
      %p328 = scmp.ne.s32.totalorder %s319, %s320
      %p329 = scmp.eq.s32.totalorder %s32, 0
      %p330 = por %p328, %p329
      %p331 = scmp.ne.s32.totalorder %s319, %s320
      %p332 = scmp.eq.s32.totalorder %s33, 1
      %p333 = por %p331, %p332
      %p335 = scmp.ne.s32.totalorder %s320, %s334
      %p336 = scmp.eq.s32.totalorder %s33, 0
      %p337 = por %p335, %p336
      %s339 = sadd.s32 %s338, 1
      %p342 = scmp.eq.s32.totalorder %s27, 1
      %p343 = scmp.ne.s32.totalorder %s338, %s340
      %p344 = scmp.eq.s32.totalorder %s27, 0
      %p345 = por %p343, %p344
      %p346 = scmp.ne.s32.totalorder %s338, %s340
      %p347 = scmp.eq.s32.totalorder %s32, 1
      %p348 = por %p346, %p347
      %p349 = scmp.ne.s32.totalorder %s340, %s341
      %p350 = scmp.eq.s32.totalorder %s32, 0
      %p351 = por %p349, %p350
      %p352 = scmp.ne.s32.totalorder %s340, %s341
      %p353 = scmp.eq.s32.totalorder %s33, 1
      %p354 = por %p352, %p353
      %p356 = scmp.ne.s32.totalorder %s341, %s355
      %p357 = scmp.eq.s32.totalorder %s33, 0
      %p358 = por %p356, %p357
      %s360 = sadd.s32 %s359, 1
      %p363 = scmp.eq.s32.totalorder %s27, 1
      %p364 = scmp.ne.s32.totalorder %s359, %s361
      %p365 = scmp.eq.s32.totalorder %s27, 0
      %p366 = por %p364, %p365
      %p367 = scmp.ne.s32.totalorder %s359, %s361
      %p368 = scmp.eq.s32.totalorder %s32, 1
      %p369 = por %p367, %p368
      %p370 = scmp.ne.s32.totalorder %s361, %s362
      %p371 = scmp.eq.s32.totalorder %s32, 0
      %p372 = por %p370, %p371
      %p373 = scmp.ne.s32.totalorder %s361, %s362
      %p374 = scmp.eq.s32.totalorder %s33, 1
      %p375 = por %p373, %p374
      %p377 = scmp.ne.s32.totalorder %s362, %s376
      %p378 = scmp.eq.s32.totalorder %s33, 0
      %p379 = por %p377, %p378
      %s381 = sadd.s32 %s380, 1
      %p384 = scmp.eq.s32.totalorder %s27, 1
      %p385 = scmp.ne.s32.totalorder %s380, %s382
      %p386 = scmp.eq.s32.totalorder %s27, 0
      %p387 = por %p385, %p386
      %p388 = scmp.ne.s32.totalorder %s380, %s382
      %p389 = scmp.eq.s32.totalorder %s32, 1
      %p390 = por %p388, %p389
      %p391 = scmp.ne.s32.totalorder %s382, %s383
      %p392 = scmp.eq.s32.totalorder %s32, 0
      %p393 = por %p391, %p392
      %p394 = scmp.ne.s32.totalorder %s382, %s383
      %p395 = scmp.eq.s32.totalorder %s33, 1
      %p396 = por %p394, %p395
      %p398 = scmp.ne.s32.totalorder %s383, %s397
      %p399 = scmp.eq.s32.totalorder %s33, 0
      %p400 = por %p398, %p399
      %s402 = sadd.s32 %s401, 1
      %p405 = scmp.eq.s32.totalorder %s27, 1
      %p406 = scmp.ne.s32.totalorder %s401, %s403
      %p407 = scmp.eq.s32.totalorder %s27, 0
      %p408 = por %p406, %p407
      %p409 = scmp.ne.s32.totalorder %s401, %s403
      %p410 = scmp.eq.s32.totalorder %s32, 1
      %p411 = por %p409, %p410
      %p412 = scmp.ne.s32.totalorder %s403, %s404
      %p413 = scmp.eq.s32.totalorder %s32, 0
      %p414 = por %p412, %p413
      %p415 = scmp.ne.s32.totalorder %s403, %s404
      %p416 = scmp.eq.s32.totalorder %s33, 1
      %p417 = por %p415, %p416
      %p419 = scmp.ne.s32.totalorder %s404, %s418
      %p420 = scmp.eq.s32.totalorder %s33, 0
      %p421 = por %p419, %p420
      %s423 = sadd.s32 %s422, 1
      %p426 = scmp.eq.s32.totalorder %s27, 1
      %p427 = scmp.ne.s32.totalorder %s422, %s424
      %p428 = scmp.eq.s32.totalorder %s27, 0
      %p429 = por %p427, %p428
      %p430 = scmp.ne.s32.totalorder %s422, %s424
      %p431 = scmp.eq.s32.totalorder %s32, 1
      %p432 = por %p430, %p431
      %p433 = scmp.ne.s32.totalorder %s424, %s425
      %p434 = scmp.eq.s32.totalorder %s32, 0
      %p435 = por %p433, %p434
      %p436 = scmp.ne.s32.totalorder %s424, %s425
      %p437 = scmp.eq.s32.totalorder %s33, 1
      %p438 = por %p436, %p437
      %p440 = scmp.ne.s32.totalorder %s425, %s439
      %p441 = scmp.eq.s32.totalorder %s33, 0
      %p442 = por %p440, %p441
      %s443 = ssub.s32 %s27, %s34
      %p444 = scmp.eq.s32.totalorder %s443, 0
      %s446 = sadd.s32 %s445, 1
      %s447 = scalar_select %p444, %s445, %s446
      %p450 = pneg %p444
      %p451 = scmp.eq.s32.totalorder %s27, 1
      %p452 = por %p450, %p451
      %p453 = scmp.ne.s32.totalorder %s445, %s448
      %p454 = scmp.eq.s32.totalorder %s27, 0
      %p455 = por %p453, %p454
      %p456 = scmp.ne.s32.totalorder %s445, %s448
      %p457 = scmp.eq.s32.totalorder %s32, 1
      %p458 = por %p456, %p457
      %p459 = scmp.ne.s32.totalorder %s448, %s449
      %p460 = scmp.eq.s32.totalorder %s32, 0
      %p461 = por %p459, %p460
      %p462 = scmp.ne.s32.totalorder %s448, %s449
      %p463 = scmp.eq.s32.totalorder %s33, 1
      %p464 = por %p462, %p463
      %p466 = scmp.ne.s32.totalorder %s449, %s465
      %p467 = scmp.eq.s32.totalorder %s33, 0
      %p468 = por %p466, %p467
      %p469 = scmp.le.s32.totalorder 1, %s27
      %p470 = scmp.lt.s32.totalorder %s27, 3
      %p471 = pnand %p469, %p470
      %p472 = pneg %p471
      // Predicated region
      $region9: #{tpu_custom_call.1} parent=5 // pred_check
        _
      $region10: #{tpu_custom_call.1} parent=5 // pred_check_branch
        %474 = sbr.rel (%p471) target = $region12
      $region11: #{tpu_custom_call.1} parent=5 // pred_region
        %s475 = ssub.s32 %s27, 1
        // Predicated region
        $region13: #{tpu_custom_call.1} parent=11 // pred_check
          %p476 = pneg %p204
        $region14: #{tpu_custom_call.1} parent=11 // pred_check_branch
          %478 = sbr.rel (%p476) target = $region16
        $region15: #{tpu_custom_call.1} parent=11 // pred_region
          _
        $region16: #{tpu_custom_call.1} parent=11 // pred_fallthru
          _
        // Predicated region
        $region17: #{tpu_custom_call.1} parent=11 // pred_check
          %p479 = pneg %p225
        $region18: #{tpu_custom_call.1} parent=11 // pred_check_branch
          %481 = sbr.rel (%p479) target = $region20
        $region19: #{tpu_custom_call.1} parent=11 // pred_region
          _
        $region20: #{tpu_custom_call.1} parent=11 // pred_fallthru
          _
        // Predicated region
        $region21: #{tpu_custom_call.1} parent=11 // pred_check
          %p482 = pneg %p246
        $region22: #{tpu_custom_call.1} parent=11 // pred_check_branch
          %484 = sbr.rel (%p482) target = $region24
        $region23: #{tpu_custom_call.1} parent=11 // pred_region
          _
        $region24: #{tpu_custom_call.1} parent=11 // pred_fallthru
          _
        // Predicated region
        $region25: #{tpu_custom_call.1} parent=11 // pred_check
          %p485 = pneg %p267
        $region26: #{tpu_custom_call.1} parent=11 // pred_check_branch
          %487 = sbr.rel (%p485) target = $region28
        $region27: #{tpu_custom_call.1} parent=11 // pred_region
          _
        $region28: #{tpu_custom_call.1} parent=11 // pred_fallthru
          _
        // Predicated region
        $region29: #{tpu_custom_call.1} parent=11 // pred_check
          %p488 = pneg %p288
        $region30: #{tpu_custom_call.1} parent=11 // pred_check_branch
          %490 = sbr.rel (%p488) target = $region32
        $region31: #{tpu_custom_call.1} parent=11 // pred_region
          _
        $region32: #{tpu_custom_call.1} parent=11 // pred_fallthru
          _
        // Predicated region
        $region33: #{tpu_custom_call.1} parent=11 // pred_check
          %p491 = pneg %p309
        $region34: #{tpu_custom_call.1} parent=11 // pred_check_branch
          %493 = sbr.rel (%p491) target = $region36
        $region35: #{tpu_custom_call.1} parent=11 // pred_region
          _
        $region36: #{tpu_custom_call.1} parent=11 // pred_fallthru
          _
        // Predicated region
        $region37: #{tpu_custom_call.1} parent=11 // pred_check
          %p494 = pneg %p330
        $region38: #{tpu_custom_call.1} parent=11 // pred_check_branch
          %496 = sbr.rel (%p494) target = $region40
        $region39: #{tpu_custom_call.1} parent=11 // pred_region
          _
        $region40: #{tpu_custom_call.1} parent=11 // pred_fallthru
          _
        // Predicated region
        $region41: #{tpu_custom_call.1} parent=11 // pred_check
          %p497 = pneg %p351
        $region42: #{tpu_custom_call.1} parent=11 // pred_check_branch
          %499 = sbr.rel (%p497) target = $region44
        $region43: #{tpu_custom_call.1} parent=11 // pred_region
          _
        $region44: #{tpu_custom_call.1} parent=11 // pred_fallthru
          _
        // Predicated region
        $region45: #{tpu_custom_call.1} parent=11 // pred_check
          %p500 = pneg %p372
        $region46: #{tpu_custom_call.1} parent=11 // pred_check_branch
          %502 = sbr.rel (%p500) target = $region48
        $region47: #{tpu_custom_call.1} parent=11 // pred_region
          _
        $region48: #{tpu_custom_call.1} parent=11 // pred_fallthru
          _
        // Predicated region
        $region49: #{tpu_custom_call.1} parent=11 // pred_check
          %p503 = pneg %p393
        $region50: #{tpu_custom_call.1} parent=11 // pred_check_branch
          %505 = sbr.rel (%p503) target = $region52
        $region51: #{tpu_custom_call.1} parent=11 // pred_region
          _
        $region52: #{tpu_custom_call.1} parent=11 // pred_fallthru
          _
        // Predicated region
        $region53: #{tpu_custom_call.1} parent=11 // pred_check
          %p506 = pneg %p414
        $region54: #{tpu_custom_call.1} parent=11 // pred_check_branch
          %508 = sbr.rel (%p506) target = $region56
        $region55: #{tpu_custom_call.1} parent=11 // pred_region
          _
        $region56: #{tpu_custom_call.1} parent=11 // pred_fallthru
          _
        // Predicated region
        $region57: #{tpu_custom_call.1} parent=11 // pred_check
          %p509 = pneg %p435
        $region58: #{tpu_custom_call.1} parent=11 // pred_check_branch
          %511 = sbr.rel (%p509) target = $region60
        $region59: #{tpu_custom_call.1} parent=11 // pred_region
          _
        $region60: #{tpu_custom_call.1} parent=11 // pred_fallthru
          _
      $region12: #{tpu_custom_call.1} parent=5 // pred_fallthru
        _
      %p512 = scmp.lt.s32.totalorder %s27, 2
      // Predicated region
      $region61: #{tpu_custom_call.1} parent=5 // pred_check
        %p513 = pneg %p512
      $region62: #{tpu_custom_call.1} parent=5 // pred_check_branch
        %515 = sbr.rel (%p513) target = $region64
      $region63: #{tpu_custom_call.1} parent=5 // pred_region
        // Predicated region
        $region65: #{tpu_custom_call.1} parent=63 // pred_check
          %p516 = pneg %p47
        $region66: #{tpu_custom_call.1} parent=63 // pred_check_branch
          %518 = sbr.rel (%p516) target = $region68
        $region67: #{tpu_custom_call.1} parent=63 // pred_region
          %p519 = scmp.lt.s32.totalorder %s27, 1
          %s520 = scalar_select %p519, %s27, 1
          %s521 = scalar_lea.vmem %s0, %s520
        $region68: #{tpu_custom_call.1} parent=63 // pred_fallthru
          _
        // Predicated region
        $region69: #{tpu_custom_call.1} parent=63 // pred_check
          %p522 = pneg %p73
        $region70: #{tpu_custom_call.1} parent=63 // pred_check_branch
          %524 = sbr.rel (%p522) target = $region72
        $region71: #{tpu_custom_call.1} parent=63 // pred_region
          %p525 = scmp.lt.s32.totalorder %s27, 1
          %s526 = scalar_select %p525, %s27, 1
          %s527 = scalar_lea.vmem %s1, %s526
        $region72: #{tpu_custom_call.1} parent=63 // pred_fallthru
          _
        // Predicated region
        $region73: #{tpu_custom_call.1} parent=63 // pred_check
          %p528 = pneg %p99
        $region74: #{tpu_custom_call.1} parent=63 // pred_check_branch
          %530 = sbr.rel (%p528) target = $region76
        $region75: #{tpu_custom_call.1} parent=63 // pred_region
          %p531 = scmp.lt.s32.totalorder %s27, 1
          %s532 = scalar_select %p531, %s27, 1
          %s533 = scalar_lea.vmem %s2, %s532
        $region76: #{tpu_custom_call.1} parent=63 // pred_fallthru
          _
        // Predicated region
        $region77: #{tpu_custom_call.1} parent=63 // pred_check
          %p534 = pneg %p125
        $region78: #{tpu_custom_call.1} parent=63 // pred_check_branch
          %536 = sbr.rel (%p534) target = $region80
        $region79: #{tpu_custom_call.1} parent=63 // pred_region
          %p537 = scmp.lt.s32.totalorder %s27, 1
          %s538 = scalar_select %p537, %s27, 1
          %s539 = scalar_lea.vmem %s3, %s538
        $region80: #{tpu_custom_call.1} parent=63 // pred_fallthru
          _
        // Predicated region
        $region81: #{tpu_custom_call.1} parent=63 // pred_check
          %p540 = pneg %p151
        $region82: #{tpu_custom_call.1} parent=63 // pred_check_branch
          %542 = sbr.rel (%p540) target = $region84
        $region83: #{tpu_custom_call.1} parent=63 // pred_region
          %p543 = scmp.lt.s32.totalorder %s27, 1
          %s544 = scalar_select %p543, %s27, 1
          %s545 = smul.addr %s544, 2
          %s546 = smul.addr %s545, 8
          %s547 = scalar_lea.vmem %s4, %s546
        $region84: #{tpu_custom_call.1} parent=63 // pred_fallthru
          _
        // Predicated region
        $region85: #{tpu_custom_call.1} parent=63 // pred_check
          %p548 = pneg %p177
        $region86: #{tpu_custom_call.1} parent=63 // pred_check_branch
          %550 = sbr.rel (%p548) target = $region88
        $region87: #{tpu_custom_call.1} parent=63 // pred_region
          %p551 = scmp.lt.s32.totalorder %s27, 1
          %s552 = scalar_select %p551, %s27, 1
          %s553 = smul.addr %s552, 4
          %s554 = smul.addr %s553, 8
          %s555 = scalar_lea.vmem %s5, %s554
        $region88: #{tpu_custom_call.1} parent=63 // pred_fallthru
          _
      $region64: #{tpu_custom_call.1} parent=5 // pred_fallthru
        _
      %p556 = scmp.le.s32.totalorder 1, %s27
      %p557 = scmp.lt.s32.totalorder %s27, 3
      %p558 = pnand %p556, %p557
      %p559 = pneg %p558
      // Predicated region
      $region89: #{tpu_custom_call.1} parent=5 // pred_check
        _
      $region90: #{tpu_custom_call.1} parent=5 // pred_check_branch
        %561 = sbr.rel (%p558) target = $region92
      $region91: #{tpu_custom_call.1} parent=5 // pred_region
        %s562 = ssub.s32 %s27, 1
        %p563 = scmp.lt.s32.totalorder %s32, 1
        %s564 = scalar_select %p563, %s32, 1
        %s565 = scalar_lea.vmem %s0, %s564
        %p566 = pneg %p53
        %p567 = pneg %p50
        %p568 = scmp.lt.s32.totalorder %s32, 1
        %s569 = scalar_select %p568, %s32, 1
        %s570 = scalar_lea.vmem %s1, %s569
        %p571 = pneg %p79
        %p572 = pneg %p76
        %p573 = scmp.lt.s32.totalorder %s32, 1
        %s574 = scalar_select %p573, %s32, 1
        %s575 = scalar_lea.vmem %s2, %s574
        %p576 = pneg %p105
        %p577 = pneg %p102
        %p578 = scmp.lt.s32.totalorder %s32, 1
        %s579 = scalar_select %p578, %s32, 1
        %s580 = scalar_lea.vmem %s3, %s579
        %p581 = pneg %p131
        %p582 = pneg %p128
        %p583 = scmp.lt.s32.totalorder %s32, 1
        %s584 = scalar_select %p583, %s32, 1
        %s585 = smul.addr %s584, 2
        %s586 = smul.addr %s585, 8
        %s587 = scalar_lea.vmem %s4, %s586
        %p588 = pneg %p157
        %p589 = pneg %p154
        %p590 = scmp.lt.s32.totalorder %s32, 1
        %s591 = scalar_select %p590, %s32, 1
        %s592 = smul.addr %s591, 4
        %s593 = smul.addr %s592, 8
        %s594 = scalar_lea.vmem %s5, %s593
        %p595 = pneg %p183
        %p596 = pneg %p180
        %p597 = pneg %p204
        %p598 = pneg %p201
        %p599 = pneg %p225
        %p600 = pneg %p222
        %p601 = pneg %p246
        %p602 = pneg %p243
        %p603 = pneg %p267
        %p604 = pneg %p264
        %p605 = pneg %p288
        %p606 = pneg %p285
        %p607 = pneg %p309
        %p608 = pneg %p306
        %p609 = pneg %p330
        %p610 = pneg %p327
        %p611 = pneg %p351
        %p612 = pneg %p348
        %p613 = pneg %p372
        %p614 = pneg %p369
        %p615 = pneg %p393
        %p616 = pneg %p390
        %p617 = pneg %p414
        %p618 = pneg %p411
        %p619 = pneg %p435
        %p620 = pneg %p432
        %p621 = pneg %p461
        %p622 = pneg %p458
        %s623 = sand.u32 %s448, 1
        %s624 = scalar_lea.sflag [#allocation7], %s623
        %s625 = sand.u32 %s448, 1
        %s626 = smul.addr %s625, 2
        %s627 = scalar_lea.vmem [#allocation6], %s626
        %p628 = scmp.lt.s32.totalorder %s32, 1
        %s629 = scalar_select %p628, %s32, 1
        %s630 = scalar_lea.vmem %s0, %s629
        %p631 = scmp.lt.s32.totalorder %s32, 1
        %s632 = scalar_select %p631, %s32, 1
        %s633 = scalar_lea.vmem %s1, %s632
        %p634 = scmp.lt.s32.totalorder %s32, 1
        %s635 = scalar_select %p634, %s32, 1
        %s636 = scalar_lea.vmem %s2, %s635
        %p637 = scmp.lt.s32.totalorder %s32, 1
        %s638 = scalar_select %p637, %s32, 1
        %s639 = scalar_lea.vmem %s3, %s638
        %p640 = scmp.lt.s32.totalorder %s32, 1
        %s641 = scalar_select %p640, %s32, 1
        %s642 = smul.addr %s641, 2
        %s643 = smul.addr %s642, 8
        %s644 = scalar_lea.vmem %s4, %s643
        %p645 = scmp.lt.s32.totalorder %s32, 1
        %s646 = scalar_select %p645, %s32, 1
        %s647 = smul.addr %s646, 4
        %s648 = smul.addr %s647, 8
        %s649 = scalar_lea.vmem %s5, %s648
        %v651 = vld [vmem:[%s630] sm:$0x1]
        %v652 = vld [vmem:[%s633] sm:$0x1]
        %v653 = vsub.f32 %v651, %v652
        %v654 = vmax.f32 %v653, 0.0
        %v655 = vld [vmem:[%s636] sm:$0x1]
        %v656 = vld [vmem:[%s639] sm:$0x1]
        %v657 = vsub.f32 %v655, %v656
        %v658 = vmax.f32 %v657, 0.0
        %v659 = vld [vmem:[%s9] sm:$0xf]
        %v660 = vld [vmem:[%s9 + $0x4] sm:$0xf]
        %v661 = vld [vmem:[%s9 + $0x8] sm:$0xf]
        %v662 = vld [vmem:[%s9 + $0xc] sm:$0xf]
        %v663 = vld [vmem:[%s9 + $0x10] sm:$0xf]
        %v664 = vld [vmem:[%s9 + $0x14] sm:$0xf]
        %v665 = vld [vmem:[%s9 + $0x18] sm:$0xf]
        %v666 = vld [vmem:[%s9 + $0x1c] sm:$0xf]
        %v667 = vld [vmem:[%s9 + $0x20] sm:$0xf]
        %v668 = vld [vmem:[%s9 + $0x24] sm:$0xf]
        %v669 = vld [vmem:[%s9 + $0x28] sm:$0xf]
        %v670 = vld [vmem:[%s9 + $0x2c] sm:$0xf]
        %v671 = vld [vmem:[%s9 + $0x30] sm:$0xf]
        %v672 = vld [vmem:[%s9 + $0x34] sm:$0xf]
        %v673 = vld [vmem:[%s9 + $0x38] sm:$0xf]
        %v674 = vld [vmem:[%s9 + $0x3c] sm:$0xf]
        %v675 = vld [vmem:[%s6] sm:$0x1]
        %v676 = vld [vmem:[%s7] sm:$0x1]
        %v677 = vld [vmem:[%s8] sm:$0x1]
        %v678 = vld [vmem:[%s10] sm:$0x1]
        %v679 = vld [vmem:[%s644] sm:$0xff]
        %v680 = vld [vmem:[%s644 + $0x8] sm:$0xff]
        %v681 = vpack.c.bf16 %v680, %v679
        %v682 = vpack.c.bf16 %v677, %v677
        %v684 = vpack.i.b16 %v682, %v682
        %v686 = vlaneseq
        %v687 = vshrl.u32 %v686, 7
        %v688 = vsub.s32 0, %v687
        %v689 = vrot.slane %v684, %v688
        %v690 = vmul.bf16 %v681, %v689
        %v691 = vpack.c.bf16 %v676, %v676
        %vm692 = vcmask 261120
        %v694 = vsel %vm692, %v691, 0
        %v697 = vsel %vm692, %v681, 0
        %699 = vmatprep.subr.bf16.mxu0 0
        %700 = vmatpush1.bf16.xpose.msra.mxu0 %v697
        %701 = vmatprep.subr.bf16.mxu0 0
        %702 = vmatpush1.bf16.xpose.msra.mxu0 0
        %703 = vmatprep.subr.bf16.mxu0 0
        %704 = vmatpush1.bf16.xpose.msra.mxu0 0
        %705 = vmatprep.subr.bf16.mxu0 0
        %706 = vmatpush1.bf16.xpose.msra.mxu0 0
        %707 = vmatprep.subr.bf16.mxu0 0
        %708 = vmatpush1.bf16.xpose.msra.mxu0 0
        %709 = vmatprep.subr.bf16.mxu0 0
        %710 = vmatpush1.bf16.xpose.msra.mxu0 0
        %711 = vmatprep.subr.bf16.mxu0 0
        %712 = vmatpush1.bf16.xpose.msra.mxu0 0
        %713 = vmatprep.subr.bf16.mxu0 0
        %714 = vmatpush1.bf16.xpose.msra.mxu0 0
        %715 = vmatprep.subr.bf16.mxu0 0
        %716 = vmatpush1.bf16.xpose.msra.mxu0 0
        %717 = vmatprep.subr.bf16.mxu0 0
        %718 = vmatpush1.bf16.xpose.msra.mxu0 0
        %719 = vmatprep.subr.bf16.mxu0 0
        %720 = vmatpush1.bf16.xpose.msra.mxu0 0
        %721 = vmatprep.subr.bf16.mxu0 0
        %722 = vmatpush1.bf16.xpose.msra.mxu0 0
        %723 = vmatprep.subr.bf16.mxu0 0
        %724 = vmatpush1.bf16.xpose.msra.mxu0 0
        %725 = vmatprep.subr.bf16.mxu0 0
        %726 = vmatpush1.bf16.xpose.msra.mxu0 0
        %727 = vmatprep.subr.bf16.mxu0 0
        %728 = vmatpush1.bf16.xpose.msra.mxu0 0
        %729 = vmatprep.subr.bf16.mxu0 0
        %730 = vmatpush1.bf16.xpose.msra.mxu0 0
        %731 = vmatprep.mubr.bf16.mxu0 0
        %732 = vmatmul.mubr.bf16.gmra.mrb[0].mxu0 %v694
        %v733 = vpop.f32.mrb[0].mxu0
        %v734 = vadd.f32 0.0, %v733
        %v735 = vpop.f32.mrb[0].mxu0
        %v736 = vpop.f32.mrb[0].mxu0
        %v737 = vpop.f32.mrb[0].mxu0
        %738 = vdwg.mxu0
        %v739 = vsub.f32 1.0, %v654
        %v740 = vmul.f32 %v739, 1e+30
        %v741 = vsub.f32 %v734, %v740
        %v742 = vld [vmem:[%s649] sm:$0xff]
        %v743 = vld [vmem:[%s649 + $0x8] sm:$0xff]
        %v744 = vpack.c.bf16 %v743, %v742
        %v745 = vlaneseq
        %v746 = vshrl.u32 %v745, 7
        %v747 = vsub.s32 0, %v746
        %v748 = vrot.slane %v741, %v747
        %v750 = vsel %vm692, %v744, 0
        %v753 = vsel %vm692, %v690, 0
        %755 = vmatprep.subr.bf16.mxu0 0
        %756 = vmatpush1.bf16.xpose.msra.mxu0 %v753
        %757 = vmatprep.subr.bf16.mxu0 0
        %758 = vmatpush1.bf16.xpose.msra.mxu0 0
        %759 = vmatprep.subr.bf16.mxu0 0
        %760 = vmatpush1.bf16.xpose.msra.mxu0 0
        %761 = vmatprep.subr.bf16.mxu0 0
        %762 = vmatpush1.bf16.xpose.msra.mxu0 0
        %763 = vmatprep.subr.bf16.mxu0 0
        %764 = vmatpush1.bf16.xpose.msra.mxu0 0
        %765 = vmatprep.subr.bf16.mxu0 0
        %766 = vmatpush1.bf16.xpose.msra.mxu0 0
        %767 = vmatprep.subr.bf16.mxu0 0
        %768 = vmatpush1.bf16.xpose.msra.mxu0 0
        %769 = vmatprep.subr.bf16.mxu0 0
        %770 = vmatpush1.bf16.xpose.msra.mxu0 0
        %771 = vmatprep.subr.bf16.mxu0 0
        %772 = vmatpush1.bf16.xpose.msra.mxu0 0
        %773 = vmatprep.subr.bf16.mxu0 0
        %774 = vmatpush1.bf16.xpose.msra.mxu0 0
        %775 = vmatprep.subr.bf16.mxu0 0
        %776 = vmatpush1.bf16.xpose.msra.mxu0 0
        %777 = vmatprep.subr.bf16.mxu0 0
        %778 = vmatpush1.bf16.xpose.msra.mxu0 0
        %779 = vmatprep.subr.bf16.mxu0 0
        %780 = vmatpush1.bf16.xpose.msra.mxu0 0
        %781 = vmatprep.subr.bf16.mxu0 0
        %782 = vmatpush1.bf16.xpose.msra.mxu0 0
        %783 = vmatprep.subr.bf16.mxu0 0
        %784 = vmatpush1.bf16.xpose.msra.mxu0 0
        %785 = vmatprep.subr.bf16.mxu0 0
        %786 = vmatpush1.bf16.xpose.msra.mxu0 0
        %787 = vmatprep.mubr.bf16.mxu0 0
        %788 = vmatmul.mubr.bf16.gmra.mrb[0].mxu0 %v750
        %v789 = vpop.f32.mrb[0].mxu0
        %v790 = vadd.f32 %v748, %v789
        %v791 = vpop.f32.mrb[0].mxu0
        %v792 = vpop.f32.mrb[0].mxu0
        %v793 = vadd.f32 %v748, %v792
        %v794 = vpop.f32.mrb[0].mxu0
        %795 = vdwg.mxu0
        %vm796 = vcmask 130048
        %v797 = vsel %vm796, %v790, -inf
        %798 = vmax.xlane.f32.xlu0 %v797
        %v799 = vpop.xlane.xlu0 %798
        %v800 = vsel %vm796, %v793, -inf
        %801 = vmax.xlane.f32.xlu0 %v800
        %v802 = vpop.xlane.xlu0 %801
        %v803 = vsub.f32 %v790, %v799
        %v804 = vsub.f32 %v793, %v802
        %v805 = vmul.f32 %v803, 1.442695
        %v806 = vpow.pop %v805
        %v807 = vmul.f32 %v804, 1.442695
        %v808 = vpow.pop %v807
        %v809 = vsel %vm796, %v806, 0.0
        %810 = vadd.xlane.f32.xlu0 %v809
        %v811 = vpop.xlane.xlu0 %810
        %v812 = vsel %vm796, %v808, 0.0
        %813 = vadd.xlane.f32.xlu0 %v812
        %v814 = vpop.xlane.xlu0 %813
        %v815 = vpack.c.bf16 %v808, %v806
        %v817 = vsel %vm796, %v815, 0
        %819 = vmatprep.subr.bf16.mxu0 0
        %820 = vmatpush1.bf16.msra.mxu0 %v681
        %821 = vmatprep.subr.bf16.mxu0 0
        %822 = vmatpush1.bf16.msra.mxu0 0
        %823 = vmatprep.subr.bf16.mxu0 0
        %824 = vmatpush1.bf16.msra.mxu0 0
        %825 = vmatprep.subr.bf16.mxu0 0
        %826 = vmatpush1.bf16.msra.mxu0 0
        %827 = vmatprep.subr.bf16.mxu0 0
        %828 = vmatpush1.bf16.msra.mxu0 0
        %829 = vmatprep.subr.bf16.mxu0 0
        %830 = vmatpush1.bf16.msra.mxu0 0
        %831 = vmatprep.subr.bf16.mxu0 0
        %832 = vmatpush1.bf16.msra.mxu0 0
        %833 = vmatprep.subr.bf16.mxu0 0
        %834 = vmatpush1.bf16.msra.mxu0 0
        %835 = vmatprep.subr.bf16.mxu0 0
        %836 = vmatpush1.bf16.msra.mxu0 0
        %837 = vmatprep.subr.bf16.mxu0 0
        %838 = vmatpush1.bf16.msra.mxu0 0
        %839 = vmatprep.subr.bf16.mxu0 0
        %840 = vmatpush1.bf16.msra.mxu0 0
        %841 = vmatprep.subr.bf16.mxu0 0
        %842 = vmatpush1.bf16.msra.mxu0 0
        %843 = vmatprep.subr.bf16.mxu0 0
        %844 = vmatpush1.bf16.msra.mxu0 0
        %845 = vmatprep.subr.bf16.mxu0 0
        %846 = vmatpush1.bf16.msra.mxu0 0
        %847 = vmatprep.subr.bf16.mxu0 0
        %848 = vmatpush1.bf16.msra.mxu0 0
        %849 = vmatprep.subr.bf16.mxu0 0
        %850 = vmatpush1.bf16.msra.mxu0 0
        %851 = vmatprep.mubr.bf16.mxu0 0
        %852 = vmatmul.mubr.bf16.gmra.mrb[0].mxu0 %v817
        %v853 = vpop.f32.mrb[0].mxu0
        %v854 = vadd.f32 0.0, %v853
        %v855 = vpop.f32.mrb[0].mxu0
        %v856 = vpop.f32.mrb[0].mxu0
        %v857 = vadd.f32 0.0, %v856
        %v858 = vpop.f32.mrb[0].mxu0
        %859 = vdwg.mxu0
        %v860 = vrcp.pop %v811
        %v861 = vrcp.pop %v814
        %v862 = vmul.f32 %v854, %v860
        %v863 = vmul.f32 %v857, %v861
        %v864 = vpack.c.bf16 %v863, %v862
        %v869 = vunpack.c.l.b16 %v663
        %v870 = vunpack.c.l.b16 %v664
        %v871 = vunpack.c.l.b16 %v665
        %v872 = vunpack.c.l.b16 %v666
        %v873 = vpack.c.b16 %v870, %v869
        %v874 = vpack.c.b16 %v872, %v871
        %v878 = vsel %vm692, %v864, 0
        %880 = vmatprep.subr.bf16.mxu0 0
        %881 = vmatpush1.bf16.msra.mxu0 %v873
        %882 = vmatprep.subr.bf16.mxu0 0
        %883 = vmatpush1.bf16.msra.mxu0 %v874
        %884 = vmatprep.subr.bf16.mxu0 0
        %885 = vmatpush1.bf16.msra.mxu0 0
        %886 = vmatprep.subr.bf16.mxu0 0
        %887 = vmatpush1.bf16.msra.mxu0 0
        %888 = vmatprep.subr.bf16.mxu0 0
        %889 = vmatpush1.bf16.msra.mxu0 0
        %890 = vmatprep.subr.bf16.mxu0 0
        %891 = vmatpush1.bf16.msra.mxu0 0
        %892 = vmatprep.subr.bf16.mxu0 0
        %893 = vmatpush1.bf16.msra.mxu0 0
        %894 = vmatprep.subr.bf16.mxu0 0
        %895 = vmatpush1.bf16.msra.mxu0 0
        %896 = vmatprep.subr.bf16.mxu0 0
        %897 = vmatpush1.bf16.msra.mxu0 0
        %898 = vmatprep.subr.bf16.mxu0 0
        %899 = vmatpush1.bf16.msra.mxu0 0
        %900 = vmatprep.subr.bf16.mxu0 0
        %901 = vmatpush1.bf16.msra.mxu0 0
        %902 = vmatprep.subr.bf16.mxu0 0
        %903 = vmatpush1.bf16.msra.mxu0 0
        %904 = vmatprep.subr.bf16.mxu0 0
        %905 = vmatpush1.bf16.msra.mxu0 0
        %906 = vmatprep.subr.bf16.mxu0 0
        %907 = vmatpush1.bf16.msra.mxu0 0
        %908 = vmatprep.subr.bf16.mxu0 0
        %909 = vmatpush1.bf16.msra.mxu0 0
        %910 = vmatprep.subr.bf16.mxu0 0
        %911 = vmatpush1.bf16.msra.mxu0 0
        %912 = vmatprep.mubr.bf16.mxu0 0
        %913 = vmatmul.mubr.bf16.gmra.mrb[0].mxu0 %v878
        %v914 = vpop.f32.mrb[0].mxu0
        %v915 = vadd.f32 0.0, %v914
        %v916 = vpop.f32.mrb[0].mxu0
        %v917 = vpop.f32.mrb[0].mxu0
        %v918 = vadd.f32 0.0, %v917
        %v919 = vpop.f32.mrb[0].mxu0
        %920 = vdwg.mxu0
        %v925 = vunpack.c.l.b16 %v659
        %v926 = vunpack.c.l.b16 %v660
        %v927 = vunpack.c.l.b16 %v661
        %v928 = vunpack.c.l.b16 %v662
        %v929 = vpack.c.b16 %v926, %v925
        %v930 = vpack.c.b16 %v928, %v927
        %933 = vmatprep.subr.bf16.mxu0 0
        %934 = vmatpush1.bf16.msra.mxu0 %v929
        %935 = vmatprep.subr.bf16.mxu0 0
        %936 = vmatpush1.bf16.msra.mxu0 %v930
        %937 = vmatprep.subr.bf16.mxu0 0
        %938 = vmatpush1.bf16.msra.mxu0 0
        %939 = vmatprep.subr.bf16.mxu0 0
        %940 = vmatpush1.bf16.msra.mxu0 0
        %941 = vmatprep.subr.bf16.mxu0 0
        %942 = vmatpush1.bf16.msra.mxu0 0
        %943 = vmatprep.subr.bf16.mxu0 0
        %944 = vmatpush1.bf16.msra.mxu0 0
        %945 = vmatprep.subr.bf16.mxu0 0
        %946 = vmatpush1.bf16.msra.mxu0 0
        %947 = vmatprep.subr.bf16.mxu0 0
        %948 = vmatpush1.bf16.msra.mxu0 0
        %949 = vmatprep.subr.bf16.mxu0 0
        %950 = vmatpush1.bf16.msra.mxu0 0
        %951 = vmatprep.subr.bf16.mxu0 0
        %952 = vmatpush1.bf16.msra.mxu0 0
        %953 = vmatprep.subr.bf16.mxu0 0
        %954 = vmatpush1.bf16.msra.mxu0 0
        %955 = vmatprep.subr.bf16.mxu0 0
        %956 = vmatpush1.bf16.msra.mxu0 0
        %957 = vmatprep.subr.bf16.mxu0 0
        %958 = vmatpush1.bf16.msra.mxu0 0
        %959 = vmatprep.subr.bf16.mxu0 0
        %960 = vmatpush1.bf16.msra.mxu0 0
        %961 = vmatprep.subr.bf16.mxu0 0
        %962 = vmatpush1.bf16.msra.mxu0 0
        %963 = vmatprep.subr.bf16.mxu0 0
        %964 = vmatpush1.bf16.msra.mxu0 0
        %965 = vmatprep.mubr.bf16.mxu0 0
        %966 = vmatmul.mubr.bf16.gmra.mrb[0].mxu0 %v750
        %v967 = vpop.f32.mrb[0].mxu0
        %v968 = vadd.f32 %v915, %v967
        %v969 = vpop.f32.mrb[0].mxu0
        %v970 = vpop.f32.mrb[0].mxu0
        %v971 = vadd.f32 %v918, %v970
        %v972 = vpop.f32.mrb[0].mxu0
        %973 = vdwg.mxu0
        %v974 = vmul.f32 %v742, %v862
        %v975 = vmul.f32 %v743, %v863
        %v976 = vpack.c.bf16 %v975, %v974
        %v981 = vunpack.c.l.b16 %v667
        %v982 = vunpack.c.l.b16 %v668
        %v983 = vunpack.c.l.b16 %v669
        %v984 = vunpack.c.l.b16 %v670
        %v985 = vpack.c.b16 %v982, %v981
        %v986 = vpack.c.b16 %v984, %v983
        %v990 = vsel %vm692, %v976, 0
        %992 = vmatprep.subr.bf16.mxu0 0
        %993 = vmatpush1.bf16.msra.mxu0 %v985
        %994 = vmatprep.subr.bf16.mxu0 0
        %995 = vmatpush1.bf16.msra.mxu0 %v986
        %996 = vmatprep.subr.bf16.mxu0 0
        %997 = vmatpush1.bf16.msra.mxu0 0
        %998 = vmatprep.subr.bf16.mxu0 0
        %999 = vmatpush1.bf16.msra.mxu0 0
        %1000 = vmatprep.subr.bf16.mxu0 0
        %1001 = vmatpush1.bf16.msra.mxu0 0
        %1002 = vmatprep.subr.bf16.mxu0 0
        %1003 = vmatpush1.bf16.msra.mxu0 0
        %1004 = vmatprep.subr.bf16.mxu0 0
        %1005 = vmatpush1.bf16.msra.mxu0 0
        %1006 = vmatprep.subr.bf16.mxu0 0
        %1007 = vmatpush1.bf16.msra.mxu0 0
        %1008 = vmatprep.subr.bf16.mxu0 0
        %1009 = vmatpush1.bf16.msra.mxu0 0
        %1010 = vmatprep.subr.bf16.mxu0 0
        %1011 = vmatpush1.bf16.msra.mxu0 0
        %1012 = vmatprep.subr.bf16.mxu0 0
        %1013 = vmatpush1.bf16.msra.mxu0 0
        %1014 = vmatprep.subr.bf16.mxu0 0
        %1015 = vmatpush1.bf16.msra.mxu0 0
        %1016 = vmatprep.subr.bf16.mxu0 0
        %1017 = vmatpush1.bf16.msra.mxu0 0
        %1018 = vmatprep.subr.bf16.mxu0 0
        %1019 = vmatpush1.bf16.msra.mxu0 0
        %1020 = vmatprep.subr.bf16.mxu0 0
        %1021 = vmatpush1.bf16.msra.mxu0 0
        %1022 = vmatprep.subr.bf16.mxu0 0
        %1023 = vmatpush1.bf16.msra.mxu0 0
        %1024 = vmatprep.mubr.bf16.mxu0 0
        %1025 = vmatmul.mubr.bf16.gmra.mrb[0].mxu0 %v990
        %v1026 = vpop.f32.mrb[0].mxu0
        %v1027 = vadd.f32 0.0, %v1026
        %v1028 = vpop.f32.mrb[0].mxu0
        %v1029 = vpop.f32.mrb[0].mxu0
        %v1030 = vadd.f32 0.0, %v1029
        %v1031 = vpop.f32.mrb[0].mxu0
        %1032 = vdwg.mxu0
        %v1033 = vadd.f32 %v968, %v1027
        %v1034 = vadd.f32 %v971, %v1030
        %1035 = vst.msk [vmem:[#allocation2] sm:$0xff] %vm692, %v1033
        %1036 = vst.msk [vmem:[#allocation2 + $0x8] sm:$0xff] %vm692, %v1034
        %1037 = vst.msk [vmem:[#allocation4] sm:$0xff] %vm692, %v864
        %v1039 = vlaneseq
        %v1040 = vshrl.u32 %v1039, 7
        %v1041 = vsub.s32 0, %v1040
        %v1042 = vrot.slane %v675, %v1041
        %v1044 = vmul.f32 %v742, %v1042
        %v1045 = vmul.f32 %v743, %v1042
        %v1046 = vsel %vm692, %v1044, 0.0
        %1047 = vadd.xlane.f32.xlu0 %v1046
        %v1048 = vpop.xlane.xlu0 %1047
        %v1049 = vsel %vm692, %v1045, 0.0
        %1050 = vadd.xlane.f32.xlu0 %v1049
        %v1051 = vpop.xlane.xlu0 %1050
        %v1052 = vadd.f32 %v799, %v1048
        %v1053 = vadd.f32 %v802, %v1051
        %vm1054 = vcmask 7168
        %1055 = vst.msk [vmem:[#allocation5] sm:$0xff] %vm1054, %v1052
        %1056 = vst.msk [vmem:[#allocation5 + $0x8] sm:$0xff] %vm1054, %v1053
        %s1057 = scalar_lea.vmem %s649, 16
        %v1058 = vld [vmem:[%s1057] sm:$0xff]
        %v1059 = vld [vmem:[%s1057 + $0x8] sm:$0xff]
        %v1060 = vpack.c.bf16 %v1059, %v1058
        %v1062 = vsel %vm692, %v1060, 0
        %1064 = vmatprep.subr.bf16.mxu0 0
        %1065 = vmatpush1.bf16.xpose.msra.mxu0 %v753
        %1066 = vmatprep.subr.bf16.mxu0 0
        %1067 = vmatpush1.bf16.xpose.msra.mxu0 0
        %1068 = vmatprep.subr.bf16.mxu0 0
        %1069 = vmatpush1.bf16.xpose.msra.mxu0 0
        %1070 = vmatprep.subr.bf16.mxu0 0
        %1071 = vmatpush1.bf16.xpose.msra.mxu0 0
        %1072 = vmatprep.subr.bf16.mxu0 0
        %1073 = vmatpush1.bf16.xpose.msra.mxu0 0
        %1074 = vmatprep.subr.bf16.mxu0 0
        %1075 = vmatpush1.bf16.xpose.msra.mxu0 0
        %1076 = vmatprep.subr.bf16.mxu0 0
        %1077 = vmatpush1.bf16.xpose.msra.mxu0 0
        %1078 = vmatprep.subr.bf16.mxu0 0
        %1079 = vmatpush1.bf16.xpose.msra.mxu0 0
        %1080 = vmatprep.subr.bf16.mxu0 0
        %1081 = vmatpush1.bf16.xpose.msra.mxu0 0
        %1082 = vmatprep.subr.bf16.mxu0 0
        %1083 = vmatpush1.bf16.xpose.msra.mxu0 0
        %1084 = vmatprep.subr.bf16.mxu0 0
        %1085 = vmatpush1.bf16.xpose.msra.mxu0 0
        %1086 = vmatprep.subr.bf16.mxu0 0
        %1087 = vmatpush1.bf16.xpose.msra.mxu0 0
        %1088 = vmatprep.subr.bf16.mxu0 0
        %1089 = vmatpush1.bf16.xpose.msra.mxu0 0
        %1090 = vmatprep.subr.bf16.mxu0 0
        %1091 = vmatpush1.bf16.xpose.msra.mxu0 0
        %1092 = vmatprep.subr.bf16.mxu0 0
        %1093 = vmatpush1.bf16.xpose.msra.mxu0 0
        %1094 = vmatprep.subr.bf16.mxu0 0
        %1095 = vmatpush1.bf16.xpose.msra.mxu0 0
        %1096 = vmatprep.mubr.bf16.mxu0 0
        %1097 = vmatmul.mubr.bf16.gmra.mrb[0].mxu0 %v1062
        %v1098 = vpop.f32.mrb[0].mxu0
        %v1099 = vadd.f32 %v748, %v1098
        %v1100 = vpop.f32.mrb[0].mxu0
        %v1101 = vpop.f32.mrb[0].mxu0
        %v1102 = vadd.f32 %v748, %v1101
        %v1103 = vpop.f32.mrb[0].mxu0
        %1104 = vdwg.mxu0
        %v1105 = vsel %vm796, %v1099, -inf
        %1106 = vmax.xlane.f32.xlu0 %v1105
        %v1107 = vpop.xlane.xlu0 %1106
        %v1108 = vsel %vm796, %v1102, -inf
        %1109 = vmax.xlane.f32.xlu0 %v1108
        %v1110 = vpop.xlane.xlu0 %1109
        %v1111 = vsub.f32 %v1099, %v1107
        %v1112 = vsub.f32 %v1102, %v1110
        %v1113 = vmul.f32 %v1111, 1.442695
        %v1114 = vpow.pop %v1113
        %v1115 = vmul.f32 %v1112, 1.442695
        %v1116 = vpow.pop %v1115
        %v1117 = vsel %vm796, %v1114, 0.0
        %1118 = vadd.xlane.f32.xlu0 %v1117
        %v1119 = vpop.xlane.xlu0 %1118
        %v1120 = vsel %vm796, %v1116, 0.0
        %1121 = vadd.xlane.f32.xlu0 %v1120
        %v1122 = vpop.xlane.xlu0 %1121
        %v1123 = vpack.c.bf16 %v1116, %v1114
        %v1125 = vsel %vm796, %v1123, 0
        %1127 = vmatprep.subr.bf16.mxu0 0
        %1128 = vmatpush1.bf16.msra.mxu0 %v681
        %1129 = vmatprep.subr.bf16.mxu0 0
        %1130 = vmatpush1.bf16.msra.mxu0 0
        %1131 = vmatprep.subr.bf16.mxu0 0
        %1132 = vmatpush1.bf16.msra.mxu0 0
        %1133 = vmatprep.subr.bf16.mxu0 0
        %1134 = vmatpush1.bf16.msra.mxu0 0
        %1135 = vmatprep.subr.bf16.mxu0 0
        %1136 = vmatpush1.bf16.msra.mxu0 0
        %1137 = vmatprep.subr.bf16.mxu0 0
        %1138 = vmatpush1.bf16.msra.mxu0 0
        %1139 = vmatprep.subr.bf16.mxu0 0
        %1140 = vmatpush1.bf16.msra.mxu0 0
        %1141 = vmatprep.subr.bf16.mxu0 0
        %1142 = vmatpush1.bf16.msra.mxu0 0
        %1143 = vmatprep.subr.bf16.mxu0 0
        %1144 = vmatpush1.bf16.msra.mxu0 0
        %1145 = vmatprep.subr.bf16.mxu0 0
        %1146 = vmatpush1.bf16.msra.mxu0 0
        %1147 = vmatprep.subr.bf16.mxu0 0
        %1148 = vmatpush1.bf16.msra.mxu0 0
        %1149 = vmatprep.subr.bf16.mxu0 0
        %1150 = vmatpush1.bf16.msra.mxu0 0
        %1151 = vmatprep.subr.bf16.mxu0 0
        %1152 = vmatpush1.bf16.msra.mxu0 0
        %1153 = vmatprep.subr.bf16.mxu0 0
        %1154 = vmatpush1.bf16.msra.mxu0 0
        %1155 = vmatprep.subr.bf16.mxu0 0
        %1156 = vmatpush1.bf16.msra.mxu0 0
        %1157 = vmatprep.subr.bf16.mxu0 0
        %1158 = vmatpush1.bf16.msra.mxu0 0
        %1159 = vmatprep.mubr.bf16.mxu0 0
        %1160 = vmatmul.mubr.bf16.gmra.mrb[0].mxu0 %v1125
        %v1161 = vpop.f32.mrb[0].mxu0
        %v1162 = vadd.f32 0.0, %v1161
        %v1163 = vpop.f32.mrb[0].mxu0
        %v1164 = vpop.f32.mrb[0].mxu0
        %v1165 = vadd.f32 0.0, %v1164
        %v1166 = vpop.f32.mrb[0].mxu0
        %1167 = vdwg.mxu0
        %v1168 = vrcp.pop %v1119
        %v1169 = vrcp.pop %v1122
        %v1170 = vmul.f32 %v1162, %v1168
        %v1171 = vmul.f32 %v1165, %v1169
        %v1172 = vpack.c.bf16 %v1171, %v1170
        %v1174 = vsel %vm692, %v1172, 0
        %1176 = vmatprep.subr.bf16.mxu0 0
        %1177 = vmatpush1.bf16.msra.mxu0 %v873
        %1178 = vmatprep.subr.bf16.mxu0 0
        %1179 = vmatpush1.bf16.msra.mxu0 %v874
        %1180 = vmatprep.subr.bf16.mxu0 0
        %1181 = vmatpush1.bf16.msra.mxu0 0
        %1182 = vmatprep.subr.bf16.mxu0 0
        %1183 = vmatpush1.bf16.msra.mxu0 0
        %1184 = vmatprep.subr.bf16.mxu0 0
        %1185 = vmatpush1.bf16.msra.mxu0 0
        %1186 = vmatprep.subr.bf16.mxu0 0
        %1187 = vmatpush1.bf16.msra.mxu0 0
        %1188 = vmatprep.subr.bf16.mxu0 0
        %1189 = vmatpush1.bf16.msra.mxu0 0
        %1190 = vmatprep.subr.bf16.mxu0 0
        %1191 = vmatpush1.bf16.msra.mxu0 0
        %1192 = vmatprep.subr.bf16.mxu0 0
        %1193 = vmatpush1.bf16.msra.mxu0 0
        %1194 = vmatprep.subr.bf16.mxu0 0
        %1195 = vmatpush1.bf16.msra.mxu0 0
        %1196 = vmatprep.subr.bf16.mxu0 0
        %1197 = vmatpush1.bf16.msra.mxu0 0
        %1198 = vmatprep.subr.bf16.mxu0 0
        %1199 = vmatpush1.bf16.msra.mxu0 0
        %1200 = vmatprep.subr.bf16.mxu0 0
        %1201 = vmatpush1.bf16.msra.mxu0 0
        %1202 = vmatprep.subr.bf16.mxu0 0
        %1203 = vmatpush1.bf16.msra.mxu0 0
        %1204 = vmatprep.subr.bf16.mxu0 0
        %1205 = vmatpush1.bf16.msra.mxu0 0
        %1206 = vmatprep.subr.bf16.mxu0 0
        %1207 = vmatpush1.bf16.msra.mxu0 0
        %1208 = vmatprep.mubr.bf16.mxu0 0
        %1209 = vmatmul.mubr.bf16.gmra.mrb[0].mxu0 %v1174
        %v1210 = vpop.f32.mrb[0].mxu0
        %v1211 = vadd.f32 0.0, %v1210
        %v1212 = vpop.f32.mrb[0].mxu0
        %v1213 = vpop.f32.mrb[0].mxu0
        %v1214 = vadd.f32 0.0, %v1213
        %v1215 = vpop.f32.mrb[0].mxu0
        %1216 = vdwg.mxu0
        %1217 = vmatprep.subr.bf16.mxu0 0
        %1218 = vmatpush1.bf16.msra.mxu0 %v929
        %1219 = vmatprep.subr.bf16.mxu0 0
        %1220 = vmatpush1.bf16.msra.mxu0 %v930
        %1221 = vmatprep.subr.bf16.mxu0 0
        %1222 = vmatpush1.bf16.msra.mxu0 0
        %1223 = vmatprep.subr.bf16.mxu0 0
        %1224 = vmatpush1.bf16.msra.mxu0 0
        %1225 = vmatprep.subr.bf16.mxu0 0
        %1226 = vmatpush1.bf16.msra.mxu0 0
        %1227 = vmatprep.subr.bf16.mxu0 0
        %1228 = vmatpush1.bf16.msra.mxu0 0
        %1229 = vmatprep.subr.bf16.mxu0 0
        %1230 = vmatpush1.bf16.msra.mxu0 0
        %1231 = vmatprep.subr.bf16.mxu0 0
        %1232 = vmatpush1.bf16.msra.mxu0 0
        %1233 = vmatprep.subr.bf16.mxu0 0
        %1234 = vmatpush1.bf16.msra.mxu0 0
        %1235 = vmatprep.subr.bf16.mxu0 0
        %1236 = vmatpush1.bf16.msra.mxu0 0
        %1237 = vmatprep.subr.bf16.mxu0 0
        %1238 = vmatpush1.bf16.msra.mxu0 0
        %1239 = vmatprep.subr.bf16.mxu0 0
        %1240 = vmatpush1.bf16.msra.mxu0 0
        %1241 = vmatprep.subr.bf16.mxu0 0
        %1242 = vmatpush1.bf16.msra.mxu0 0
        %1243 = vmatprep.subr.bf16.mxu0 0
        %1244 = vmatpush1.bf16.msra.mxu0 0
        %1245 = vmatprep.subr.bf16.mxu0 0
        %1246 = vmatpush1.bf16.msra.mxu0 0
        %1247 = vmatprep.subr.bf16.mxu0 0
        %1248 = vmatpush1.bf16.msra.mxu0 0
        %1249 = vmatprep.mubr.bf16.mxu0 0
        %1250 = vmatmul.mubr.bf16.gmra.mrb[0].mxu0 %v1062
        %v1251 = vpop.f32.mrb[0].mxu0
        %v1252 = vadd.f32 %v1211, %v1251
        %v1253 = vpop.f32.mrb[0].mxu0
        %v1254 = vpop.f32.mrb[0].mxu0
        %v1255 = vadd.f32 %v1214, %v1254
        %v1256 = vpop.f32.mrb[0].mxu0
        %1257 = vdwg.mxu0
        %v1258 = vmul.f32 %v1058, %v1170
        %v1259 = vmul.f32 %v1059, %v1171
        %v1260 = vpack.c.bf16 %v1259, %v1258
        %v1262 = vsel %vm692, %v1260, 0
        %1264 = vmatprep.subr.bf16.mxu0 0
        %1265 = vmatpush1.bf16.msra.mxu0 %v985
        %1266 = vmatprep.subr.bf16.mxu0 0
        %1267 = vmatpush1.bf16.msra.mxu0 %v986
        %1268 = vmatprep.subr.bf16.mxu0 0
        %1269 = vmatpush1.bf16.msra.mxu0 0
        %1270 = vmatprep.subr.bf16.mxu0 0
        %1271 = vmatpush1.bf16.msra.mxu0 0
        %1272 = vmatprep.subr.bf16.mxu0 0
        %1273 = vmatpush1.bf16.msra.mxu0 0
        %1274 = vmatprep.subr.bf16.mxu0 0
        %1275 = vmatpush1.bf16.msra.mxu0 0
        %1276 = vmatprep.subr.bf16.mxu0 0
        %1277 = vmatpush1.bf16.msra.mxu0 0
        %1278 = vmatprep.subr.bf16.mxu0 0
        %1279 = vmatpush1.bf16.msra.mxu0 0
        %1280 = vmatprep.subr.bf16.mxu0 0
        %1281 = vmatpush1.bf16.msra.mxu0 0
        %1282 = vmatprep.subr.bf16.mxu0 0
        %1283 = vmatpush1.bf16.msra.mxu0 0
        %1284 = vmatprep.subr.bf16.mxu0 0
        %1285 = vmatpush1.bf16.msra.mxu0 0
        %1286 = vmatprep.subr.bf16.mxu0 0
        %1287 = vmatpush1.bf16.msra.mxu0 0
        %1288 = vmatprep.subr.bf16.mxu0 0
        %1289 = vmatpush1.bf16.msra.mxu0 0
        %1290 = vmatprep.subr.bf16.mxu0 0
        %1291 = vmatpush1.bf16.msra.mxu0 0
        %1292 = vmatprep.subr.bf16.mxu0 0
        %1293 = vmatpush1.bf16.msra.mxu0 0
        %1294 = vmatprep.subr.bf16.mxu0 0
        %1295 = vmatpush1.bf16.msra.mxu0 0
        %1296 = vmatprep.mubr.bf16.mxu0 0
        %1297 = vmatmul.mubr.bf16.gmra.mrb[0].mxu0 %v1262
        %v1298 = vpop.f32.mrb[0].mxu0
        %v1299 = vadd.f32 0.0, %v1298
        %v1300 = vpop.f32.mrb[0].mxu0
        %v1301 = vpop.f32.mrb[0].mxu0
        %v1302 = vadd.f32 0.0, %v1301
        %v1303 = vpop.f32.mrb[0].mxu0
        %1304 = vdwg.mxu0
        %v1305 = vadd.f32 %v1252, %v1299
        %v1306 = vadd.f32 %v1255, %v1302
        %s1307 = scalar_lea.vmem [#allocation2], 16
        %1308 = vst.msk [vmem:[%s1307] sm:$0xff] %vm692, %v1305
        %1309 = vst.msk [vmem:[%s1307 + $0x8] sm:$0xff] %vm692, %v1306
        %s1310 = scalar_lea.vmem [#allocation4], 8
        %1311 = vst.msk [vmem:[%s1310] sm:$0xff] %vm692, %v1172
        %v1312 = vmul.f32 %v1058, %v1042
        %v1313 = vmul.f32 %v1059, %v1042
        %v1314 = vsel %vm692, %v1312, 0.0
        %1315 = vadd.xlane.f32.xlu0 %v1314
        %v1316 = vpop.xlane.xlu0 %1315
        %v1317 = vsel %vm692, %v1313, 0.0
        %1318 = vadd.xlane.f32.xlu0 %v1317
        %v1319 = vpop.xlane.xlu0 %1318
        %v1320 = vadd.f32 %v1107, %v1316
        %v1321 = vadd.f32 %v1110, %v1319
        %s1322 = scalar_lea.vmem [#allocation5], 16
        %1323 = vst.msk [vmem:[%s1322] sm:$0xff] %vm1054, %v1320
        %1324 = vst.msk [vmem:[%s1322 + $0x8] sm:$0xff] %vm1054, %v1321
        %v1325 = vld [vmem:[#allocation5] sm:$0xff]
        %v1326 = vld [vmem:[#allocation5 + $0x8] sm:$0xff]
        %v1327 = vld [vmem:[#allocation5 + $0x10] sm:$0xff]
        %v1328 = vld [vmem:[#allocation5 + $0x18] sm:$0xff]
        %v1329 = vsel %vm1054, %v1325, -inf
        %v1330 = vsel %vm1054, %v1326, -inf
        %v1331 = vsel %vm1054, %v1327, -inf
        %v1332 = vsel %vm1054, %v1328, -inf
        %v1333 = vmax.f32 %v1329, %v1330
        %v1334 = vmax.f32 %v1331, %v1332
        %v1335 = vmax.f32 %v1333, %v1334
        %v1336 = vrot.slane %v1335, 4
        %v1337 = vmax.f32 %v1335, %v1336
        %v1338 = vrot.slane %v1337, 2
        %v1339 = vmax.f32 %v1337, %v1338
        %v1340 = vrot.slane %v1339, 1
        %v1341 = vmax.f32 %v1339, %v1340
        %v1342 = vsub.f32 %v1325, %v1341
        %v1343 = vsub.f32 %v1326, %v1341
        %v1344 = vsub.f32 %v1327, %v1341
        %v1345 = vsub.f32 %v1328, %v1341
        %v1346 = vmul.f32 %v1342, 1.442695
        %v1347 = vpow.pop %v1346
        %v1348 = vmul.f32 %v1343, 1.442695
        %v1349 = vpow.pop %v1348
        %v1350 = vmul.f32 %v1344, 1.442695
        %v1351 = vpow.pop %v1350
        %v1352 = vmul.f32 %v1345, 1.442695
        %v1353 = vpow.pop %v1352
        %v1354 = vsel %vm1054, %v1347, 0.0
        %v1355 = vsel %vm1054, %v1349, 0.0
        %v1356 = vadd.f32 %v1354, %v1355
        %v1357 = vsel %vm1054, %v1351, 0.0
        %v1358 = vadd.f32 %v1356, %v1357
        %v1359 = vsel %vm1054, %v1353, 0.0
        %v1360 = vadd.f32 %v1358, %v1359
        %v1361 = vrot.slane %v1360, 4
        %v1362 = vadd.f32 %v1360, %v1361
        %v1363 = vrot.slane %v1362, 2
        %v1364 = vadd.f32 %v1362, %v1363
        %v1365 = vrot.slane %v1364, 1
        %v1366 = vadd.f32 %v1364, %v1365
        %v1367 = vld [vmem:[%s649] sm:$0xff]
        %v1368 = vld [vmem:[%s649 + $0x8] sm:$0xff]
        %v1369 = vld [vmem:[%s649 + $0x10] sm:$0xff]
        %v1370 = vld [vmem:[%s649 + $0x18] sm:$0xff]
        %1372 = vset.pattern.permute.xlu0 0
        %1373 = vperm.xlu0 %1372, %v1347
        %v1374 = vpop.permute.xlu0 %1373
        %1377 = vset.pattern.permute.xlu0 0
        %1378 = vperm.xlu0 %1377, %v1349
        %v1379 = vpop.permute.xlu0 %1378
        %1382 = vset.pattern.permute.xlu0 0
        %1383 = vperm.xlu0 %1382, %v1351
        %v1384 = vpop.permute.xlu0 %1383
        %1387 = vset.pattern.permute.xlu0 0
        %1388 = vperm.xlu0 %1387, %v1353
        %v1389 = vpop.permute.xlu0 %1388
        %v1391 = vmul.f32 %v1374, %v1367
        %v1392 = vmul.f32 %v1379, %v1368
        %v1393 = vmul.f32 %v1384, %v1369
        %v1394 = vmul.f32 %v1389, %v1370
        %v1395 = vsel %vm692, %v1391, 0.0
        %v1396 = vsel %vm692, %v1392, 0.0
        %v1397 = vadd.f32 %v1395, %v1396
        %v1398 = vsel %vm692, %v1393, 0.0
        %v1399 = vadd.f32 %v1397, %v1398
        %v1400 = vsel %vm692, %v1394, 0.0
        %v1401 = vadd.f32 %v1399, %v1400
        %v1402 = vrot.slane %v1401, 4
        %v1403 = vadd.f32 %v1401, %v1402
        %v1404 = vrot.slane %v1403, 2
        %v1405 = vadd.f32 %v1403, %v1404
        %v1406 = vrot.slane %v1405, 1
        %v1407 = vadd.f32 %v1405, %v1406
        %v1408 = vrcp.pop %v1366
        %1410 = vset.pattern.permute.xlu0 0
        %1411 = vperm.xlu0 %1410, %v1408
        %v1412 = vpop.permute.xlu0 %1411
        %v1414 = vmul.f32 %v1407, %v1412
        %v1415 = vld [vmem:[#allocation4] sm:$0xff]
        %v1416 = vunpack.c.l.bf16 %v1415
        %v1417 = vunpack.c.h.bf16 %v1415
        %v1418 = vmul.f32 %v1416, %v1414
        %v1419 = vmul.f32 %v1417, %v1414
        %v1420 = vpack.c.bf16 %v1419, %v1418
        %v1421 = vld [vmem:[#allocation2] sm:$0xff]
        %v1422 = vld [vmem:[#allocation2 + $0x8] sm:$0xff]
        %v1427 = vunpack.c.l.b16 %v671
        %v1428 = vunpack.c.l.b16 %v672
        %v1429 = vunpack.c.l.b16 %v673
        %v1430 = vunpack.c.l.b16 %v674
        %v1431 = vpack.c.b16 %v1428, %v1427
        %v1432 = vpack.c.b16 %v1430, %v1429
        %v1436 = vsel %vm692, %v1420, 0
        %1438 = vmatprep.subr.bf16.mxu0 0
        %1439 = vmatpush1.bf16.msra.mxu0 %v1431
        %1440 = vmatprep.subr.bf16.mxu0 0
        %1441 = vmatpush1.bf16.msra.mxu0 %v1432
        %1442 = vmatprep.subr.bf16.mxu0 0
        %1443 = vmatpush1.bf16.msra.mxu0 0
        %1444 = vmatprep.subr.bf16.mxu0 0
        %1445 = vmatpush1.bf16.msra.mxu0 0
        %1446 = vmatprep.subr.bf16.mxu0 0
        %1447 = vmatpush1.bf16.msra.mxu0 0
        %1448 = vmatprep.subr.bf16.mxu0 0
        %1449 = vmatpush1.bf16.msra.mxu0 0
        %1450 = vmatprep.subr.bf16.mxu0 0
        %1451 = vmatpush1.bf16.msra.mxu0 0
        %1452 = vmatprep.subr.bf16.mxu0 0
        %1453 = vmatpush1.bf16.msra.mxu0 0
        %1454 = vmatprep.subr.bf16.mxu0 0
        %1455 = vmatpush1.bf16.msra.mxu0 0
        %1456 = vmatprep.subr.bf16.mxu0 0
        %1457 = vmatpush1.bf16.msra.mxu0 0
        %1458 = vmatprep.subr.bf16.mxu0 0
        %1459 = vmatpush1.bf16.msra.mxu0 0
        %1460 = vmatprep.subr.bf16.mxu0 0
        %1461 = vmatpush1.bf16.msra.mxu0 0
        %1462 = vmatprep.subr.bf16.mxu0 0
        %1463 = vmatpush1.bf16.msra.mxu0 0
        %1464 = vmatprep.subr.bf16.mxu0 0
        %1465 = vmatpush1.bf16.msra.mxu0 0
        %1466 = vmatprep.subr.bf16.mxu0 0
        %1467 = vmatpush1.bf16.msra.mxu0 0
        %1468 = vmatprep.subr.bf16.mxu0 0
        %1469 = vmatpush1.bf16.msra.mxu0 0
        %1470 = vmatprep.mubr.bf16.mxu0 0
        %1471 = vmatmul.mubr.bf16.gmra.mrb[0].mxu0 %v1436
        %v1472 = vpop.f32.mrb[0].mxu0
        %v1473 = vadd.f32 0.0, %v1472
        %v1474 = vpop.f32.mrb[0].mxu0
        %v1475 = vpop.f32.mrb[0].mxu0
        %v1476 = vadd.f32 0.0, %v1475
        %v1477 = vpop.f32.mrb[0].mxu0
        %1478 = vdwg.mxu0
        %v1479 = vadd.f32 %v1421, %v1473
        %v1480 = vadd.f32 %v1422, %v1476
        %v1482 = vlaneseq
        %v1483 = vshrl.u32 %v1482, 7
        %v1484 = vsub.s32 0, %v1483
        %v1485 = vrot.slane %v678, %v1484
        %v1487 = vadd.f32 %v1479, %v1485
        %v1488 = vadd.f32 %v1480, %v1485
        %v1489 = vmax.f32 %v1487, 0.0
        %v1490 = vmax.f32 %v1488, 0.0
        %1491 = vst.msk [vmem:[#allocation2] sm:$0xff] %vm692, %v1489
        %1492 = vst.msk [vmem:[#allocation2 + $0x8] sm:$0xff] %vm692, %v1490
        %v1493 = vld [vmem:[%s1310] sm:$0xff]
        %v1494 = vunpack.c.l.bf16 %v1493
        %v1495 = vunpack.c.h.bf16 %v1493
        %v1496 = vmul.f32 %v1494, %v1414
        %v1497 = vmul.f32 %v1495, %v1414
        %v1498 = vpack.c.bf16 %v1497, %v1496
        %v1499 = vld [vmem:[%s1307] sm:$0xff]
        %v1500 = vld [vmem:[%s1307 + $0x8] sm:$0xff]
        %v1502 = vsel %vm692, %v1498, 0
        %1504 = vmatprep.subr.bf16.mxu0 0
        %1505 = vmatpush1.bf16.msra.mxu0 %v1431
        %1506 = vmatprep.subr.bf16.mxu0 0
        %1507 = vmatpush1.bf16.msra.mxu0 %v1432
        %1508 = vmatprep.subr.bf16.mxu0 0
        %1509 = vmatpush1.bf16.msra.mxu0 0
        %1510 = vmatprep.subr.bf16.mxu0 0
        %1511 = vmatpush1.bf16.msra.mxu0 0
        %1512 = vmatprep.subr.bf16.mxu0 0
        %1513 = vmatpush1.bf16.msra.mxu0 0
        %1514 = vmatprep.subr.bf16.mxu0 0
        %1515 = vmatpush1.bf16.msra.mxu0 0
        %1516 = vmatprep.subr.bf16.mxu0 0
        %1517 = vmatpush1.bf16.msra.mxu0 0
        %1518 = vmatprep.subr.bf16.mxu0 0
        %1519 = vmatpush1.bf16.msra.mxu0 0
        %1520 = vmatprep.subr.bf16.mxu0 0
        %1521 = vmatpush1.bf16.msra.mxu0 0
        %1522 = vmatprep.subr.bf16.mxu0 0
        %1523 = vmatpush1.bf16.msra.mxu0 0
        %1524 = vmatprep.subr.bf16.mxu0 0
        %1525 = vmatpush1.bf16.msra.mxu0 0
        %1526 = vmatprep.subr.bf16.mxu0 0
        %1527 = vmatpush1.bf16.msra.mxu0 0
        %1528 = vmatprep.subr.bf16.mxu0 0
        %1529 = vmatpush1.bf16.msra.mxu0 0
        %1530 = vmatprep.subr.bf16.mxu0 0
        %1531 = vmatpush1.bf16.msra.mxu0 0
        %1532 = vmatprep.subr.bf16.mxu0 0
        %1533 = vmatpush1.bf16.msra.mxu0 0
        %1534 = vmatprep.subr.bf16.mxu0 0
        %1535 = vmatpush1.bf16.msra.mxu0 0
        %1536 = vmatprep.mubr.bf16.mxu0 0
        %1537 = vmatmul.mubr.bf16.gmra.mrb[0].mxu0 %v1502
        %v1538 = vpop.f32.mrb[0].mxu0
        %v1539 = vadd.f32 0.0, %v1538
        %v1540 = vpop.f32.mrb[0].mxu0
        %v1541 = vpop.f32.mrb[0].mxu0
        %v1542 = vadd.f32 0.0, %v1541
        %v1543 = vpop.f32.mrb[0].mxu0
        %1544 = vdwg.mxu0
        %v1545 = vadd.f32 %v1499, %v1539
        %v1546 = vadd.f32 %v1500, %v1542
        %v1547 = vadd.f32 %v1545, %v1485
        %v1548 = vadd.f32 %v1546, %v1485
        %v1549 = vmax.f32 %v1547, 0.0
        %v1550 = vmax.f32 %v1548, 0.0
        %1551 = vst.msk [vmem:[%s1307] sm:$0xff] %vm692, %v1549
        %1552 = vst.msk [vmem:[%s1307 + $0x8] sm:$0xff] %vm692, %v1550
        %v1553 = vld [vmem:[%s14] sm:$0xf]
        %v1554 = vld [vmem:[%s14 + $0x4] sm:$0xf]
        %v1555 = vld [vmem:[%s14 + $0x8] sm:$0xf]
        %v1556 = vld [vmem:[%s14 + $0xc] sm:$0xf]
        %v1557 = vld [vmem:[%s14 + $0x10] sm:$0xf]
        %v1558 = vld [vmem:[%s14 + $0x14] sm:$0xf]
        %v1559 = vld [vmem:[%s14 + $0x18] sm:$0xf]
        %v1560 = vld [vmem:[%s14 + $0x1c] sm:$0xf]
        %v1561 = vld [vmem:[%s14 + $0x20] sm:$0xf]
        %v1562 = vld [vmem:[%s14 + $0x24] sm:$0xf]
        %v1563 = vld [vmem:[%s14 + $0x28] sm:$0xf]
        %v1564 = vld [vmem:[%s14 + $0x2c] sm:$0xf]
        %v1565 = vld [vmem:[%s14 + $0x30] sm:$0xf]
        %v1566 = vld [vmem:[%s14 + $0x34] sm:$0xf]
        %v1567 = vld [vmem:[%s14 + $0x38] sm:$0xf]
        %v1568 = vld [vmem:[%s14 + $0x3c] sm:$0xf]
        %v1569 = vld [vmem:[%s11] sm:$0x1]
        %v1570 = vld [vmem:[%s12] sm:$0x1]
        %v1571 = vld [vmem:[%s13] sm:$0x1]
        %v1572 = vld [vmem:[%s15] sm:$0x1]
        %v1573 = vld [vmem:[#allocation2] sm:$0xff]
        %v1574 = vld [vmem:[#allocation2 + $0x8] sm:$0xff]
        %v1575 = vld [vmem:[#allocation2 + $0x10] sm:$0xff]
        %v1576 = vld [vmem:[#allocation2 + $0x18] sm:$0xff]
        %v1577 = vpack.c.bf16 %v1574, %v1573
        %v1578 = vpack.c.bf16 %v1576, %v1575
        %v1579 = vpack.c.bf16 %v1571, %v1571
        %v1581 = vpack.i.b16 %v1579, %v1579
        %v1583 = vlaneseq
        %v1584 = vshrl.u32 %v1583, 7
        %v1585 = vsub.s32 0, %v1584
        %v1586 = vrot.slane %v1581, %v1585
        %v1587 = vmul.bf16 %v1577, %v1586
        %v1588 = vmul.bf16 %v1578, %v1586
        %v1589 = vpack.c.bf16 %v1570, %v1570
        %v1591 = vsel %vm692, %v1589, 0
        %v1594 = vsel %vm692, %v1577, 0
        %v1597 = vsel %vm692, %v1578, 0
        %1599 = vmatprep.subr.bf16.mxu0 0
        %1600 = vmatpush1.bf16.xpose.msra.mxu0 %v1594
        %1601 = vmatprep.subr.bf16.mxu0 0
        %1602 = vmatpush1.bf16.xpose.msra.mxu0 %v1597
        %1603 = vmatprep.subr.bf16.mxu0 0
        %1604 = vmatpush1.bf16.xpose.msra.mxu0 0
        %1605 = vmatprep.subr.bf16.mxu0 0
        %1606 = vmatpush1.bf16.xpose.msra.mxu0 0
        %1607 = vmatprep.subr.bf16.mxu0 0
        %1608 = vmatpush1.bf16.xpose.msra.mxu0 0
        %1609 = vmatprep.subr.bf16.mxu0 0
        %1610 = vmatpush1.bf16.xpose.msra.mxu0 0
        %1611 = vmatprep.subr.bf16.mxu0 0
        %1612 = vmatpush1.bf16.xpose.msra.mxu0 0
        %1613 = vmatprep.subr.bf16.mxu0 0
        %1614 = vmatpush1.bf16.xpose.msra.mxu0 0
        %1615 = vmatprep.subr.bf16.mxu0 0
        %1616 = vmatpush1.bf16.xpose.msra.mxu0 0
        %1617 = vmatprep.subr.bf16.mxu0 0
        %1618 = vmatpush1.bf16.xpose.msra.mxu0 0
        %1619 = vmatprep.subr.bf16.mxu0 0
        %1620 = vmatpush1.bf16.xpose.msra.mxu0 0
        %1621 = vmatprep.subr.bf16.mxu0 0
        %1622 = vmatpush1.bf16.xpose.msra.mxu0 0
        %1623 = vmatprep.subr.bf16.mxu0 0
        %1624 = vmatpush1.bf16.xpose.msra.mxu0 0
        %1625 = vmatprep.subr.bf16.mxu0 0
        %1626 = vmatpush1.bf16.xpose.msra.mxu0 0
        %1627 = vmatprep.subr.bf16.mxu0 0
        %1628 = vmatpush1.bf16.xpose.msra.mxu0 0
        %1629 = vmatprep.subr.bf16.mxu0 0
        %1630 = vmatpush1.bf16.xpose.msra.mxu0 0
        %1631 = vmatprep.mubr.bf16.mxu0 0
        %1632 = vmatmul.mubr.bf16.gmra.mrb[0].mxu0 %v1591
        %v1633 = vpop.f32.mrb[0].mxu0
        %v1634 = vadd.f32 0.0, %v1633
        %v1635 = vpop.f32.mrb[0].mxu0
        %v1636 = vpop.f32.mrb[0].mxu0
        %v1637 = vpop.f32.mrb[0].mxu0
        %1638 = vdwg.mxu0
        %v1639 = vsub.f32 1.0, %v658
        %v1640 = vmul.f32 %v1639, 1e+30
        %v1641 = vsub.f32 %v1634, %v1640
        %v1642 = vld [vmem:[#allocation2] sm:$0xff]
        %v1643 = vld [vmem:[#allocation2 + $0x8] sm:$0xff]
        %v1644 = vpack.c.bf16 %v1643, %v1642
        %v1645 = vlaneseq
        %v1646 = vshrl.u32 %v1645, 7
        %v1647 = vsub.s32 0, %v1646
        %v1648 = vrot.slane %v1641, %v1647
        %v1650 = vsel %vm692, %v1644, 0
        %v1653 = vsel %vm692, %v1587, 0
        %v1656 = vsel %vm692, %v1588, 0
        %1658 = vmatprep.subr.bf16.mxu0 0
        %1659 = vmatpush1.bf16.xpose.msra.mxu0 %v1653
        %1660 = vmatprep.subr.bf16.mxu0 0
        %1661 = vmatpush1.bf16.xpose.msra.mxu0 %v1656
        %1662 = vmatprep.subr.bf16.mxu0 0
        %1663 = vmatpush1.bf16.xpose.msra.mxu0 0
        %1664 = vmatprep.subr.bf16.mxu0 0
        %1665 = vmatpush1.bf16.xpose.msra.mxu0 0
        %1666 = vmatprep.subr.bf16.mxu0 0
        %1667 = vmatpush1.bf16.xpose.msra.mxu0 0
        %1668 = vmatprep.subr.bf16.mxu0 0
        %1669 = vmatpush1.bf16.xpose.msra.mxu0 0
        %1670 = vmatprep.subr.bf16.mxu0 0
        %1671 = vmatpush1.bf16.xpose.msra.mxu0 0
        %1672 = vmatprep.subr.bf16.mxu0 0
        %1673 = vmatpush1.bf16.xpose.msra.mxu0 0
        %1674 = vmatprep.subr.bf16.mxu0 0
        %1675 = vmatpush1.bf16.xpose.msra.mxu0 0
        %1676 = vmatprep.subr.bf16.mxu0 0
        %1677 = vmatpush1.bf16.xpose.msra.mxu0 0
        %1678 = vmatprep.subr.bf16.mxu0 0
        %1679 = vmatpush1.bf16.xpose.msra.mxu0 0
        %1680 = vmatprep.subr.bf16.mxu0 0
        %1681 = vmatpush1.bf16.xpose.msra.mxu0 0
        %1682 = vmatprep.subr.bf16.mxu0 0
        %1683 = vmatpush1.bf16.xpose.msra.mxu0 0
        %1684 = vmatprep.subr.bf16.mxu0 0
        %1685 = vmatpush1.bf16.xpose.msra.mxu0 0
        %1686 = vmatprep.subr.bf16.mxu0 0
        %1687 = vmatpush1.bf16.xpose.msra.mxu0 0
        %1688 = vmatprep.subr.bf16.mxu0 0
        %1689 = vmatpush1.bf16.xpose.msra.mxu0 0
        %1690 = vmatprep.mubr.bf16.mxu0 0
        %1691 = vmatmul.mubr.bf16.gmra.mrb[0].mxu0 %v1650
        %v1692 = vpop.f32.mrb[0].mxu0
        %v1693 = vadd.f32 %v1648, %v1692
        %v1694 = vpop.f32.mrb[0].mxu0
        %v1695 = vpop.f32.mrb[0].mxu0
        %v1696 = vadd.f32 %v1648, %v1695
        %v1697 = vpop.f32.mrb[0].mxu0
        %1698 = vdwg.mxu0
        %v1699 = vsel %vm692, %v1693, -inf
        %1700 = vmax.xlane.f32.xlu0 %v1699
        %v1701 = vpop.xlane.xlu0 %1700
        %v1702 = vsel %vm692, %v1696, -inf
        %1703 = vmax.xlane.f32.xlu0 %v1702
        %v1704 = vpop.xlane.xlu0 %1703
        %v1705 = vsub.f32 %v1693, %v1701
        %v1706 = vsub.f32 %v1696, %v1704
        %v1707 = vmul.f32 %v1705, 1.442695
        %v1708 = vpow.pop %v1707
        %v1709 = vmul.f32 %v1706, 1.442695
        %v1710 = vpow.pop %v1709
        %v1711 = vsel %vm692, %v1708, 0.0
        %1712 = vadd.xlane.f32.xlu0 %v1711
        %v1713 = vpop.xlane.xlu0 %1712
        %v1714 = vsel %vm692, %v1710, 0.0
        %1715 = vadd.xlane.f32.xlu0 %v1714
        %v1716 = vpop.xlane.xlu0 %1715
        %v1717 = vpack.c.bf16 %v1710, %v1708
        %v1719 = vsel %vm692, %v1717, 0
        %1721 = vmatprep.subr.bf16.mxu0 0
        %1722 = vmatpush1.bf16.msra.mxu0 %v1577
        %1723 = vmatprep.subr.bf16.mxu0 0
        %1724 = vmatpush1.bf16.msra.mxu0 %v1578
        %1725 = vmatprep.subr.bf16.mxu0 0
        %1726 = vmatpush1.bf16.msra.mxu0 0
        %1727 = vmatprep.subr.bf16.mxu0 0
        %1728 = vmatpush1.bf16.msra.mxu0 0
        %1729 = vmatprep.subr.bf16.mxu0 0
        %1730 = vmatpush1.bf16.msra.mxu0 0
        %1731 = vmatprep.subr.bf16.mxu0 0
        %1732 = vmatpush1.bf16.msra.mxu0 0
        %1733 = vmatprep.subr.bf16.mxu0 0
        %1734 = vmatpush1.bf16.msra.mxu0 0
        %1735 = vmatprep.subr.bf16.mxu0 0
        %1736 = vmatpush1.bf16.msra.mxu0 0
        %1737 = vmatprep.subr.bf16.mxu0 0
        %1738 = vmatpush1.bf16.msra.mxu0 0
        %1739 = vmatprep.subr.bf16.mxu0 0
        %1740 = vmatpush1.bf16.msra.mxu0 0
        %1741 = vmatprep.subr.bf16.mxu0 0
        %1742 = vmatpush1.bf16.msra.mxu0 0
        %1743 = vmatprep.subr.bf16.mxu0 0
        %1744 = vmatpush1.bf16.msra.mxu0 0
        %1745 = vmatprep.subr.bf16.mxu0 0
        %1746 = vmatpush1.bf16.msra.mxu0 0
        %1747 = vmatprep.subr.bf16.mxu0 0
        %1748 = vmatpush1.bf16.msra.mxu0 0
        %1749 = vmatprep.subr.bf16.mxu0 0
        %1750 = vmatpush1.bf16.msra.mxu0 0
        %1751 = vmatprep.subr.bf16.mxu0 0
        %1752 = vmatpush1.bf16.msra.mxu0 0
        %1753 = vmatprep.mubr.bf16.mxu0 0
        %1754 = vmatmul.mubr.bf16.gmra.mrb[0].mxu0 %v1719
        %v1755 = vpop.f32.mrb[0].mxu0
        %v1756 = vadd.f32 0.0, %v1755
        %v1757 = vpop.f32.mrb[0].mxu0
        %v1758 = vpop.f32.mrb[0].mxu0
        %v1759 = vadd.f32 0.0, %v1758
        %v1760 = vpop.f32.mrb[0].mxu0
        %1761 = vdwg.mxu0
        %v1762 = vrcp.pop %v1713
        %v1763 = vrcp.pop %v1716
        %v1764 = vmul.f32 %v1756, %v1762
        %v1765 = vmul.f32 %v1759, %v1763
        %v1766 = vpack.c.bf16 %v1765, %v1764
        %v1771 = vunpack.c.l.b16 %v1557
        %v1772 = vunpack.c.l.b16 %v1558
        %v1773 = vunpack.c.l.b16 %v1559
        %v1774 = vunpack.c.l.b16 %v1560
        %v1775 = vpack.c.b16 %v1772, %v1771
        %v1776 = vpack.c.b16 %v1774, %v1773
        %v1780 = vsel %vm692, %v1766, 0
        %1782 = vmatprep.subr.bf16.mxu0 0
        %1783 = vmatpush1.bf16.msra.mxu0 %v1775
        %1784 = vmatprep.subr.bf16.mxu0 0
        %1785 = vmatpush1.bf16.msra.mxu0 %v1776
        %1786 = vmatprep.subr.bf16.mxu0 0
        %1787 = vmatpush1.bf16.msra.mxu0 0
        %1788 = vmatprep.subr.bf16.mxu0 0
        %1789 = vmatpush1.bf16.msra.mxu0 0
        %1790 = vmatprep.subr.bf16.mxu0 0
        %1791 = vmatpush1.bf16.msra.mxu0 0
        %1792 = vmatprep.subr.bf16.mxu0 0
        %1793 = vmatpush1.bf16.msra.mxu0 0
        %1794 = vmatprep.subr.bf16.mxu0 0
        %1795 = vmatpush1.bf16.msra.mxu0 0
        %1796 = vmatprep.subr.bf16.mxu0 0
        %1797 = vmatpush1.bf16.msra.mxu0 0
        %1798 = vmatprep.subr.bf16.mxu0 0
        %1799 = vmatpush1.bf16.msra.mxu0 0
        %1800 = vmatprep.subr.bf16.mxu0 0
        %1801 = vmatpush1.bf16.msra.mxu0 0
        %1802 = vmatprep.subr.bf16.mxu0 0
        %1803 = vmatpush1.bf16.msra.mxu0 0
        %1804 = vmatprep.subr.bf16.mxu0 0
        %1805 = vmatpush1.bf16.msra.mxu0 0
        %1806 = vmatprep.subr.bf16.mxu0 0
        %1807 = vmatpush1.bf16.msra.mxu0 0
        %1808 = vmatprep.subr.bf16.mxu0 0
        %1809 = vmatpush1.bf16.msra.mxu0 0
        %1810 = vmatprep.subr.bf16.mxu0 0
        %1811 = vmatpush1.bf16.msra.mxu0 0
        %1812 = vmatprep.subr.bf16.mxu0 0
        %1813 = vmatpush1.bf16.msra.mxu0 0
        %1814 = vmatprep.mubr.bf16.mxu0 0
        %1815 = vmatmul.mubr.bf16.gmra.mrb[0].mxu0 %v1780
        %v1816 = vpop.f32.mrb[0].mxu0
        %v1817 = vadd.f32 0.0, %v1816
        %v1818 = vpop.f32.mrb[0].mxu0
        %v1819 = vpop.f32.mrb[0].mxu0
        %v1820 = vadd.f32 0.0, %v1819
        %v1821 = vpop.f32.mrb[0].mxu0
        %1822 = vdwg.mxu0
        %v1827 = vunpack.c.l.b16 %v1553
        %v1828 = vunpack.c.l.b16 %v1554
        %v1829 = vunpack.c.l.b16 %v1555
        %v1830 = vunpack.c.l.b16 %v1556
        %v1831 = vpack.c.b16 %v1828, %v1827
        %v1832 = vpack.c.b16 %v1830, %v1829
        %1835 = vmatprep.subr.bf16.mxu0 0
        %1836 = vmatpush1.bf16.msra.mxu0 %v1831
        %1837 = vmatprep.subr.bf16.mxu0 0
        %1838 = vmatpush1.bf16.msra.mxu0 %v1832
        %1839 = vmatprep.subr.bf16.mxu0 0
        %1840 = vmatpush1.bf16.msra.mxu0 0
        %1841 = vmatprep.subr.bf16.mxu0 0
        %1842 = vmatpush1.bf16.msra.mxu0 0
        %1843 = vmatprep.subr.bf16.mxu0 0
        %1844 = vmatpush1.bf16.msra.mxu0 0
        %1845 = vmatprep.subr.bf16.mxu0 0
        %1846 = vmatpush1.bf16.msra.mxu0 0
        %1847 = vmatprep.subr.bf16.mxu0 0
        %1848 = vmatpush1.bf16.msra.mxu0 0
        %1849 = vmatprep.subr.bf16.mxu0 0
        %1850 = vmatpush1.bf16.msra.mxu0 0
        %1851 = vmatprep.subr.bf16.mxu0 0
        %1852 = vmatpush1.bf16.msra.mxu0 0
        %1853 = vmatprep.subr.bf16.mxu0 0
        %1854 = vmatpush1.bf16.msra.mxu0 0
        %1855 = vmatprep.subr.bf16.mxu0 0
        %1856 = vmatpush1.bf16.msra.mxu0 0
        %1857 = vmatprep.subr.bf16.mxu0 0
        %1858 = vmatpush1.bf16.msra.mxu0 0
        %1859 = vmatprep.subr.bf16.mxu0 0
        %1860 = vmatpush1.bf16.msra.mxu0 0
        %1861 = vmatprep.subr.bf16.mxu0 0
        %1862 = vmatpush1.bf16.msra.mxu0 0
        %1863 = vmatprep.subr.bf16.mxu0 0
        %1864 = vmatpush1.bf16.msra.mxu0 0
        %1865 = vmatprep.subr.bf16.mxu0 0
        %1866 = vmatpush1.bf16.msra.mxu0 0
        %1867 = vmatprep.mubr.bf16.mxu0 0
        %1868 = vmatmul.mubr.bf16.gmra.mrb[0].mxu0 %v1650
        %v1869 = vpop.f32.mrb[0].mxu0
        %v1870 = vadd.f32 %v1817, %v1869
        %v1871 = vpop.f32.mrb[0].mxu0
        %v1872 = vpop.f32.mrb[0].mxu0
        %v1873 = vadd.f32 %v1820, %v1872
        %v1874 = vpop.f32.mrb[0].mxu0
        %1875 = vdwg.mxu0
        %v1876 = vmul.f32 %v1642, %v1764
        %v1877 = vmul.f32 %v1643, %v1765
        %v1878 = vpack.c.bf16 %v1877, %v1876
        %v1883 = vunpack.c.l.b16 %v1561
        %v1884 = vunpack.c.l.b16 %v1562
        %v1885 = vunpack.c.l.b16 %v1563
        %v1886 = vunpack.c.l.b16 %v1564
        %v1887 = vpack.c.b16 %v1884, %v1883
        %v1888 = vpack.c.b16 %v1886, %v1885
        %v1892 = vsel %vm692, %v1878, 0
        %1894 = vmatprep.subr.bf16.mxu0 0
        %1895 = vmatpush1.bf16.msra.mxu0 %v1887
        %1896 = vmatprep.subr.bf16.mxu0 0
        %1897 = vmatpush1.bf16.msra.mxu0 %v1888
        %1898 = vmatprep.subr.bf16.mxu0 0
        %1899 = vmatpush1.bf16.msra.mxu0 0
        %1900 = vmatprep.subr.bf16.mxu0 0
        %1901 = vmatpush1.bf16.msra.mxu0 0
        %1902 = vmatprep.subr.bf16.mxu0 0
        %1903 = vmatpush1.bf16.msra.mxu0 0
        %1904 = vmatprep.subr.bf16.mxu0 0
        %1905 = vmatpush1.bf16.msra.mxu0 0
        %1906 = vmatprep.subr.bf16.mxu0 0
        %1907 = vmatpush1.bf16.msra.mxu0 0
        %1908 = vmatprep.subr.bf16.mxu0 0
        %1909 = vmatpush1.bf16.msra.mxu0 0
        %1910 = vmatprep.subr.bf16.mxu0 0
        %1911 = vmatpush1.bf16.msra.mxu0 0
        %1912 = vmatprep.subr.bf16.mxu0 0
        %1913 = vmatpush1.bf16.msra.mxu0 0
        %1914 = vmatprep.subr.bf16.mxu0 0
        %1915 = vmatpush1.bf16.msra.mxu0 0
        %1916 = vmatprep.subr.bf16.mxu0 0
        %1917 = vmatpush1.bf16.msra.mxu0 0
        %1918 = vmatprep.subr.bf16.mxu0 0
        %1919 = vmatpush1.bf16.msra.mxu0 0
        %1920 = vmatprep.subr.bf16.mxu0 0
        %1921 = vmatpush1.bf16.msra.mxu0 0
        %1922 = vmatprep.subr.bf16.mxu0 0
        %1923 = vmatpush1.bf16.msra.mxu0 0
        %1924 = vmatprep.subr.bf16.mxu0 0
        %1925 = vmatpush1.bf16.msra.mxu0 0
        %1926 = vmatprep.mubr.bf16.mxu0 0
        %1927 = vmatmul.mubr.bf16.gmra.mrb[0].mxu0 %v1892
        %v1928 = vpop.f32.mrb[0].mxu0
        %v1929 = vadd.f32 0.0, %v1928
        %v1930 = vpop.f32.mrb[0].mxu0
        %v1931 = vpop.f32.mrb[0].mxu0
        %v1932 = vadd.f32 0.0, %v1931
        %v1933 = vpop.f32.mrb[0].mxu0
        %1934 = vdwg.mxu0
        %v1935 = vadd.f32 %v1870, %v1929
        %v1936 = vadd.f32 %v1873, %v1932
        %1937 = vst.msk [vmem:[#allocation3] sm:$0xff] %vm692, %v1935
        %1938 = vst.msk [vmem:[#allocation3 + $0x8] sm:$0xff] %vm692, %v1936
        %1939 = vst.msk [vmem:[#allocation4] sm:$0xff] %vm692, %v1766
        %v1941 = vlaneseq
        %v1942 = vshrl.u32 %v1941, 7
        %v1943 = vsub.s32 0, %v1942
        %v1944 = vrot.slane %v1569, %v1943
        %v1946 = vmul.f32 %v1642, %v1944
        %v1947 = vmul.f32 %v1643, %v1944
        %v1948 = vsel %vm692, %v1946, 0.0
        %1949 = vadd.xlane.f32.xlu0 %v1948
        %v1950 = vpop.xlane.xlu0 %1949
        %v1951 = vsel %vm692, %v1947, 0.0
        %1952 = vadd.xlane.f32.xlu0 %v1951
        %v1953 = vpop.xlane.xlu0 %1952
        %v1954 = vadd.f32 %v1701, %v1950
        %v1955 = vadd.f32 %v1704, %v1953
        %1956 = vst.msk [vmem:[#allocation5] sm:$0xff] %vm1054, %v1954
        %1957 = vst.msk [vmem:[#allocation5 + $0x8] sm:$0xff] %vm1054, %v1955
        %v1958 = vld [vmem:[%s1307] sm:$0xff]
        %v1959 = vld [vmem:[%s1307 + $0x8] sm:$0xff]
        %v1960 = vpack.c.bf16 %v1959, %v1958
        %v1962 = vsel %vm692, %v1960, 0
        %1964 = vmatprep.subr.bf16.mxu0 0
        %1965 = vmatpush1.bf16.xpose.msra.mxu0 %v1653
        %1966 = vmatprep.subr.bf16.mxu0 0
        %1967 = vmatpush1.bf16.xpose.msra.mxu0 %v1656
        %1968 = vmatprep.subr.bf16.mxu0 0
        %1969 = vmatpush1.bf16.xpose.msra.mxu0 0
        %1970 = vmatprep.subr.bf16.mxu0 0
        %1971 = vmatpush1.bf16.xpose.msra.mxu0 0
        %1972 = vmatprep.subr.bf16.mxu0 0
        %1973 = vmatpush1.bf16.xpose.msra.mxu0 0
        %1974 = vmatprep.subr.bf16.mxu0 0
        %1975 = vmatpush1.bf16.xpose.msra.mxu0 0
        %1976 = vmatprep.subr.bf16.mxu0 0
        %1977 = vmatpush1.bf16.xpose.msra.mxu0 0
        %1978 = vmatprep.subr.bf16.mxu0 0
        %1979 = vmatpush1.bf16.xpose.msra.mxu0 0
        %1980 = vmatprep.subr.bf16.mxu0 0
        %1981 = vmatpush1.bf16.xpose.msra.mxu0 0
        %1982 = vmatprep.subr.bf16.mxu0 0
        %1983 = vmatpush1.bf16.xpose.msra.mxu0 0
        %1984 = vmatprep.subr.bf16.mxu0 0
        %1985 = vmatpush1.bf16.xpose.msra.mxu0 0
        %1986 = vmatprep.subr.bf16.mxu0 0
        %1987 = vmatpush1.bf16.xpose.msra.mxu0 0
        %1988 = vmatprep.subr.bf16.mxu0 0
        %1989 = vmatpush1.bf16.xpose.msra.mxu0 0
        %1990 = vmatprep.subr.bf16.mxu0 0
        %1991 = vmatpush1.bf16.xpose.msra.mxu0 0
        %1992 = vmatprep.subr.bf16.mxu0 0
        %1993 = vmatpush1.bf16.xpose.msra.mxu0 0
        %1994 = vmatprep.subr.bf16.mxu0 0
        %1995 = vmatpush1.bf16.xpose.msra.mxu0 0
        %1996 = vmatprep.mubr.bf16.mxu0 0
        %1997 = vmatmul.mubr.bf16.gmra.mrb[0].mxu0 %v1962
        %v1998 = vpop.f32.mrb[0].mxu0
        %v1999 = vadd.f32 %v1648, %v1998
        %v2000 = vpop.f32.mrb[0].mxu0
        %v2001 = vpop.f32.mrb[0].mxu0
        %v2002 = vadd.f32 %v1648, %v2001
        %v2003 = vpop.f32.mrb[0].mxu0
        %2004 = vdwg.mxu0
        %v2005 = vsel %vm692, %v1999, -inf
        %2006 = vmax.xlane.f32.xlu0 %v2005
        %v2007 = vpop.xlane.xlu0 %2006
        %v2008 = vsel %vm692, %v2002, -inf
        %2009 = vmax.xlane.f32.xlu0 %v2008
        %v2010 = vpop.xlane.xlu0 %2009
        %v2011 = vsub.f32 %v1999, %v2007
        %v2012 = vsub.f32 %v2002, %v2010
        %v2013 = vmul.f32 %v2011, 1.442695
        %v2014 = vpow.pop %v2013
        %v2015 = vmul.f32 %v2012, 1.442695
        %v2016 = vpow.pop %v2015
        %v2017 = vsel %vm692, %v2014, 0.0
        %2018 = vadd.xlane.f32.xlu0 %v2017
        %v2019 = vpop.xlane.xlu0 %2018
        %v2020 = vsel %vm692, %v2016, 0.0
        %2021 = vadd.xlane.f32.xlu0 %v2020
        %v2022 = vpop.xlane.xlu0 %2021
        %v2023 = vpack.c.bf16 %v2016, %v2014
        %v2025 = vsel %vm692, %v2023, 0
        %2027 = vmatprep.subr.bf16.mxu0 0
        %2028 = vmatpush1.bf16.msra.mxu0 %v1577
        %2029 = vmatprep.subr.bf16.mxu0 0
        %2030 = vmatpush1.bf16.msra.mxu0 %v1578
        %2031 = vmatprep.subr.bf16.mxu0 0
        %2032 = vmatpush1.bf16.msra.mxu0 0
        %2033 = vmatprep.subr.bf16.mxu0 0
        %2034 = vmatpush1.bf16.msra.mxu0 0
        %2035 = vmatprep.subr.bf16.mxu0 0
        %2036 = vmatpush1.bf16.msra.mxu0 0
        %2037 = vmatprep.subr.bf16.mxu0 0
        %2038 = vmatpush1.bf16.msra.mxu0 0
        %2039 = vmatprep.subr.bf16.mxu0 0
        %2040 = vmatpush1.bf16.msra.mxu0 0
        %2041 = vmatprep.subr.bf16.mxu0 0
        %2042 = vmatpush1.bf16.msra.mxu0 0
        %2043 = vmatprep.subr.bf16.mxu0 0
        %2044 = vmatpush1.bf16.msra.mxu0 0
        %2045 = vmatprep.subr.bf16.mxu0 0
        %2046 = vmatpush1.bf16.msra.mxu0 0
        %2047 = vmatprep.subr.bf16.mxu0 0
        %2048 = vmatpush1.bf16.msra.mxu0 0
        %2049 = vmatprep.subr.bf16.mxu0 0
        %2050 = vmatpush1.bf16.msra.mxu0 0
        %2051 = vmatprep.subr.bf16.mxu0 0
        %2052 = vmatpush1.bf16.msra.mxu0 0
        %2053 = vmatprep.subr.bf16.mxu0 0
        %2054 = vmatpush1.bf16.msra.mxu0 0
        %2055 = vmatprep.subr.bf16.mxu0 0
        %2056 = vmatpush1.bf16.msra.mxu0 0
        %2057 = vmatprep.subr.bf16.mxu0 0
        %2058 = vmatpush1.bf16.msra.mxu0 0
        %2059 = vmatprep.mubr.bf16.mxu0 0
        %2060 = vmatmul.mubr.bf16.gmra.mrb[0].mxu0 %v2025
        %v2061 = vpop.f32.mrb[0].mxu0
        %v2062 = vadd.f32 0.0, %v2061
        %v2063 = vpop.f32.mrb[0].mxu0
        %v2064 = vpop.f32.mrb[0].mxu0
        %v2065 = vadd.f32 0.0, %v2064
        %v2066 = vpop.f32.mrb[0].mxu0
        %2067 = vdwg.mxu0
        %v2068 = vrcp.pop %v2019
        %v2069 = vrcp.pop %v2022
        %v2070 = vmul.f32 %v2062, %v2068
        %v2071 = vmul.f32 %v2065, %v2069
        %v2072 = vpack.c.bf16 %v2071, %v2070
        %v2074 = vsel %vm692, %v2072, 0
        %2076 = vmatprep.subr.bf16.mxu0 0
        %2077 = vmatpush1.bf16.msra.mxu0 %v1775
        %2078 = vmatprep.subr.bf16.mxu0 0
        %2079 = vmatpush1.bf16.msra.mxu0 %v1776
        %2080 = vmatprep.subr.bf16.mxu0 0
        %2081 = vmatpush1.bf16.msra.mxu0 0
        %2082 = vmatprep.subr.bf16.mxu0 0
        %2083 = vmatpush1.bf16.msra.mxu0 0
        %2084 = vmatprep.subr.bf16.mxu0 0
        %2085 = vmatpush1.bf16.msra.mxu0 0
        %2086 = vmatprep.subr.bf16.mxu0 0
        %2087 = vmatpush1.bf16.msra.mxu0 0
        %2088 = vmatprep.subr.bf16.mxu0 0
        %2089 = vmatpush1.bf16.msra.mxu0 0
        %2090 = vmatprep.subr.bf16.mxu0 0
        %2091 = vmatpush1.bf16.msra.mxu0 0
        %2092 = vmatprep.subr.bf16.mxu0 0
        %2093 = vmatpush1.bf16.msra.mxu0 0
        %2094 = vmatprep.subr.bf16.mxu0 0
        %2095 = vmatpush1.bf16.msra.mxu0 0
        %2096 = vmatprep.subr.bf16.mxu0 0
        %2097 = vmatpush1.bf16.msra.mxu0 0
        %2098 = vmatprep.subr.bf16.mxu0 0
        %2099 = vmatpush1.bf16.msra.mxu0 0
        %2100 = vmatprep.subr.bf16.mxu0 0
        %2101 = vmatpush1.bf16.msra.mxu0 0
        %2102 = vmatprep.subr.bf16.mxu0 0
        %2103 = vmatpush1.bf16.msra.mxu0 0
        %2104 = vmatprep.subr.bf16.mxu0 0
        %2105 = vmatpush1.bf16.msra.mxu0 0
        %2106 = vmatprep.subr.bf16.mxu0 0
        %2107 = vmatpush1.bf16.msra.mxu0 0
        %2108 = vmatprep.mubr.bf16.mxu0 0
        %2109 = vmatmul.mubr.bf16.gmra.mrb[0].mxu0 %v2074
        %v2110 = vpop.f32.mrb[0].mxu0
        %v2111 = vadd.f32 0.0, %v2110
        %v2112 = vpop.f32.mrb[0].mxu0
        %v2113 = vpop.f32.mrb[0].mxu0
        %v2114 = vadd.f32 0.0, %v2113
        %v2115 = vpop.f32.mrb[0].mxu0
        %2116 = vdwg.mxu0
        %2117 = vmatprep.subr.bf16.mxu0 0
        %2118 = vmatpush1.bf16.msra.mxu0 %v1831
        %2119 = vmatprep.subr.bf16.mxu0 0
        %2120 = vmatpush1.bf16.msra.mxu0 %v1832
        %2121 = vmatprep.subr.bf16.mxu0 0
        %2122 = vmatpush1.bf16.msra.mxu0 0
        %2123 = vmatprep.subr.bf16.mxu0 0
        %2124 = vmatpush1.bf16.msra.mxu0 0
        %2125 = vmatprep.subr.bf16.mxu0 0
        %2126 = vmatpush1.bf16.msra.mxu0 0
        %2127 = vmatprep.subr.bf16.mxu0 0
        %2128 = vmatpush1.bf16.msra.mxu0 0
        %2129 = vmatprep.subr.bf16.mxu0 0
        %2130 = vmatpush1.bf16.msra.mxu0 0
        %2131 = vmatprep.subr.bf16.mxu0 0
        %2132 = vmatpush1.bf16.msra.mxu0 0
        %2133 = vmatprep.subr.bf16.mxu0 0
        %2134 = vmatpush1.bf16.msra.mxu0 0
        %2135 = vmatprep.subr.bf16.mxu0 0
        %2136 = vmatpush1.bf16.msra.mxu0 0
        %2137 = vmatprep.subr.bf16.mxu0 0
        %2138 = vmatpush1.bf16.msra.mxu0 0
        %2139 = vmatprep.subr.bf16.mxu0 0
        %2140 = vmatpush1.bf16.msra.mxu0 0
        %2141 = vmatprep.subr.bf16.mxu0 0
        %2142 = vmatpush1.bf16.msra.mxu0 0
        %2143 = vmatprep.subr.bf16.mxu0 0
        %2144 = vmatpush1.bf16.msra.mxu0 0
        %2145 = vmatprep.subr.bf16.mxu0 0
        %2146 = vmatpush1.bf16.msra.mxu0 0
        %2147 = vmatprep.subr.bf16.mxu0 0
        %2148 = vmatpush1.bf16.msra.mxu0 0
        %2149 = vmatprep.mubr.bf16.mxu0 0
        %2150 = vmatmul.mubr.bf16.gmra.mrb[0].mxu0 %v1962
        %v2151 = vpop.f32.mrb[0].mxu0
        %v2152 = vadd.f32 %v2111, %v2151
        %v2153 = vpop.f32.mrb[0].mxu0
        %v2154 = vpop.f32.mrb[0].mxu0
        %v2155 = vadd.f32 %v2114, %v2154
        %v2156 = vpop.f32.mrb[0].mxu0
        %2157 = vdwg.mxu0
        %v2158 = vmul.f32 %v1958, %v2070
        %v2159 = vmul.f32 %v1959, %v2071
        %v2160 = vpack.c.bf16 %v2159, %v2158
        %v2162 = vsel %vm692, %v2160, 0
        %2164 = vmatprep.subr.bf16.mxu0 0
        %2165 = vmatpush1.bf16.msra.mxu0 %v1887
        %2166 = vmatprep.subr.bf16.mxu0 0
        %2167 = vmatpush1.bf16.msra.mxu0 %v1888
        %2168 = vmatprep.subr.bf16.mxu0 0
        %2169 = vmatpush1.bf16.msra.mxu0 0
        %2170 = vmatprep.subr.bf16.mxu0 0
        %2171 = vmatpush1.bf16.msra.mxu0 0
        %2172 = vmatprep.subr.bf16.mxu0 0
        %2173 = vmatpush1.bf16.msra.mxu0 0
        %2174 = vmatprep.subr.bf16.mxu0 0
        %2175 = vmatpush1.bf16.msra.mxu0 0
        %2176 = vmatprep.subr.bf16.mxu0 0
        %2177 = vmatpush1.bf16.msra.mxu0 0
        %2178 = vmatprep.subr.bf16.mxu0 0
        %2179 = vmatpush1.bf16.msra.mxu0 0
        %2180 = vmatprep.subr.bf16.mxu0 0
        %2181 = vmatpush1.bf16.msra.mxu0 0
        %2182 = vmatprep.subr.bf16.mxu0 0
        %2183 = vmatpush1.bf16.msra.mxu0 0
        %2184 = vmatprep.subr.bf16.mxu0 0
        %2185 = vmatpush1.bf16.msra.mxu0 0
        %2186 = vmatprep.subr.bf16.mxu0 0
        %2187 = vmatpush1.bf16.msra.mxu0 0
        %2188 = vmatprep.subr.bf16.mxu0 0
        %2189 = vmatpush1.bf16.msra.mxu0 0
        %2190 = vmatprep.subr.bf16.mxu0 0
        %2191 = vmatpush1.bf16.msra.mxu0 0
        %2192 = vmatprep.subr.bf16.mxu0 0
        %2193 = vmatpush1.bf16.msra.mxu0 0
        %2194 = vmatprep.subr.bf16.mxu0 0
        %2195 = vmatpush1.bf16.msra.mxu0 0
        %2196 = vmatprep.mubr.bf16.mxu0 0
        %2197 = vmatmul.mubr.bf16.gmra.mrb[0].mxu0 %v2162
        %v2198 = vpop.f32.mrb[0].mxu0
        %v2199 = vadd.f32 0.0, %v2198
        %v2200 = vpop.f32.mrb[0].mxu0
        %v2201 = vpop.f32.mrb[0].mxu0
        %v2202 = vadd.f32 0.0, %v2201
        %v2203 = vpop.f32.mrb[0].mxu0
        %2204 = vdwg.mxu0
        %v2205 = vadd.f32 %v2152, %v2199
        %v2206 = vadd.f32 %v2155, %v2202
        %s2207 = scalar_lea.vmem [#allocation3], 16
        %2208 = vst.msk [vmem:[%s2207] sm:$0xff] %vm692, %v2205
        %2209 = vst.msk [vmem:[%s2207 + $0x8] sm:$0xff] %vm692, %v2206
        %2210 = vst.msk [vmem:[%s1310] sm:$0xff] %vm692, %v2072
        %v2211 = vmul.f32 %v1958, %v1944
        %v2212 = vmul.f32 %v1959, %v1944
        %v2213 = vsel %vm692, %v2211, 0.0
        %2214 = vadd.xlane.f32.xlu0 %v2213
        %v2215 = vpop.xlane.xlu0 %2214
        %v2216 = vsel %vm692, %v2212, 0.0
        %2217 = vadd.xlane.f32.xlu0 %v2216
        %v2218 = vpop.xlane.xlu0 %2217
        %v2219 = vadd.f32 %v2007, %v2215
        %v2220 = vadd.f32 %v2010, %v2218
        %2221 = vst.msk [vmem:[%s1322] sm:$0xff] %vm1054, %v2219
        %2222 = vst.msk [vmem:[%s1322 + $0x8] sm:$0xff] %vm1054, %v2220
        %v2223 = vld [vmem:[#allocation5] sm:$0xff]
        %v2224 = vld [vmem:[#allocation5 + $0x8] sm:$0xff]
        %v2225 = vld [vmem:[#allocation5 + $0x10] sm:$0xff]
        %v2226 = vld [vmem:[#allocation5 + $0x18] sm:$0xff]
        %v2227 = vsel %vm1054, %v2223, -inf
        %v2228 = vsel %vm1054, %v2224, -inf
        %v2229 = vsel %vm1054, %v2225, -inf
        %v2230 = vsel %vm1054, %v2226, -inf
        %v2231 = vmax.f32 %v2227, %v2228
        %v2232 = vmax.f32 %v2229, %v2230
        %v2233 = vmax.f32 %v2231, %v2232
        %v2234 = vrot.slane %v2233, 4
        %v2235 = vmax.f32 %v2233, %v2234
        %v2236 = vrot.slane %v2235, 2
        %v2237 = vmax.f32 %v2235, %v2236
        %v2238 = vrot.slane %v2237, 1
        %v2239 = vmax.f32 %v2237, %v2238
        %v2240 = vsub.f32 %v2223, %v2239
        %v2241 = vsub.f32 %v2224, %v2239
        %v2242 = vsub.f32 %v2225, %v2239
        %v2243 = vsub.f32 %v2226, %v2239
        %v2244 = vmul.f32 %v2240, 1.442695
        %v2245 = vpow.pop %v2244
        %v2246 = vmul.f32 %v2241, 1.442695
        %v2247 = vpow.pop %v2246
        %v2248 = vmul.f32 %v2242, 1.442695
        %v2249 = vpow.pop %v2248
        %v2250 = vmul.f32 %v2243, 1.442695
        %v2251 = vpow.pop %v2250
        %v2252 = vsel %vm1054, %v2245, 0.0
        %v2253 = vsel %vm1054, %v2247, 0.0
        %v2254 = vadd.f32 %v2252, %v2253
        %v2255 = vsel %vm1054, %v2249, 0.0
        %v2256 = vadd.f32 %v2254, %v2255
        %v2257 = vsel %vm1054, %v2251, 0.0
        %v2258 = vadd.f32 %v2256, %v2257
        %v2259 = vrot.slane %v2258, 4
        %v2260 = vadd.f32 %v2258, %v2259
        %v2261 = vrot.slane %v2260, 2
        %v2262 = vadd.f32 %v2260, %v2261
        %v2263 = vrot.slane %v2262, 1
        %v2264 = vadd.f32 %v2262, %v2263
        %v2265 = vld [vmem:[#allocation2] sm:$0xff]
        %v2266 = vld [vmem:[#allocation2 + $0x8] sm:$0xff]
        %v2267 = vld [vmem:[#allocation2 + $0x10] sm:$0xff]
        %v2268 = vld [vmem:[#allocation2 + $0x18] sm:$0xff]
        %2270 = vset.pattern.permute.xlu0 0
        %2271 = vperm.xlu0 %2270, %v2245
        %v2272 = vpop.permute.xlu0 %2271
        %2275 = vset.pattern.permute.xlu0 0
        %2276 = vperm.xlu0 %2275, %v2247
        %v2277 = vpop.permute.xlu0 %2276
        %2280 = vset.pattern.permute.xlu0 0
        %2281 = vperm.xlu0 %2280, %v2249
        %v2282 = vpop.permute.xlu0 %2281
        %2285 = vset.pattern.permute.xlu0 0
        %2286 = vperm.xlu0 %2285, %v2251
        %v2287 = vpop.permute.xlu0 %2286
        %v2289 = vmul.f32 %v2272, %v2265
        %v2290 = vmul.f32 %v2277, %v2266
        %v2291 = vmul.f32 %v2282, %v2267
        %v2292 = vmul.f32 %v2287, %v2268
        %v2293 = vsel %vm692, %v2289, 0.0
        %v2294 = vsel %vm692, %v2290, 0.0
        %v2295 = vadd.f32 %v2293, %v2294
        %v2296 = vsel %vm692, %v2291, 0.0
        %v2297 = vadd.f32 %v2295, %v2296
        %v2298 = vsel %vm692, %v2292, 0.0
        %v2299 = vadd.f32 %v2297, %v2298
        %v2300 = vrot.slane %v2299, 4
        %v2301 = vadd.f32 %v2299, %v2300
        %v2302 = vrot.slane %v2301, 2
        %v2303 = vadd.f32 %v2301, %v2302
        %v2304 = vrot.slane %v2303, 1
        %v2305 = vadd.f32 %v2303, %v2304
        %v2306 = vrcp.pop %v2264
        %2308 = vset.pattern.permute.xlu0 0
        %2309 = vperm.xlu0 %2308, %v2306
        %v2310 = vpop.permute.xlu0 %2309
        %v2312 = vmul.f32 %v2305, %v2310
        %v2313 = vld [vmem:[#allocation4] sm:$0xff]
        %v2314 = vunpack.c.l.bf16 %v2313
        %v2315 = vunpack.c.h.bf16 %v2313
        %v2316 = vmul.f32 %v2314, %v2312
        %v2317 = vmul.f32 %v2315, %v2312
        %v2318 = vpack.c.bf16 %v2317, %v2316
        %v2319 = vld [vmem:[#allocation3] sm:$0xff]
        %v2320 = vld [vmem:[#allocation3 + $0x8] sm:$0xff]
        %v2325 = vunpack.c.l.b16 %v1565
        %v2326 = vunpack.c.l.b16 %v1566
        %v2327 = vunpack.c.l.b16 %v1567
        %v2328 = vunpack.c.l.b16 %v1568
        %v2329 = vpack.c.b16 %v2326, %v2325
        %v2330 = vpack.c.b16 %v2328, %v2327
        %v2334 = vsel %vm692, %v2318, 0
        %2336 = vmatprep.subr.bf16.mxu0 0
        %2337 = vmatpush1.bf16.msra.mxu0 %v2329
        %2338 = vmatprep.subr.bf16.mxu0 0
        %2339 = vmatpush1.bf16.msra.mxu0 %v2330
        %2340 = vmatprep.subr.bf16.mxu0 0
        %2341 = vmatpush1.bf16.msra.mxu0 0
        %2342 = vmatprep.subr.bf16.mxu0 0
        %2343 = vmatpush1.bf16.msra.mxu0 0
        %2344 = vmatprep.subr.bf16.mxu0 0
        %2345 = vmatpush1.bf16.msra.mxu0 0
        %2346 = vmatprep.subr.bf16.mxu0 0
        %2347 = vmatpush1.bf16.msra.mxu0 0
        %2348 = vmatprep.subr.bf16.mxu0 0
        %2349 = vmatpush1.bf16.msra.mxu0 0
        %2350 = vmatprep.subr.bf16.mxu0 0
        %2351 = vmatpush1.bf16.msra.mxu0 0
        %2352 = vmatprep.subr.bf16.mxu0 0
        %2353 = vmatpush1.bf16.msra.mxu0 0
        %2354 = vmatprep.subr.bf16.mxu0 0
        %2355 = vmatpush1.bf16.msra.mxu0 0
        %2356 = vmatprep.subr.bf16.mxu0 0
        %2357 = vmatpush1.bf16.msra.mxu0 0
        %2358 = vmatprep.subr.bf16.mxu0 0
        %2359 = vmatpush1.bf16.msra.mxu0 0
        %2360 = vmatprep.subr.bf16.mxu0 0
        %2361 = vmatpush1.bf16.msra.mxu0 0
        %2362 = vmatprep.subr.bf16.mxu0 0
        %2363 = vmatpush1.bf16.msra.mxu0 0
        %2364 = vmatprep.subr.bf16.mxu0 0
        %2365 = vmatpush1.bf16.msra.mxu0 0
        %2366 = vmatprep.subr.bf16.mxu0 0
        %2367 = vmatpush1.bf16.msra.mxu0 0
        %2368 = vmatprep.mubr.bf16.mxu0 0
        %2369 = vmatmul.mubr.bf16.gmra.mrb[0].mxu0 %v2334
        %v2370 = vpop.f32.mrb[0].mxu0
        %v2371 = vadd.f32 0.0, %v2370
        %v2372 = vpop.f32.mrb[0].mxu0
        %v2373 = vpop.f32.mrb[0].mxu0
        %v2374 = vadd.f32 0.0, %v2373
        %v2375 = vpop.f32.mrb[0].mxu0
        %2376 = vdwg.mxu0
        %v2377 = vadd.f32 %v2319, %v2371
        %v2378 = vadd.f32 %v2320, %v2374
        %v2380 = vlaneseq
        %v2381 = vshrl.u32 %v2380, 7
        %v2382 = vsub.s32 0, %v2381
        %v2383 = vrot.slane %v1572, %v2382
        %v2385 = vadd.f32 %v2377, %v2383
        %v2386 = vadd.f32 %v2378, %v2383
        %v2387 = vmax.f32 %v2385, 0.0
        %v2388 = vmax.f32 %v2386, 0.0
        %2389 = vst.msk [vmem:[#allocation3] sm:$0xff] %vm692, %v2387
        %2390 = vst.msk [vmem:[#allocation3 + $0x8] sm:$0xff] %vm692, %v2388
        %v2391 = vld [vmem:[%s1310] sm:$0xff]
        %v2392 = vunpack.c.l.bf16 %v2391
        %v2393 = vunpack.c.h.bf16 %v2391
        %v2394 = vmul.f32 %v2392, %v2312
        %v2395 = vmul.f32 %v2393, %v2312
        %v2396 = vpack.c.bf16 %v2395, %v2394
        %v2397 = vld [vmem:[%s2207] sm:$0xff]
        %v2398 = vld [vmem:[%s2207 + $0x8] sm:$0xff]
        %v2400 = vsel %vm692, %v2396, 0
        %2402 = vmatprep.subr.bf16.mxu0 0
        %2403 = vmatpush1.bf16.msra.mxu0 %v2329
        %2404 = vmatprep.subr.bf16.mxu0 0
        %2405 = vmatpush1.bf16.msra.mxu0 %v2330
        %2406 = vmatprep.subr.bf16.mxu0 0
        %2407 = vmatpush1.bf16.msra.mxu0 0
        %2408 = vmatprep.subr.bf16.mxu0 0
        %2409 = vmatpush1.bf16.msra.mxu0 0
        %2410 = vmatprep.subr.bf16.mxu0 0
        %2411 = vmatpush1.bf16.msra.mxu0 0
        %2412 = vmatprep.subr.bf16.mxu0 0
        %2413 = vmatpush1.bf16.msra.mxu0 0
        %2414 = vmatprep.subr.bf16.mxu0 0
        %2415 = vmatpush1.bf16.msra.mxu0 0
        %2416 = vmatprep.subr.bf16.mxu0 0
        %2417 = vmatpush1.bf16.msra.mxu0 0
        %2418 = vmatprep.subr.bf16.mxu0 0
        %2419 = vmatpush1.bf16.msra.mxu0 0
        %2420 = vmatprep.subr.bf16.mxu0 0
        %2421 = vmatpush1.bf16.msra.mxu0 0
        %2422 = vmatprep.subr.bf16.mxu0 0
        %2423 = vmatpush1.bf16.msra.mxu0 0
        %2424 = vmatprep.subr.bf16.mxu0 0
        %2425 = vmatpush1.bf16.msra.mxu0 0
        %2426 = vmatprep.subr.bf16.mxu0 0
        %2427 = vmatpush1.bf16.msra.mxu0 0
        %2428 = vmatprep.subr.bf16.mxu0 0
        %2429 = vmatpush1.bf16.msra.mxu0 0
        %2430 = vmatprep.subr.bf16.mxu0 0
        %2431 = vmatpush1.bf16.msra.mxu0 0
        %2432 = vmatprep.subr.bf16.mxu0 0
        %2433 = vmatpush1.bf16.msra.mxu0 0
        %2434 = vmatprep.mubr.bf16.mxu0 0
        %2435 = vmatmul.mubr.bf16.gmra.mrb[0].mxu0 %v2400
        %v2436 = vpop.f32.mrb[0].mxu0
        %v2437 = vadd.f32 0.0, %v2436
        %v2438 = vpop.f32.mrb[0].mxu0
        %v2439 = vpop.f32.mrb[0].mxu0
        %v2440 = vadd.f32 0.0, %v2439
        %v2441 = vpop.f32.mrb[0].mxu0
        %2442 = vdwg.mxu0
        %v2443 = vadd.f32 %v2397, %v2437
        %v2444 = vadd.f32 %v2398, %v2440
        %v2445 = vadd.f32 %v2443, %v2383
        %v2446 = vadd.f32 %v2444, %v2383
        %v2447 = vmax.f32 %v2445, 0.0
        %v2448 = vmax.f32 %v2446, 0.0
        %2449 = vst.msk [vmem:[%s2207] sm:$0xff] %vm692, %v2447
        %2450 = vst.msk [vmem:[%s2207 + $0x8] sm:$0xff] %vm692, %v2448
        %v2451 = vld [vmem:[#allocation2] sm:$0xff]
        %v2452 = vld [vmem:[#allocation2 + $0x8] sm:$0xff]
        %v2453 = vld [vmem:[#allocation2 + $0x10] sm:$0xff]
        %v2454 = vld [vmem:[#allocation2 + $0x18] sm:$0xff]
        %v2455 = vld [vmem:[#allocation3] sm:$0xff]
        %v2456 = vld [vmem:[#allocation3 + $0x8] sm:$0xff]
        %v2457 = vld [vmem:[#allocation3 + $0x10] sm:$0xff]
        %v2458 = vld [vmem:[#allocation3 + $0x18] sm:$0xff]
        %v2459 = vadd.f32 %v2451, %v2455
        %v2460 = vadd.f32 %v2452, %v2456
        %v2461 = vadd.f32 %v2453, %v2457
        %v2462 = vadd.f32 %v2454, %v2458
        %v2463 = vld [vmem:[%s16] sm:$0x3]
        %v2464 = vld [vmem:[%s17] sm:$0x3]
        %2466 = vset.pattern.permute.xlu0 0
        %2467 = vperm.xlu0 %2466, %v2464
        %v2468 = vpop.permute.xlu0 %2467
        %v2471 = vsel %vm692, %v2463, 0
        %v2474 = vsel %vm692, %v2459, 0
        %v2477 = vsel %vm692, %v2460, 0
        %v2480 = vsel %vm692, %v2461, 0
        %v2483 = vsel %vm692, %v2462, 0
        %2485 = vmatprep.subr.mxu0 0.0
        %2486 = vmatpush1.xpose.msra.mxu0 %v2474
        %2487 = vmatprep.subr.mxu0 0.0
        %2488 = vmatpush1.xpose.msra.mxu0 %v2477
        %2489 = vmatprep.subr.mxu0 0.0
        %2490 = vmatpush1.xpose.msra.mxu0 %v2480
        %2491 = vmatprep.subr.mxu0 0.0
        %2492 = vmatpush1.xpose.msra.mxu0 %v2483
        %2493 = vmatprep.subr.mxu0 0.0
        %2494 = vmatpush1.xpose.msra.mxu0 0.0
        %2495 = vmatprep.subr.mxu0 0.0
        %2496 = vmatpush1.xpose.msra.mxu0 0.0
        %2497 = vmatprep.subr.mxu0 0.0
        %2498 = vmatpush1.xpose.msra.mxu0 0.0
        %2499 = vmatprep.subr.mxu0 0.0
        %2500 = vmatpush1.xpose.msra.mxu0 0.0
        %2501 = vmatprep.subr.mxu0 0.0
        %2502 = vmatpush1.xpose.msra.mxu0 0.0
        %2503 = vmatprep.subr.mxu0 0.0
        %2504 = vmatpush1.xpose.msra.mxu0 0.0
        %2505 = vmatprep.subr.mxu0 0.0
        %2506 = vmatpush1.xpose.msra.mxu0 0.0
        %2507 = vmatprep.subr.mxu0 0.0
        %2508 = vmatpush1.xpose.msra.mxu0 0.0
        %2509 = vmatprep.subr.mxu0 0.0
        %2510 = vmatpush1.xpose.msra.mxu0 0.0
        %2511 = vmatprep.subr.mxu0 0.0
        %2512 = vmatpush1.xpose.msra.mxu0 0.0
        %2513 = vmatprep.subr.mxu0 0.0
        %2514 = vmatpush1.xpose.msra.mxu0 0.0
        %2515 = vmatprep.subr.mxu0 0.0
        %2516 = vmatpush1.xpose.msra.mxu0 0.0
        %2517 = vmatprep.subr.mxu0 0.0
        %2518 = vmatpush1.xpose.msra.mxu0 0.0
        %2519 = vmatprep.subr.mxu0 0.0
        %2520 = vmatpush1.xpose.msra.mxu0 0.0
        %2521 = vmatprep.subr.mxu0 0.0
        %2522 = vmatpush1.xpose.msra.mxu0 0.0
        %2523 = vmatprep.subr.mxu0 0.0
        %2524 = vmatpush1.xpose.msra.mxu0 0.0
        %2525 = vmatprep.subr.mxu0 0.0
        %2526 = vmatpush1.xpose.msra.mxu0 0.0
        %2527 = vmatprep.subr.mxu0 0.0
        %2528 = vmatpush1.xpose.msra.mxu0 0.0
        %2529 = vmatprep.subr.mxu0 0.0
        %2530 = vmatpush1.xpose.msra.mxu0 0.0
        %2531 = vmatprep.subr.mxu0 0.0
        %2532 = vmatpush1.xpose.msra.mxu0 0.0
        %2533 = vmatprep.subr.mxu0 0.0
        %2534 = vmatpush1.xpose.msra.mxu0 0.0
        %2535 = vmatprep.subr.mxu0 0.0
        %2536 = vmatpush1.xpose.msra.mxu0 0.0
        %2537 = vmatprep.subr.mxu0 0.0
        %2538 = vmatpush1.xpose.msra.mxu0 0.0
        %2539 = vmatprep.subr.mxu0 0.0
        %2540 = vmatpush1.xpose.msra.mxu0 0.0
        %2541 = vmatprep.subr.mxu0 0.0
        %2542 = vmatpush1.xpose.msra.mxu0 0.0
        %2543 = vmatprep.subr.mxu0 0.0
        %2544 = vmatpush1.xpose.msra.mxu0 0.0
        %2545 = vmatprep.subr.mxu0 0.0
        %2546 = vmatpush1.xpose.msra.mxu0 0.0
        %2547 = vmatprep.subr.mxu0 0.0
        %2548 = vmatpush1.xpose.msra.mxu0 0.0
        %2549 = vmatprep.mubr.f32.mxu0 0.0
        %2550 = vmatmul.mubr.f32.gmra.mrb[0].mxu0 %v2471
        %v2551 = vpop.f32.mrb[0].mxu0
        %v2552 = vadd.f32 %v2468, %v2551
        %v2553 = vpop.f32.mrb[0].mxu0
        %2554 = vdwg.mxu0
        %vm2555 = vcmp.gt.f32.partialorder %v658, 0.0
        %v2556 = vsel %vm2555, 1, 0
        %v2557 = vlaneseq
        %v2558 = vshrl.u32 %v2557, 7
        %v2559 = vsub.s32 0, %v2558
        %v2560 = vrot.slane %v2556, %v2559
        %vm2561 = vcmp.eq.s32.totalorder %v2560, 1
        %v2562 = vsel %vm2561, %v2552, -inf
        %vm2563 = vcmask 254976
        %2564 = vst.msk [vmem:[%s627] sm:$0x3] %vm2563, %v2562
        %s2565 = sand.u32 %s448, 1
        %s2566 = scalar_lea.sflag [#allocation7], %s2565
        %s2567 = sand.u32 %s448, 1
        %s2568 = smul.addr %s2567, 2
        %s2569 = scalar_lea.vmem [#allocation6], %s2568
        // Predicated region
        $region93: #{tpu_custom_call.1} parent=91 // pred_check
          %p2570 = pneg %p458
        $region94: #{tpu_custom_call.1} parent=91 // pred_check_branch
          %2572 = sbr.rel (%p2570) target = $region96
        $region95: #{tpu_custom_call.1} parent=91 // pred_region
          %s2574 = ssub.s32 32, 32
          %2575 = vsyncadd %s2566, %s2574
          %s2576 = smul.addr %s32, 32
          %s2577 = scalar_lea.hbm %s18, %s2576
          %s2579 = sshll.u32 %s2569, 4
          %s2580 = int_to_ptr.vmem [resolvable:$true] %s2579
          %2582 = dma.vmem_to_hbm [thread:$0]  %s2580, 32, %s2577, %s2566
        $region96: #{tpu_custom_call.1} parent=91 // pred_fallthru
          _
      $region92: #{tpu_custom_call.1} parent=5 // pred_fallthru
        _
      %p2583 = scmp.le.s32.totalorder 2, %s27
      // Predicated region
      $region97: #{tpu_custom_call.1} parent=5 // pred_check
        %p2584 = pneg %p2583
      $region98: #{tpu_custom_call.1} parent=5 // pred_check_branch
        %2586 = sbr.rel (%p2584) target = $region100
      $region99: #{tpu_custom_call.1} parent=5 // pred_region
        %s2587 = ssub.s32 %s27, 2
        // Predicated region
        $region101: #{tpu_custom_call.1} parent=99 // pred_check
          %p2588 = pneg %p464
        $region102: #{tpu_custom_call.1} parent=99 // pred_check_branch
          %2590 = sbr.rel (%p2588) target = $region104
        $region103: #{tpu_custom_call.1} parent=99 // pred_region
          %s2591 = sand.u32 %s449, 1
          %s2592 = scalar_lea.sflag [#allocation7], %s2591
          %s2593 = sand.u32 %s449, 1
          %s2594 = smul.addr %s2593, 2
          %s2595 = scalar_lea.vmem [#allocation6], %s2594
          %2596 = dma.done %s2592, 32
        $region104: #{tpu_custom_call.1} parent=99 // pred_fallthru
          _
      $region100: #{tpu_custom_call.1} parent=5 // pred_fallthru
        _
    $region6: #{tpu_custom_call.1} parent=1 // loop_footer
      %s31 = sadd.s32 1, %s27
    $region7: #{tpu_custom_call.1} parent=1 // loop_footer_branch
      %26 = sbr.rel target = $region3
    $region8: #{tpu_custom_call.1} parent=1 // loop_exit
      _
    %2597 = vsyncpa [#allocation7], 1
    %s2598 = scalar_lea.sflag [#allocation7], 1
    %2599 = vsyncpa %s2598, 1

</llo_original>
